<compile_context>
chip_gen: v7x
topology: tpu7x:2x2x1
jax: 0.10.0
libtpu: 0.0.40
codegen_flags: <defaults>
</compile_context>

<pallas_src>
import jax
import jax.numpy as jnp
from jax.experimental import pallas as pl
from jax.experimental.pallas import tpu as pltpu

# ---- module hyperparameters (from the PyTorch source) ----
GeneratorCombineLayerSize = 512
GeneratorHiddenLayerSize = 512
GeneratorInputLayerOutputSize = 256
GeneratorNoiseDim = 100
PaddedInDim = 128               # noise(100) + label(16) packed + zero pad -> lane-aligned 128

# Data-derived sizes (synthetic, small, lane-friendly):
LabelSize = 16                  # int(np.max(Data_label_mat)) + 1
GeneratorOutputSize = 128       # Data_set_mat.shape[1] (spectral bands)

BN_EPS = 1e-5


# ----------------------------- shared math (kernel + mirror reference) -----------------------------

def _bn_relu(x, gamma, beta):
    """Training-mode BatchNorm1d (batch stats, biased var) + ReLU, folded to one FMA per element."""
    mean = jnp.mean(x, axis=0, keepdims=True)
    var = jnp.mean(jnp.square(x - mean), axis=0, keepdims=True)
    scale = gamma * jax.lax.rsqrt(var + BN_EPS)          # (1, N) — cheap per-feature prep
    shift = beta - mean * scale
    return jnp.maximum(x * scale + shift, 0.0)


def _mm(a_f32, w_bf16):
    """MXU matmul: f32 activations cast to bf16 at the MXU input, f32 accumulation."""
    return jnp.dot(a_f32.astype(jnp.bfloat16), w_bf16, preferred_element_type=jnp.float32)


def _fused_forward_math(xin, w12, w3, w4, w5, bn):
    """Whole Generator forward on one packed (B,128) input block.

    bn layout (8, 512) f32:
      row 0: gamma of fused layer 1  (= [gamma1 | gamma2])
      row 1: gamma3,  row 2: gamma4
      row 3: beta  of fused layer 1  (= [beta1 | beta2])
      row 4: beta3,   row 5: beta4
      row 6 [:Out]: output-layer bias b5 (no BN after it -> kept)
    """
    g1, bt1 = bn[0:1, :], bn[3:4, :]
    g3, bt3 = bn[1:2, :], bn[4:5, :]
    g4, bt4 = bn[2:3, :], bn[5:6, :]
    b5 = bn[6:7, :GeneratorOutputSize]

    # fused noise+label input layer: one (B,128)@(128,512) matmul, one 512-wide BN+ReLU.
    # Columns 0..255 only see the noise lanes (= Linear1), columns 256..511 only the label
    # lanes (= Linear2); per-feature BN stats are therefore identical to the two separate BNs.
    h = _bn_relu(_mm(xin, w12), g1, bt1)                 # (B, 512) == cat([x, y], 1)
    h = _bn_relu(_mm(h, w3), g3, bt3)                    # combine layer
    h = _bn_relu(_mm(h, w4), g4, bt4)                    # hidden layer
    return jnp.maximum(_mm(h, w5) + b5, 0.0)             # output layer (+bias, ReLU, no BN)


# ----------------------------- Pallas kernel -----------------------------

def generator_kernel(in_ref, w12_ref, w3_ref, w4_ref, w5_ref, bn_ref, out_ref):
    out_ref[0] = _fused_forward_math(
        in_ref[0], w12_ref[...], w3_ref[...], w4_ref[...], w5_ref[...], bn_ref[...])


def _pack_inputs(noise, label):
    """Pack noise into lanes [0,100), one-hot label into [100,116), zero-pad to 128 lanes."""
    packed = jnp.concatenate([noise.astype(jnp.float32), label.astype(jnp.float32)], axis=-1)
    pad = PaddedInDim - packed.shape[-1]
    pad_cfg = ((0, 0),) * (packed.ndim - 1) + ((0, pad),)
    return jnp.pad(packed, pad_cfg)


@jax.jit
def generator_forward(noise, label, params):
    """Generator forward.

    noise: (G, B, 100) or (B, 100); label: (G, B, LabelSize) or (B, LabelSize).
    Each leading group g is an independent forward pass (its own BatchNorm batch statistics);
    the grid iterates groups with the weights kept VMEM-resident across steps.
    """
    squeeze = noise.ndim == 2
    if squeeze:
        noise, label = noise[None], label[None]
    xin = _pack_inputs(noise, label)                      # (G, B, 128)
    G, B, _ = xin.shape

    w12, w3, w4, w5, bn = params["w12"], params["w3"], params["w4"], params["w5"], params["bn"]

    out = pl.pallas_call(
        generator_kernel,
        out_shape=jax.ShapeDtypeStruct((G, B, GeneratorOutputSize), jnp.float32),
        grid_spec=pltpu.PrefetchScalarGridSpec(
            num_scalar_prefetch=0,
            grid=(G,),
            in_specs=[
                # per-group input block (double-buffered by the pipeline)
                pl.BlockSpec((1, B, PaddedInDim), lambda g: (g, 0, 0)),
                # weights: constant block index -> fetched once, VMEM-resident across the grid
                pl.BlockSpec(w12.shape, lambda g: (0, 0)),
                pl.BlockSpec(w3.shape, lambda g: (0, 0)),
                pl.BlockSpec(w4.shape, lambda g: (0, 0)),
                pl.BlockSpec(w5.shape, lambda g: (0, 0)),
                pl.BlockSpec(bn.shape, lambda g: (0, 0)),
            ],
            out_specs=pl.BlockSpec((1, B, GeneratorOutputSize), lambda g: (g, 0, 0)),
        ),
        compiler_params=pltpu.CompilerParams(
            # groups are independent full batches -> safe to shard over v7x TensorCores
            dimension_semantics=("parallel",),
            vmem_limit_bytes=32 * 1024 * 1024,
        ),
    )(xin, w12, w3, w4, w5, bn)

    return out[0] if squeeze else out


# ----------------------------- parameter construction -----------------------------

def init_module_params(key, *, mean=0.0, std=0.02, randomize_affine=True):
    """Module-style parameters (f32), mirroring Generator.weight_init(mean, std).

    If randomize_affine, BN gammas/betas and all linear biases get small random values so the
    correctness checks actually exercise those code paths (weight_init would zero the biases
    and leave gamma=1/beta=0)."""
    ks = jax.random.split(key, 16)

    def nrm(k, shape, s):
        return mean + s * jax.random.normal(k, shape, dtype=jnp.float32)

    m = {
        "w1": nrm(ks[0], (GeneratorNoiseDim, GeneratorInputLayerOutputSize), std),
        "w2": nrm(ks[1], (LabelSize, GeneratorInputLayerOutputSize), std),
        "w3": nrm(ks[2], (2 * GeneratorInputLayerOutputSize, GeneratorCombineLayerSize), std),
        "w4": nrm(ks[3], (GeneratorCombineLayerSize, GeneratorHiddenLayerSize), std),
        "w5": nrm(ks[4], (GeneratorHiddenLayerSize, GeneratorOutputSize), std),
    }
    n1, n3 = GeneratorInputLayerOutputSize, GeneratorCombineLayerSize
    if randomize_affine:
        m.update({
            "g1": 1.0 + 0.1 * jax.random.normal(ks[5], (n1,), jnp.float32),
            "g2": 1.0 + 0.1 * jax.random.normal(ks[6], (n1,), jnp.float32),
            "g3": 1.0 + 0.1 * jax.random.normal(ks[7], (n3,), jnp.float32),
            "g4": 1.0 + 0.1 * jax.random.normal(ks[8], (n3,), jnp.float32),
            "be1": 0.1 * jax.random.normal(ks[9], (n1,), jnp.float32),
            "be2": 0.1 * jax.random.normal(ks[10], (n1,), jnp.float32),
            "be3": 0.1 * jax.random.normal(ks[11], (n3,), jnp.float32),
            "be4": 0.1 * jax.random.normal(ks[12], (n3,), jnp.float32),
            # pre-BN linear biases: present in the module; the kernel drops them because
            # training-mode BN cancels them exactly. The f32 reference keeps them to prove it.
            "lb1": 0.1 * jax.random.normal(ks[13], (n1,), jnp.float32),
            "lb2": 0.1 * jax.random.normal(ks[14], (n1,), jnp.float32),
            "lb3": 0.1 * jax.random.normal(ks[15], (n3,), jnp.float32),
            "lb4": jnp.zeros((n3,), jnp.float32),
            "lb5": 0.1 * jax.random.normal(ks[13], (GeneratorOutputSize,), jnp.float32),
        })
    else:
        m.update({
            "g1": jnp.ones((n1,), jnp.float32), "g2": jnp.ones((n1,), jnp.float32),
            "g3": jnp.ones((n3,), jnp.float32), "g4": jnp.ones((n3,), jnp.float32),
            "be1": jnp.zeros((n1,), jnp.float32), "be2": jnp.zeros((n1,), jnp.float32),
            "be3": jnp.zeros((n3,), jnp.float32), "be4": jnp.zeros((n3,), jnp.float32),
            "lb1": jnp.zeros((n1,), jnp.float32), "lb2": jnp.zeros((n1,), jnp.float32),
            "lb3": jnp.zeros((n3,), jnp.float32), "lb4": jnp.zeros((n3,), jnp.float32),
            "lb5": jnp.zeros((GeneratorOutputSize,), jnp.float32),
        })
    return m


def pack_params(m):
    """Kernel-packed parameters: fused (128,512) input weight, bf16 weights, one (8,512) bn block."""
    n1 = GeneratorInputLayerOutputSize
    w12 = jnp.zeros((PaddedInDim, 2 * n1), jnp.float32)
    w12 = w12.at[:GeneratorNoiseDim, :n1].set(m["w1"])                               # noise -> cols 0..255
    w12 = w12.at[GeneratorNoiseDim:GeneratorNoiseDim + LabelSize, n1:].set(m["w2"])  # label -> cols 256..511

    bn = jnp.zeros((8, GeneratorCombineLayerSize), jnp.float32)
    bn = bn.at[0, :n1].set(m["g1"]).at[0, n1:].set(m["g2"])
    bn = bn.at[3, :n1].set(m["be1"]).at[3, n1:].set(m["be2"])
    bn = bn.at[1, :].set(m["g3"]).at[4, :].set(m["be3"])
    bn = bn.at[2, :].set(m["g4"]).at[5, :].set(m["be4"])
    bn = bn.at[6, :GeneratorOutputSize].set(m["lb5"])    # output-layer bias stashed in a spare row

    return {
        "w12": w12.astype(jnp.bfloat16),
        "w3": m["w3"].astype(jnp.bfloat16),
        "w4": m["w4"].astype(jnp.bfloat16),
        "w5": m["w5"].astype(jnp.bfloat16),
        "bn": bn,
    }


# ----------------------------- pure-JAX references -----------------------------

def reference_forward_mirror(noise, label, packed):
    """Mirrors the kernel's fused structure and bf16-at-MXU dtype policy exactly."""
    xin = _pack_inputs(noise, label)
    single = xin.ndim == 2
    if single:
        xin = xin[None]
    f = lambda x: _fused_forward_math(x, packed["w12"], packed["w3"], packed["w4"],
                                      packed["w5"], packed["bn"])
    out = jax.vmap(f)(xin)
    return out[0] if single else out


def reference_forward_f32(noise, label, m):
    """All-f32 reference with the ORIGINAL module structure (separate branches, concat,
    pre-BN linear biases included).  Loose-tolerance check of the module semantics; the only
    deltas vs the kernel are bf16 weight/activation rounding and the (exact) bias cancellation."""
    def bn_relu(x, g, b):
        mu = jnp.mean(x, axis=0, keepdims=True)
        var = jnp.mean(jnp.square(x - mu), axis=0, keepdims=True)
        return jnp.maximum((x - mu) * jax.lax.rsqrt(var + BN_EPS) * g + b, 0.0)

    def single(nz, lb):
        x = bn_relu(nz @ m["w1"] + m["lb1"], m["g1"], m["be1"])
        y = bn_relu(lb @ m["w2"] + m["lb2"], m["g2"], m["be2"])
        h = jnp.concatenate([x, y], axis=1)
        h = bn_relu(h @ m["w3"] + m["lb3"], m["g3"], m["be3"])
        h = bn_relu(h @ m["w4"] + m["lb4"], m["g4"], m["be4"])
        return jnp.maximum(h @ m["w5"] + m["lb5"], 0.0)

    if noise.ndim == 2:
        return single(noise, label)
    return jax.vmap(single)(noise, label)


# ----------------------------- test harness -----------------------------

if __name__ == "__main__":
    key = jax.random.PRNGKey(0)
    k_params, k_noise, k_label = jax.random.split(key, 3)

    # G independent batch groups (each = one module forward / one BN batch), B rows per group.
    # B=128 fills the MXU rows; the grid keeps the ~1.25 MB of bf16 weights resident across groups.
    G, B = 2, 128

    module = init_module_params(k_params, randomize_affine=True)
    packed = pack_params(module)

    noise = jax.random.normal(k_noise, (G, B, GeneratorNoiseDim), dtype=jnp.float32)
    label_ids = jax.random.randint(k_label, (G, B), 0, LabelSize)
    label = jax.nn.one_hot(label_ids, LabelSize, dtype=jnp.float32)

    out = generator_forward(noise, label, packed)
    out = jax.block_until_ready(out)
    assert out.shape == (G, B, GeneratorOutputSize)
    assert bool(jnp.all(jnp.isfinite(out)))

    # tight check against a reference with the identical fused structure + bf16 MXU policy
    ref_mirror = reference_forward_mirror(noise, label, packed)
    assert jnp.allclose(out, ref_mirror, atol=2e-3, rtol=2e-3), "mismatch vs bf16-mirror reference"

    # loose check against the original module structure in full f32 (includes the pre-BN linear
    # biases that the kernel drops; bf16 rounding is the remaining delta)
    ref_f32 = reference_forward_f32(noise, label, module)
    assert jnp.allclose(out, ref_f32, atol=1e-1, rtol=1e-1), "mismatch vs f32 module reference"

    print("KERNEL_OK")
</pallas_src>

<mosaic_0001>
module attributes {stable_mosaic.version = 11 : i64} {
  func.func @generator_kernel(%arg0: i32, %arg1: memref<1x128x128xf32, #tpu.memory_space<vmem>>, %arg2: memref<128x512xbf16, #tpu.memory_space<vmem>>, %arg3: memref<512x512xbf16, #tpu.memory_space<vmem>>, %arg4: memref<512x512xbf16, #tpu.memory_space<vmem>>, %arg5: memref<512x128xbf16, #tpu.memory_space<vmem>>, %arg6: memref<8x512xf32, #tpu.memory_space<vmem>>, %arg7: memref<1x128x128xf32, #tpu.memory_space<vmem>>) attributes {dimension_semantics = [#tpu.dimension_semantics<parallel>], iteration_bounds = array<i64: 2>, scalar_prefetch = 0 : i64, scratch_operands = 0 : i64, tpu.core_type = #tpu.core_type<tc>, window_params = [{transform_indices = @transform_0, window_bounds = array<i64: 1, 128, 128>}, {pipeline_mode = #tpu.pipeline_mode<synchronous>, transform_indices = @transform_1, window_bounds = array<i64: 128, 512>}, {pipeline_mode = #tpu.pipeline_mode<synchronous>, transform_indices = @transform_2, window_bounds = array<i64: 512, 512>}, {pipeline_mode = #tpu.pipeline_mode<synchronous>, transform_indices = @transform_3, window_bounds = array<i64: 512, 512>}, {pipeline_mode = #tpu.pipeline_mode<synchronous>, transform_indices = @transform_4, window_bounds = array<i64: 512, 128>}, {pipeline_mode = #tpu.pipeline_mode<synchronous>, transform_indices = @transform_5, window_bounds = array<i64: 8, 512>}, {transform_indices = @transform_6, window_bounds = array<i64: 1, 128, 128>}]} {
    %c0 = arith.constant 0 : index
    %c0_0 = arith.constant 0 : index
    %c0_1 = arith.constant 0 : index
    %0 = vector.load %arg1[%c0, %c0_0, %c0_1] : memref<1x128x128xf32, #tpu.memory_space<vmem>>, vector<1x128x128xf32>
    %1 = vector.shape_cast %0 : vector<1x128x128xf32> to vector<128x128xf32>
    %c0_2 = arith.constant 0 : index
    %c0_3 = arith.constant 0 : index
    %2 = vector.load %arg2[%c0_2, %c0_3] : memref<128x512xbf16, #tpu.memory_space<vmem>>, vector<128x512xbf16>
    %c0_4 = arith.constant 0 : index
    %c0_5 = arith.constant 0 : index
    %3 = vector.load %arg3[%c0_4, %c0_5] : memref<512x512xbf16, #tpu.memory_space<vmem>>, vector<512x512xbf16>
    %c0_6 = arith.constant 0 : index
    %c0_7 = arith.constant 0 : index
    %4 = vector.load %arg4[%c0_6, %c0_7] : memref<512x512xbf16, #tpu.memory_space<vmem>>, vector<512x512xbf16>
    %c0_8 = arith.constant 0 : index
    %c0_9 = arith.constant 0 : index
    %5 = vector.load %arg5[%c0_8, %c0_9] : memref<512x128xbf16, #tpu.memory_space<vmem>>, vector<512x128xbf16>
    %c0_10 = arith.constant 0 : index
    %c0_11 = arith.constant 0 : index
    %6 = vector.load %arg6[%c0_10, %c0_11] : memref<8x512xf32, #tpu.memory_space<vmem>>, vector<8x512xf32>
    %7 = vector.extract_strided_slice %6 {offsets = [0, 0], sizes = [1, 512], strides = [1, 1]} : vector<8x512xf32> to vector<1x512xf32>
    %8 = vector.extract_strided_slice %6 {offsets = [3, 0], sizes = [1, 512], strides = [1, 1]} : vector<8x512xf32> to vector<1x512xf32>
    %9 = vector.extract_strided_slice %6 {offsets = [1, 0], sizes = [1, 512], strides = [1, 1]} : vector<8x512xf32> to vector<1x512xf32>
    %10 = vector.extract_strided_slice %6 {offsets = [4, 0], sizes = [1, 512], strides = [1, 1]} : vector<8x512xf32> to vector<1x512xf32>
    %11 = vector.extract_strided_slice %6 {offsets = [2, 0], sizes = [1, 512], strides = [1, 1]} : vector<8x512xf32> to vector<1x512xf32>
    %12 = vector.extract_strided_slice %6 {offsets = [5, 0], sizes = [1, 512], strides = [1, 1]} : vector<8x512xf32> to vector<1x512xf32>
    %13 = vector.extract_strided_slice %6 {offsets = [6, 0], sizes = [1, 128], strides = [1, 1]} : vector<8x512xf32> to vector<1x128xf32>
    %14 = arith.truncf %1 : vector<128x128xf32> to vector<128x128xbf16>
    %cst = arith.constant dense<0.000000e+00> : vector<128x512xf32>
    %15 = tpu.matmul %14, %2, %cst {dimension_numbers = #tpu.dot_dimension_numbers<[1], [0], [0], [1], [0, 0, 1, 1], [], []>} : vector<128x128xbf16>, vector<128x512xbf16>, vector<128x512xf32> -> vector<128x512xf32>
    %cst_12 = arith.constant dense<0.000000e+00> : vector<512xf32>
    %16 = vector.multi_reduction <add>, %15, %cst_12 [0] : vector<128x512xf32> to vector<512xf32>
    %17 = vector.shape_cast %16 : vector<512xf32> to vector<1x512xf32>
    %cst_13 = arith.constant 1.280000e+02 : f32
    %18 = vector.broadcast %cst_13 : f32 to vector<1x512xf32>
    %19 = arith.divf %17, %18 : vector<1x512xf32>
    %20 = vector.broadcast %19 : vector<1x512xf32> to vector<128x512xf32>
    %21 = arith.subf %15, %20 : vector<128x512xf32>
    %22 = arith.mulf %21, %21 : vector<128x512xf32>
    %cst_14 = arith.constant dense<0.000000e+00> : vector<512xf32>
    %23 = vector.multi_reduction <add>, %22, %cst_14 [0] : vector<128x512xf32> to vector<512xf32>
    %24 = vector.shape_cast %23 : vector<512xf32> to vector<1x512xf32>
    %cst_15 = arith.constant 1.280000e+02 : f32
    %25 = vector.broadcast %cst_15 : f32 to vector<1x512xf32>
    %26 = arith.divf %24, %25 : vector<1x512xf32>
    %cst_16 = arith.constant 9.99999974E-6 : f32
    %27 = vector.broadcast %cst_16 : f32 to vector<1x512xf32>
    %28 = arith.addf %26, %27 : vector<1x512xf32>
    %29 = math.rsqrt %28 : vector<1x512xf32>
    %30 = arith.mulf %7, %29 : vector<1x512xf32>
    %31 = arith.mulf %19, %30 : vector<1x512xf32>
    %32 = arith.subf %8, %31 : vector<1x512xf32>
    %33 = vector.broadcast %30 : vector<1x512xf32> to vector<128x512xf32>
    %34 = arith.mulf %15, %33 : vector<128x512xf32>
    %35 = vector.broadcast %32 : vector<1x512xf32> to vector<128x512xf32>
    %36 = arith.addf %34, %35 : vector<128x512xf32>
    %cst_17 = arith.constant 0.000000e+00 : f32
    %37 = vector.broadcast %cst_17 : f32 to vector<128x512xf32>
    %38 = arith.maximumf %36, %37 : vector<128x512xf32>
    %39 = arith.truncf %38 : vector<128x512xf32> to vector<128x512xbf16>
    %cst_18 = arith.constant dense<0.000000e+00> : vector<128x512xf32>
    %40 = tpu.matmul %39, %3, %cst_18 {dimension_numbers = #tpu.dot_dimension_numbers<[1], [0], [0], [1], [0, 0, 1, 1], [], []>} : vector<128x512xbf16>, vector<512x512xbf16>, vector<128x512xf32> -> vector<128x512xf32>
    %cst_19 = arith.constant dense<0.000000e+00> : vector<512xf32>
    %41 = vector.multi_reduction <add>, %40, %cst_19 [0] : vector<128x512xf32> to vector<512xf32>
    %42 = vector.shape_cast %41 : vector<512xf32> to vector<1x512xf32>
    %cst_20 = arith.constant 1.280000e+02 : f32
    %43 = vector.broadcast %cst_20 : f32 to vector<1x512xf32>
    %44 = arith.divf %42, %43 : vector<1x512xf32>
    %45 = vector.broadcast %44 : vector<1x512xf32> to vector<128x512xf32>
    %46 = arith.subf %40, %45 : vector<128x512xf32>
    %47 = arith.mulf %46, %46 : vector<128x512xf32>
    %cst_21 = arith.constant dense<0.000000e+00> : vector<512xf32>
    %48 = vector.multi_reduction <add>, %47, %cst_21 [0] : vector<128x512xf32> to vector<512xf32>
    %49 = vector.shape_cast %48 : vector<512xf32> to vector<1x512xf32>
    %cst_22 = arith.constant 1.280000e+02 : f32
    %50 = vector.broadcast %cst_22 : f32 to vector<1x512xf32>
    %51 = arith.divf %49, %50 : vector<1x512xf32>
    %cst_23 = arith.constant 9.99999974E-6 : f32
    %52 = vector.broadcast %cst_23 : f32 to vector<1x512xf32>
    %53 = arith.addf %51, %52 : vector<1x512xf32>
    %54 = math.rsqrt %53 : vector<1x512xf32>
    %55 = arith.mulf %9, %54 : vector<1x512xf32>
    %56 = arith.mulf %44, %55 : vector<1x512xf32>
    %57 = arith.subf %10, %56 : vector<1x512xf32>
    %58 = vector.broadcast %55 : vector<1x512xf32> to vector<128x512xf32>
    %59 = arith.mulf %40, %58 : vector<128x512xf32>
    %60 = vector.broadcast %57 : vector<1x512xf32> to vector<128x512xf32>
    %61 = arith.addf %59, %60 : vector<128x512xf32>
    %cst_24 = arith.constant 0.000000e+00 : f32
    %62 = vector.broadcast %cst_24 : f32 to vector<128x512xf32>
    %63 = arith.maximumf %61, %62 : vector<128x512xf32>
    %64 = arith.truncf %63 : vector<128x512xf32> to vector<128x512xbf16>
    %cst_25 = arith.constant dense<0.000000e+00> : vector<128x512xf32>
    %65 = tpu.matmul %64, %4, %cst_25 {dimension_numbers = #tpu.dot_dimension_numbers<[1], [0], [0], [1], [0, 0, 1, 1], [], []>} : vector<128x512xbf16>, vector<512x512xbf16>, vector<128x512xf32> -> vector<128x512xf32>
    %cst_26 = arith.constant dense<0.000000e+00> : vector<512xf32>
    %66 = vector.multi_reduction <add>, %65, %cst_26 [0] : vector<128x512xf32> to vector<512xf32>
    %67 = vector.shape_cast %66 : vector<512xf32> to vector<1x512xf32>
    %cst_27 = arith.constant 1.280000e+02 : f32
    %68 = vector.broadcast %cst_27 : f32 to vector<1x512xf32>
    %69 = arith.divf %67, %68 : vector<1x512xf32>
    %70 = vector.broadcast %69 : vector<1x512xf32> to vector<128x512xf32>
    %71 = arith.subf %65, %70 : vector<128x512xf32>
    %72 = arith.mulf %71, %71 : vector<128x512xf32>
    %cst_28 = arith.constant dense<0.000000e+00> : vector<512xf32>
    %73 = vector.multi_reduction <add>, %72, %cst_28 [0] : vector<128x512xf32> to vector<512xf32>
    %74 = vector.shape_cast %73 : vector<512xf32> to vector<1x512xf32>
    %cst_29 = arith.constant 1.280000e+02 : f32
    %75 = vector.broadcast %cst_29 : f32 to vector<1x512xf32>
    %76 = arith.divf %74, %75 : vector<1x512xf32>
    %cst_30 = arith.constant 9.99999974E-6 : f32
    %77 = vector.broadcast %cst_30 : f32 to vector<1x512xf32>
    %78 = arith.addf %76, %77 : vector<1x512xf32>
    %79 = math.rsqrt %78 : vector<1x512xf32>
    %80 = arith.mulf %11, %79 : vector<1x512xf32>
    %81 = arith.mulf %69, %80 : vector<1x512xf32>
    %82 = arith.subf %12, %81 : vector<1x512xf32>
    %83 = vector.broadcast %80 : vector<1x512xf32> to vector<128x512xf32>
    %84 = arith.mulf %65, %83 : vector<128x512xf32>
    %85 = vector.broadcast %82 : vector<1x512xf32> to vector<128x512xf32>
    %86 = arith.addf %84, %85 : vector<128x512xf32>
    %cst_31 = arith.constant 0.000000e+00 : f32
    %87 = vector.broadcast %cst_31 : f32 to vector<128x512xf32>
    %88 = arith.maximumf %86, %87 : vector<128x512xf32>
    %89 = arith.truncf %88 : vector<128x512xf32> to vector<128x512xbf16>
    %cst_32 = arith.constant dense<0.000000e+00> : vector<128x128xf32>
    %90 = tpu.matmul %89, %5, %cst_32 {dimension_numbers = #tpu.dot_dimension_numbers<[1], [0], [0], [1], [0, 0, 1, 1], [], []>} : vector<128x512xbf16>, vector<512x128xbf16>, vector<128x128xf32> -> vector<128x128xf32>
    %91 = vector.broadcast %13 : vector<1x128xf32> to vector<128x128xf32>
    %92 = arith.addf %90, %91 : vector<128x128xf32>
    %cst_33 = arith.constant 0.000000e+00 : f32
    %93 = vector.broadcast %cst_33 : f32 to vector<128x128xf32>
    %94 = arith.maximumf %92, %93 : vector<128x128xf32>
    %c0_34 = arith.constant 0 : index
    %c0_35 = arith.constant 0 : index
    %c0_36 = arith.constant 0 : index
    %95 = vector.load %arg7[%c0_34, %c0_35, %c0_36] : memref<1x128x128xf32, #tpu.memory_space<vmem>>, vector<1x128x128xf32>
    %96 = vector.shape_cast %95 : vector<1x128x128xf32> to vector<128x128xf32>
    %97 = vector.shape_cast %94 : vector<128x128xf32> to vector<1x128x128xf32>
    tpu.vector_store %arg7[%c0_34, %c0_35, %c0_36], %97 {strides = array<i32>} : memref<1x128x128xf32, #tpu.memory_space<vmem>>, vector<1x128x128xf32>,
    return
  }
  func.func @transform_0(%arg0: i32) -> (i32, i32, i32) {
    %c0_i32 = arith.constant 0 : i32
    %c0_i32_0 = arith.constant 0 : i32
    %c0_i32_1 = arith.constant 0 : i32
    return %arg0, %c0_i32, %c0_i32_0 : i32, i32, i32
  }
  func.func @transform_1(%arg0: i32) -> (i32, i32) {
    %c0_i32 = arith.constant 0 : i32
    %c0_i32_0 = arith.constant 0 : i32
    %c0_i32_1 = arith.constant 0 : i32
    return %c0_i32, %c0_i32_0 : i32, i32
  }
  func.func @transform_2(%arg0: i32) -> (i32, i32) {
    %c0_i32 = arith.constant 0 : i32
    %c0_i32_0 = arith.constant 0 : i32
    %c0_i32_1 = arith.constant 0 : i32
    return %c0_i32, %c0_i32_0 : i32, i32
  }
  func.func @transform_3(%arg0: i32) -> (i32, i32) {
    %c0_i32 = arith.constant 0 : i32
    %c0_i32_0 = arith.constant 0 : i32
    %c0_i32_1 = arith.constant 0 : i32
    return %c0_i32, %c0_i32_0 : i32, i32
  }
  func.func @transform_4(%arg0: i32) -> (i32, i32) {
    %c0_i32 = arith.constant 0 : i32
    %c0_i32_0 = arith.constant 0 : i32
    %c0_i32_1 = arith.constant 0 : i32
    return %c0_i32, %c0_i32_0 : i32, i32
  }
  func.func @transform_5(%arg0: i32) -> (i32, i32) {
    %c0_i32 = arith.constant 0 : i32
    %c0_i32_0 = arith.constant 0 : i32
    %c0_i32_1 = arith.constant 0 : i32
    return %c0_i32, %c0_i32_0 : i32, i32
  }
  func.func @transform_6(%arg0: i32) -> (i32, i32, i32) {
    %c0_i32 = arith.constant 0 : i32
    %c0_i32_0 = arith.constant 0 : i32
    %c0_i32_1 = arith.constant 0 : i32
    return %arg0, %c0_i32, %c0_i32_0 : i32, i32, i32
  }
}

</mosaic_0001>

<llo_original>
// kernel: generator_forward.1
$region0: #{generator_forward.1}
  #allocation0 [shape = 'u32[]', space=smem, size = 0x4, offset = 0x4, fixed_abs, tag = 'smem constant byte address 0x4 - core index']
  #allocation1 [shape = 'u32[144,128]{1,0:T(1,128)}', space=vmem, size = 0x12000, scoped, tag = 'internal scratch']
  %s0 = inlined_call_operand.vmem [shape: f32[2,128,128], index: 0, kind: input, shape index: {}]
  %s1 = inlined_call_operand.vmem [shape: bf16[128,512], index: 1, kind: input, shape index: {}]
  %s2 = inlined_call_operand.vmem [shape: bf16[512,512], index: 2, kind: input, shape index: {}]
  %s3 = inlined_call_operand.hbm [shape: bf16[512,512], index: 3, kind: input, shape index: {}]
  %s4 = inlined_call_operand.hbm [shape: bf16[512,128], index: 4, kind: input, shape index: {}]
  %s5 = inlined_call_operand.vmem [shape: f32[8,512], index: 5, kind: input, shape index: {}]
  %s6 = inlined_call_operand.hbm [shape: f32[2,128,128], index: 6, kind: output, shape index: {}]
  %s7 = sld [smem:[#allocation0]]
  $region65: #{generator_forward.1} parent=0
    _
  %s9 = ssub.s32 1, %s7
  %s10 = scalar_select 0, %s9, %s7
  $region1: #{generator_forward.1} parent=0
    #allocation2 [shape = 'u8[524288]{0}', space=vmem, size = 0x80000, scoped, tag = 'input window, operand 3, single buffered']
    #allocation3 [shape = 's32[2]{0}', space=sflag, size = 0x8, scoped, tag = 'scoped memory for generator_forward.1']
    #allocation4 [shape = 's32[2]{0}', space=sflag, size = 0x8, scoped, tag = 'scoped memory for generator_forward.1']
    #allocation5 [shape = 'u8[131072]{0}', space=vmem, size = 0x20000, scoped, tag = 'input window, operand 4, single buffered']
    #allocation6 [shape = 's32[1]{0}', space=sflag, size = 0x4, scoped, tag = 'scoped memory for generator_forward.1']
    #allocation7 [shape = 'u8[131072]{0}', space=vmem, size = 0x20000, scoped, tag = 'output window, operand 0']
    %11 = vsyncpa [#allocation3], 0
    %12 = vsyncpa [#allocation6], 0
    %13 = vsyncpa [#allocation4], 0
    %s14 = scalar_lea.sflag [#allocation4], 1
    %15 = vsyncpa %s14, 0
    loop: start=0, step=1, limit=4
    $region2: #{generator_forward.1} parent=1 // loop_pre_header
      _
    $region3: #{generator_forward.1} parent=1 // loop_header
      %s17 = sphi 0, %s21
      %p18 = scmp.ge.s32.totalorder %s17, 4
      %s27 = sphi 0, %s29
      %s30 = sphi 0, %s27
      %s31 = sphi 0, %s30
      %s47 = sphi 0, %s31
      %s51 = sphi 0, %s51
      %s53 = sphi 0, %s51
      %s54 = sphi 0, %s53
      %s68 = sphi 0, %s54
      %s72 = sphi 0, %s72
      %s74 = sphi 0, %s72
      %s75 = sphi 0, %s74
      %s89 = sphi 0, %s75
      %s93 = sphi 0, %s93
      %s95 = sphi 0, %s93
      %s96 = sphi 0, %s95
      %s110 = sphi 0, %s96
      %s114 = sphi 0, %s114
      %s116 = sphi 0, %s114
      %s117 = sphi 0, %s116
      %s131 = sphi 0, %s117
      %s135 = sphi 0, %s135
      %s137 = sphi 0, %s135
      %s138 = sphi 0, %s137
      %s152 = sphi 0, %s138
      %s158 = sphi 0, %s160
      %s161 = sphi 0, %s158
      %s162 = sphi 0, %s161
      %s178 = sphi 0, %s162
    $region4: #{generator_forward.1} parent=1 // loop_header_branch
      %20 = sbr.rel (%p18) target = $region8
    $region5: #{generator_forward.1} parent=1 // loop_body
      %s22 = ssub.s32 %s17, 1
      %s23 = ssub.s32 %s17, 2
      %s24 = sadd.s32 %s17, 1
      %s25 = ssub.s32 %s17, %s24
      %p26 = scmp.eq.s32.totalorder %s25, 0
      %s28 = sadd.s32 %s27, 1
      %s29 = scalar_select %p26, %s27, %s28
      %p32 = pneg %p26
      %p33 = scmp.eq.s32.totalorder %s17, 1
      %p34 = por %p32, %p33
      %p35 = scmp.ne.s32.totalorder %s27, %s30
      %p36 = scmp.eq.s32.totalorder %s17, 0
      %p37 = por %p35, %p36
      %p38 = scmp.ne.s32.totalorder %s27, %s30
      %p39 = scmp.eq.s32.totalorder %s22, 1
      %p40 = por %p38, %p39
      %p41 = scmp.ne.s32.totalorder %s30, %s31
      %p42 = scmp.eq.s32.totalorder %s22, 0
      %p43 = por %p41, %p42
      %p44 = scmp.ne.s32.totalorder %s30, %s31
      %p45 = scmp.eq.s32.totalorder %s23, 1
      %p46 = por %p44, %p45
      %p48 = scmp.ne.s32.totalorder %s31, %s47
      %p49 = scmp.eq.s32.totalorder %s23, 0
      %p50 = por %p48, %p49
      %s52 = sadd.s32 %s51, 1
      %p55 = scmp.eq.s32.totalorder %s17, 1
      %p56 = scmp.ne.s32.totalorder %s51, %s53
      %p57 = scmp.eq.s32.totalorder %s17, 0
      %p58 = por %p56, %p57
      %p59 = scmp.ne.s32.totalorder %s51, %s53
      %p60 = scmp.eq.s32.totalorder %s22, 1
      %p61 = por %p59, %p60
      %p62 = scmp.ne.s32.totalorder %s53, %s54
      %p63 = scmp.eq.s32.totalorder %s22, 0
      %p64 = por %p62, %p63
      %p65 = scmp.ne.s32.totalorder %s53, %s54
      %p66 = scmp.eq.s32.totalorder %s23, 1
      %p67 = por %p65, %p66
      %p69 = scmp.ne.s32.totalorder %s54, %s68
      %p70 = scmp.eq.s32.totalorder %s23, 0
      %p71 = por %p69, %p70
      %s73 = sadd.s32 %s72, 1
      %p76 = scmp.eq.s32.totalorder %s17, 1
      %p77 = scmp.ne.s32.totalorder %s72, %s74
      %p78 = scmp.eq.s32.totalorder %s17, 0
      %p79 = por %p77, %p78
      %p80 = scmp.ne.s32.totalorder %s72, %s74
      %p81 = scmp.eq.s32.totalorder %s22, 1
      %p82 = por %p80, %p81
      %p83 = scmp.ne.s32.totalorder %s74, %s75
      %p84 = scmp.eq.s32.totalorder %s22, 0
      %p85 = por %p83, %p84
      %p86 = scmp.ne.s32.totalorder %s74, %s75
      %p87 = scmp.eq.s32.totalorder %s23, 1
      %p88 = por %p86, %p87
      %p90 = scmp.ne.s32.totalorder %s75, %s89
      %p91 = scmp.eq.s32.totalorder %s23, 0
      %p92 = por %p90, %p91
      %s94 = sadd.s32 %s93, 1
      %p97 = scmp.eq.s32.totalorder %s17, 1
      %p98 = scmp.ne.s32.totalorder %s93, %s95
      %p99 = scmp.eq.s32.totalorder %s17, 0
      %p100 = por %p98, %p99
      %p101 = scmp.ne.s32.totalorder %s93, %s95
      %p102 = scmp.eq.s32.totalorder %s22, 1
      %p103 = por %p101, %p102
      %p104 = scmp.ne.s32.totalorder %s95, %s96
      %p105 = scmp.eq.s32.totalorder %s22, 0
      %p106 = por %p104, %p105
      %p107 = scmp.ne.s32.totalorder %s95, %s96
      %p108 = scmp.eq.s32.totalorder %s23, 1
      %p109 = por %p107, %p108
      %p111 = scmp.ne.s32.totalorder %s96, %s110
      %p112 = scmp.eq.s32.totalorder %s23, 0
      %p113 = por %p111, %p112
      %s115 = sadd.s32 %s114, 1
      %p118 = scmp.eq.s32.totalorder %s17, 1
      %p119 = scmp.ne.s32.totalorder %s114, %s116
      %p120 = scmp.eq.s32.totalorder %s17, 0
      %p121 = por %p119, %p120
      %p122 = scmp.ne.s32.totalorder %s114, %s116
      %p123 = scmp.eq.s32.totalorder %s22, 1
      %p124 = por %p122, %p123
      %p125 = scmp.ne.s32.totalorder %s116, %s117
      %p126 = scmp.eq.s32.totalorder %s22, 0
      %p127 = por %p125, %p126
      %p128 = scmp.ne.s32.totalorder %s116, %s117
      %p129 = scmp.eq.s32.totalorder %s23, 1
      %p130 = por %p128, %p129
      %p132 = scmp.ne.s32.totalorder %s117, %s131
      %p133 = scmp.eq.s32.totalorder %s23, 0
      %p134 = por %p132, %p133
      %s136 = sadd.s32 %s135, 1
      %p139 = scmp.eq.s32.totalorder %s17, 1
      %p140 = scmp.ne.s32.totalorder %s135, %s137
      %p141 = scmp.eq.s32.totalorder %s17, 0
      %p142 = por %p140, %p141
      %p143 = scmp.ne.s32.totalorder %s135, %s137
      %p144 = scmp.eq.s32.totalorder %s22, 1
      %p145 = por %p143, %p144
      %p146 = scmp.ne.s32.totalorder %s137, %s138
      %p147 = scmp.eq.s32.totalorder %s22, 0
      %p148 = por %p146, %p147
      %p149 = scmp.ne.s32.totalorder %s137, %s138
      %p150 = scmp.eq.s32.totalorder %s23, 1
      %p151 = por %p149, %p150
      %p153 = scmp.ne.s32.totalorder %s138, %s152
      %p154 = scmp.eq.s32.totalorder %s23, 0
      %p155 = por %p153, %p154
      %s156 = ssub.s32 %s17, %s24
      %p157 = scmp.eq.s32.totalorder %s156, 0
      %s159 = sadd.s32 %s158, 1
      %s160 = scalar_select %p157, %s158, %s159
      %p163 = pneg %p157
      %p164 = scmp.eq.s32.totalorder %s17, 1
      %p165 = por %p163, %p164
      %p166 = scmp.ne.s32.totalorder %s158, %s161
      %p167 = scmp.eq.s32.totalorder %s17, 0
      %p168 = por %p166, %p167
      %p169 = scmp.ne.s32.totalorder %s158, %s161
      %p170 = scmp.eq.s32.totalorder %s22, 1
      %p171 = por %p169, %p170
      %p172 = scmp.ne.s32.totalorder %s161, %s162
      %p173 = scmp.eq.s32.totalorder %s22, 0
      %p174 = por %p172, %p173
      %p175 = scmp.ne.s32.totalorder %s161, %s162
      %p176 = scmp.eq.s32.totalorder %s23, 1
      %p177 = por %p175, %p176
      %p179 = scmp.ne.s32.totalorder %s162, %s178
      %p180 = scmp.eq.s32.totalorder %s23, 0
      %p181 = por %p179, %p180
      %p182 = scmp.le.s32.totalorder 1, %s17
      %p183 = scmp.lt.s32.totalorder %s17, 3
      %p184 = pnand %p182, %p183
      %p185 = pneg %p184
      // Predicated region
      $region9: #{generator_forward.1} parent=5 // pred_check
        _
      $region10: #{generator_forward.1} parent=5 // pred_check_branch
        %187 = sbr.rel (%p184) target = $region12
      $region11: #{generator_forward.1} parent=5 // pred_region
        %s188 = ssub.s32 %s17, 1
        // Predicated region
        $region13: #{generator_forward.1} parent=11 // pred_check
          %p189 = pneg %p64
        $region14: #{generator_forward.1} parent=11 // pred_check_branch
          %191 = sbr.rel (%p189) target = $region16
        $region15: #{generator_forward.1} parent=11 // pred_region
          _
        $region16: #{generator_forward.1} parent=11 // pred_fallthru
          _
        // Predicated region
        $region17: #{generator_forward.1} parent=11 // pred_check
          %p192 = pneg %p85
        $region18: #{generator_forward.1} parent=11 // pred_check_branch
          %194 = sbr.rel (%p192) target = $region20
        $region19: #{generator_forward.1} parent=11 // pred_region
          _
        $region20: #{generator_forward.1} parent=11 // pred_fallthru
          _
        // Predicated region
        $region21: #{generator_forward.1} parent=11 // pred_check
          %p195 = pneg %p106
        $region22: #{generator_forward.1} parent=11 // pred_check_branch
          %197 = sbr.rel (%p195) target = $region24
        $region23: #{generator_forward.1} parent=11 // pred_region
          %s199 = ssub.s32 16384, 16384
          %200 = vsyncadd [#allocation3], %s199
          %s201 = sshll.u32 [#allocation2], 4
          %s202 = int_to_ptr.vmem [resolvable:$true] %s201
          %207 = dma.hbm_to_vmem [thread:$0]  %s3, 16384, %s202, [#allocation3], 256, 256, 16
        $region24: #{generator_forward.1} parent=11 // pred_fallthru
          _
        // Predicated region
        $region25: #{generator_forward.1} parent=11 // pred_check
          %p208 = pneg %p127
        $region26: #{generator_forward.1} parent=11 // pred_check_branch
          %210 = sbr.rel (%p208) target = $region28
        $region27: #{generator_forward.1} parent=11 // pred_region
          %s212 = ssub.s32 4096, 4096
          %213 = vsyncadd [#allocation6], %s212
          %s214 = sshll.u32 [#allocation5], 4
          %s215 = int_to_ptr.vmem [resolvable:$true] %s214
          %220 = dma.hbm_to_vmem [thread:$0]  %s4, 4096, %s215, [#allocation6], 64, 64, 4
        $region28: #{generator_forward.1} parent=11 // pred_fallthru
          _
        // Predicated region
        $region29: #{generator_forward.1} parent=11 // pred_check
          %p221 = pneg %p148
        $region30: #{generator_forward.1} parent=11 // pred_check_branch
          %223 = sbr.rel (%p221) target = $region32
        $region31: #{generator_forward.1} parent=11 // pred_region
          _
        $region32: #{generator_forward.1} parent=11 // pred_fallthru
          _
      $region12: #{generator_forward.1} parent=5 // pred_fallthru
        _
      %p224 = scmp.lt.s32.totalorder %s17, 2
      // Predicated region
      $region33: #{generator_forward.1} parent=5 // pred_check
        %p225 = pneg %p224
      $region34: #{generator_forward.1} parent=5 // pred_check_branch
        %227 = sbr.rel (%p225) target = $region36
      $region35: #{generator_forward.1} parent=5 // pred_region
        // Predicated region
        $region37: #{generator_forward.1} parent=35 // pred_check
          %p228 = pneg %p37
        $region38: #{generator_forward.1} parent=35 // pred_check_branch
          %230 = sbr.rel (%p228) target = $region40
        $region39: #{generator_forward.1} parent=35 // pred_region
          %p231 = scmp.lt.s32.totalorder %s17, 1
          %s232 = scalar_select %p231, %s17, 1
          %s233 = smul.addr %s232, 16
          %s234 = smul.addr %s233, 8
          %s235 = scalar_lea.vmem %s0, %s234
        $region40: #{generator_forward.1} parent=35 // pred_fallthru
          _
      $region36: #{generator_forward.1} parent=5 // pred_fallthru
        _
      %p236 = scmp.le.s32.totalorder 1, %s17
      %p237 = scmp.lt.s32.totalorder %s17, 3
      %p238 = pnand %p236, %p237
      %p239 = pneg %p238
      // Predicated region
      $region41: #{generator_forward.1} parent=5 // pred_check
        _
      $region42: #{generator_forward.1} parent=5 // pred_check_branch
        %241 = sbr.rel (%p238) target = $region44
      $region43: #{generator_forward.1} parent=5 // pred_region
        %s242 = ssub.s32 %s17, 1
        // Predicated region
        $region45: #{generator_forward.1} parent=43 // pred_check
          %p243 = pneg %p106
        $region46: #{generator_forward.1} parent=43 // pred_check_branch
          %245 = sbr.rel (%p243) target = $region48
        $region47: #{generator_forward.1} parent=43 // pred_region
          %246 = dma.done [#allocation3], 16384
        $region48: #{generator_forward.1} parent=43 // pred_fallthru
          _
        // Predicated region
        $region49: #{generator_forward.1} parent=43 // pred_check
          %p247 = pneg %p127
        $region50: #{generator_forward.1} parent=43 // pred_check_branch
          %249 = sbr.rel (%p247) target = $region52
        $region51: #{generator_forward.1} parent=43 // pred_region
          %250 = dma.done [#allocation6], 4096
        $region52: #{generator_forward.1} parent=43 // pred_fallthru
          _
        %p251 = scmp.lt.s32.totalorder %s22, 1
        %s252 = scalar_select %p251, %s22, 1
        %s253 = smul.addr %s252, 16
        %s254 = smul.addr %s253, 8
        %s255 = scalar_lea.vmem %s0, %s254
        %p256 = pneg %p43
        %p257 = pneg %p40
        %p258 = pneg %p64
        %p259 = pneg %p61
        %p260 = pneg %p85
        %p261 = pneg %p82
        %p262 = pneg %p106
        %p263 = pneg %p103
        %p264 = pneg %p127
        %p265 = pneg %p124
        %p266 = pneg %p148
        %p267 = pneg %p145
        %p268 = pneg %p174
        %p269 = pneg %p171
        %s270 = sand.u32 %s161, 1
        %s271 = scalar_lea.sflag [#allocation4], %s270
        %s272 = sand.u32 %s161, 1
        %s273 = smul.addr %s272, 128
        %s274 = scalar_lea.vmem [#allocation7], %s273
        %p275 = scmp.lt.s32.totalorder %s22, 1
        %s276 = scalar_select %p275, %s22, 1
        %s277 = smul.addr %s276, 16
        %s278 = smul.addr %s277, 8
        %s279 = scalar_lea.vmem %s0, %s278
        %v281 = vld [vmem:[%s279] sm:$0xff]
        %v282 = vld [vmem:[%s279 + $0x8] sm:$0xff]
        %v283 = vld [vmem:[%s279 + $0x10] sm:$0xff]
        %v284 = vld [vmem:[%s279 + $0x18] sm:$0xff]
        %v285 = vld [vmem:[%s279 + $0x20] sm:$0xff]
        %v286 = vld [vmem:[%s279 + $0x28] sm:$0xff]
        %v287 = vld [vmem:[%s279 + $0x30] sm:$0xff]
        %v288 = vld [vmem:[%s279 + $0x38] sm:$0xff]
        %v289 = vld [vmem:[%s279 + $0x40] sm:$0xff]
        %v290 = vld [vmem:[%s279 + $0x48] sm:$0xff]
        %v291 = vld [vmem:[%s279 + $0x50] sm:$0xff]
        %v292 = vld [vmem:[%s279 + $0x58] sm:$0xff]
        %v293 = vld [vmem:[%s279 + $0x60] sm:$0xff]
        %v294 = vld [vmem:[%s279 + $0x68] sm:$0xff]
        %v295 = vld [vmem:[%s279 + $0x70] sm:$0xff]
        %v296 = vld [vmem:[%s279 + $0x78] sm:$0xff]
        %v297 = vld [vmem:[%s1] sm:$0xff]
        %v298 = vld [vmem:[%s1 + $0x8] sm:$0xff]
        %v299 = vld [vmem:[%s1 + $0x10] sm:$0xff]
        %v300 = vld [vmem:[%s1 + $0x18] sm:$0xff]
        %v301 = vld [vmem:[%s1 + $0x20] sm:$0xff]
        %v302 = vld [vmem:[%s1 + $0x28] sm:$0xff]
        %v303 = vld [vmem:[%s1 + $0x30] sm:$0xff]
        %v304 = vld [vmem:[%s1 + $0x38] sm:$0xff]
        %v305 = vld [vmem:[%s1 + $0x40] sm:$0xff]
        %v306 = vld [vmem:[%s1 + $0x48] sm:$0xff]
        %v307 = vld [vmem:[%s1 + $0x50] sm:$0xff]
        %v308 = vld [vmem:[%s1 + $0x58] sm:$0xff]
        %v309 = vld [vmem:[%s1 + $0x60] sm:$0xff]
        %v310 = vld [vmem:[%s1 + $0x68] sm:$0xff]
        %v311 = vld [vmem:[%s1 + $0x70] sm:$0xff]
        %v312 = vld [vmem:[%s1 + $0x78] sm:$0xff]
        %v313 = vld [vmem:[%s1 + $0x80] sm:$0xff]
        %v314 = vld [vmem:[%s1 + $0x88] sm:$0xff]
        %v315 = vld [vmem:[%s1 + $0x90] sm:$0xff]
        %v316 = vld [vmem:[%s1 + $0x98] sm:$0xff]
        %v317 = vld [vmem:[%s1 + $0xa0] sm:$0xff]
        %v318 = vld [vmem:[%s1 + $0xa8] sm:$0xff]
        %v319 = vld [vmem:[%s1 + $0xb0] sm:$0xff]
        %v320 = vld [vmem:[%s1 + $0xb8] sm:$0xff]
        %v321 = vld [vmem:[%s1 + $0xc0] sm:$0xff]
        %v322 = vld [vmem:[%s1 + $0xc8] sm:$0xff]
        %v323 = vld [vmem:[%s1 + $0xd0] sm:$0xff]
        %v324 = vld [vmem:[%s1 + $0xd8] sm:$0xff]
        %v325 = vld [vmem:[%s1 + $0xe0] sm:$0xff]
        %v326 = vld [vmem:[%s1 + $0xe8] sm:$0xff]
        %v327 = vld [vmem:[%s1 + $0xf0] sm:$0xff]
        %v328 = vld [vmem:[%s1 + $0xf8] sm:$0xff]
        %v329 = vld [vmem:[%s2] sm:$0xff]
        %v330 = vld [vmem:[%s2 + $0x8] sm:$0xff]
        %v331 = vld [vmem:[%s2 + $0x10] sm:$0xff]
        %v332 = vld [vmem:[%s2 + $0x18] sm:$0xff]
        %v333 = vld [vmem:[%s2 + $0x20] sm:$0xff]
        %v334 = vld [vmem:[%s2 + $0x28] sm:$0xff]
        %v335 = vld [vmem:[%s2 + $0x30] sm:$0xff]
        %v336 = vld [vmem:[%s2 + $0x38] sm:$0xff]
        %v337 = vld [vmem:[%s2 + $0x40] sm:$0xff]
        %v338 = vld [vmem:[%s2 + $0x48] sm:$0xff]
        %v339 = vld [vmem:[%s2 + $0x50] sm:$0xff]
        %v340 = vld [vmem:[%s2 + $0x58] sm:$0xff]
        %v341 = vld [vmem:[%s2 + $0x60] sm:$0xff]
        %v342 = vld [vmem:[%s2 + $0x68] sm:$0xff]
        %v343 = vld [vmem:[%s2 + $0x70] sm:$0xff]
        %v344 = vld [vmem:[%s2 + $0x78] sm:$0xff]
        %v345 = vld [vmem:[%s2 + $0x80] sm:$0xff]
        %v346 = vld [vmem:[%s2 + $0x88] sm:$0xff]
        %v347 = vld [vmem:[%s2 + $0x90] sm:$0xff]
        %v348 = vld [vmem:[%s2 + $0x98] sm:$0xff]
        %v349 = vld [vmem:[%s2 + $0xa0] sm:$0xff]
        %v350 = vld [vmem:[%s2 + $0xa8] sm:$0xff]
        %v351 = vld [vmem:[%s2 + $0xb0] sm:$0xff]
        %v352 = vld [vmem:[%s2 + $0xb8] sm:$0xff]
        %v353 = vld [vmem:[%s2 + $0xc0] sm:$0xff]
        %v354 = vld [vmem:[%s2 + $0xc8] sm:$0xff]
        %v355 = vld [vmem:[%s2 + $0xd0] sm:$0xff]
        %v356 = vld [vmem:[%s2 + $0xd8] sm:$0xff]
        %v357 = vld [vmem:[%s2 + $0xe0] sm:$0xff]
        %v358 = vld [vmem:[%s2 + $0xe8] sm:$0xff]
        %v359 = vld [vmem:[%s2 + $0xf0] sm:$0xff]
        %v360 = vld [vmem:[%s2 + $0xf8] sm:$0xff]
        %v361 = vld [vmem:[%s2 + $0x100] sm:$0xff]
        %v362 = vld [vmem:[%s2 + $0x108] sm:$0xff]
        %v363 = vld [vmem:[%s2 + $0x110] sm:$0xff]
        %v364 = vld [vmem:[%s2 + $0x118] sm:$0xff]
        %v365 = vld [vmem:[%s2 + $0x120] sm:$0xff]
        %v366 = vld [vmem:[%s2 + $0x128] sm:$0xff]
        %v367 = vld [vmem:[%s2 + $0x130] sm:$0xff]
        %v368 = vld [vmem:[%s2 + $0x138] sm:$0xff]
        %v369 = vld [vmem:[%s2 + $0x140] sm:$0xff]
        %v370 = vld [vmem:[%s2 + $0x148] sm:$0xff]
        %v371 = vld [vmem:[%s2 + $0x150] sm:$0xff]
        %v372 = vld [vmem:[%s2 + $0x158] sm:$0xff]
        %v373 = vld [vmem:[%s2 + $0x160] sm:$0xff]
        %v374 = vld [vmem:[%s2 + $0x168] sm:$0xff]
        %v375 = vld [vmem:[%s2 + $0x170] sm:$0xff]
        %v376 = vld [vmem:[%s2 + $0x178] sm:$0xff]
        %v377 = vld [vmem:[%s2 + $0x180] sm:$0xff]
        %v378 = vld [vmem:[%s2 + $0x188] sm:$0xff]
        %v379 = vld [vmem:[%s2 + $0x190] sm:$0xff]
        %v380 = vld [vmem:[%s2 + $0x198] sm:$0xff]
        %v381 = vld [vmem:[%s2 + $0x1a0] sm:$0xff]
        %v382 = vld [vmem:[%s2 + $0x1a8] sm:$0xff]
        %v383 = vld [vmem:[%s2 + $0x1b0] sm:$0xff]
        %v384 = vld [vmem:[%s2 + $0x1b8] sm:$0xff]
        %v385 = vld [vmem:[%s2 + $0x1c0] sm:$0xff]
        %v386 = vld [vmem:[%s2 + $0x1c8] sm:$0xff]
        %v387 = vld [vmem:[%s2 + $0x1d0] sm:$0xff]
        %v388 = vld [vmem:[%s2 + $0x1d8] sm:$0xff]
        %v389 = vld [vmem:[%s2 + $0x1e0] sm:$0xff]
        %v390 = vld [vmem:[%s2 + $0x1e8] sm:$0xff]
        %v391 = vld [vmem:[%s2 + $0x1f0] sm:$0xff]
        %v392 = vld [vmem:[%s2 + $0x1f8] sm:$0xff]
        %v393 = vld [vmem:[%s2 + $0x200] sm:$0xff]
        %v394 = vld [vmem:[%s2 + $0x208] sm:$0xff]
        %v395 = vld [vmem:[%s2 + $0x210] sm:$0xff]
        %v396 = vld [vmem:[%s2 + $0x218] sm:$0xff]
        %v397 = vld [vmem:[%s2 + $0x220] sm:$0xff]
        %v398 = vld [vmem:[%s2 + $0x228] sm:$0xff]
        %v399 = vld [vmem:[%s2 + $0x230] sm:$0xff]
        %v400 = vld [vmem:[%s2 + $0x238] sm:$0xff]
        %v401 = vld [vmem:[%s2 + $0x240] sm:$0xff]
        %v402 = vld [vmem:[%s2 + $0x248] sm:$0xff]
        %v403 = vld [vmem:[%s2 + $0x250] sm:$0xff]
        %v404 = vld [vmem:[%s2 + $0x258] sm:$0xff]
        %v405 = vld [vmem:[%s2 + $0x260] sm:$0xff]
        %v406 = vld [vmem:[%s2 + $0x268] sm:$0xff]
        %v407 = vld [vmem:[%s2 + $0x270] sm:$0xff]
        %v408 = vld [vmem:[%s2 + $0x278] sm:$0xff]
        %v409 = vld [vmem:[%s2 + $0x280] sm:$0xff]
        %v410 = vld [vmem:[%s2 + $0x288] sm:$0xff]
        %v411 = vld [vmem:[%s2 + $0x290] sm:$0xff]
        %v412 = vld [vmem:[%s2 + $0x298] sm:$0xff]
        %v413 = vld [vmem:[%s2 + $0x2a0] sm:$0xff]
        %v414 = vld [vmem:[%s2 + $0x2a8] sm:$0xff]
        %v415 = vld [vmem:[%s2 + $0x2b0] sm:$0xff]
        %v416 = vld [vmem:[%s2 + $0x2b8] sm:$0xff]
        %v417 = vld [vmem:[%s2 + $0x2c0] sm:$0xff]
        %v418 = vld [vmem:[%s2 + $0x2c8] sm:$0xff]
        %v419 = vld [vmem:[%s2 + $0x2d0] sm:$0xff]
        %v420 = vld [vmem:[%s2 + $0x2d8] sm:$0xff]
        %v421 = vld [vmem:[%s2 + $0x2e0] sm:$0xff]
        %v422 = vld [vmem:[%s2 + $0x2e8] sm:$0xff]
        %v423 = vld [vmem:[%s2 + $0x2f0] sm:$0xff]
        %v424 = vld [vmem:[%s2 + $0x2f8] sm:$0xff]
        %v425 = vld [vmem:[%s2 + $0x300] sm:$0xff]
        %v426 = vld [vmem:[%s2 + $0x308] sm:$0xff]
        %v427 = vld [vmem:[%s2 + $0x310] sm:$0xff]
        %v428 = vld [vmem:[%s2 + $0x318] sm:$0xff]
        %v429 = vld [vmem:[%s2 + $0x320] sm:$0xff]
        %v430 = vld [vmem:[%s2 + $0x328] sm:$0xff]
        %v431 = vld [vmem:[%s2 + $0x330] sm:$0xff]
        %v432 = vld [vmem:[%s2 + $0x338] sm:$0xff]
        %v433 = vld [vmem:[%s2 + $0x340] sm:$0xff]
        %v434 = vld [vmem:[%s2 + $0x348] sm:$0xff]
        %v435 = vld [vmem:[%s2 + $0x350] sm:$0xff]
        %v436 = vld [vmem:[%s2 + $0x358] sm:$0xff]
        %v437 = vld [vmem:[%s2 + $0x360] sm:$0xff]
        %v438 = vld [vmem:[%s2 + $0x368] sm:$0xff]
        %v439 = vld [vmem:[%s2 + $0x370] sm:$0xff]
        %v440 = vld [vmem:[%s2 + $0x378] sm:$0xff]
        %v441 = vld [vmem:[%s2 + $0x380] sm:$0xff]
        %v442 = vld [vmem:[%s2 + $0x388] sm:$0xff]
        %v443 = vld [vmem:[%s2 + $0x390] sm:$0xff]
        %v444 = vld [vmem:[%s2 + $0x398] sm:$0xff]
        %v445 = vld [vmem:[%s2 + $0x3a0] sm:$0xff]
        %v446 = vld [vmem:[%s2 + $0x3a8] sm:$0xff]
        %v447 = vld [vmem:[%s2 + $0x3b0] sm:$0xff]
        %v448 = vld [vmem:[%s2 + $0x3b8] sm:$0xff]
        %v449 = vld [vmem:[%s2 + $0x3c0] sm:$0xff]
        %v450 = vld [vmem:[%s2 + $0x3c8] sm:$0xff]
        %v451 = vld [vmem:[%s2 + $0x3d0] sm:$0xff]
        %v452 = vld [vmem:[%s2 + $0x3d8] sm:$0xff]
        %v453 = vld [vmem:[%s2 + $0x3e0] sm:$0xff]
        %v454 = vld [vmem:[%s2 + $0x3e8] sm:$0xff]
        %v455 = vld [vmem:[%s2 + $0x3f0] sm:$0xff]
        %v456 = vld [vmem:[%s2 + $0x3f8] sm:$0xff]
        %v457 = vld [vmem:[#allocation2] sm:$0xff]
        %v458 = vld [vmem:[#allocation2 + $0x8] sm:$0xff]
        %v459 = vld [vmem:[#allocation2 + $0x10] sm:$0xff]
        %v460 = vld [vmem:[#allocation2 + $0x18] sm:$0xff]
        %v461 = vld [vmem:[#allocation2 + $0x20] sm:$0xff]
        %v462 = vld [vmem:[#allocation2 + $0x28] sm:$0xff]
        %v463 = vld [vmem:[#allocation2 + $0x30] sm:$0xff]
        %v464 = vld [vmem:[#allocation2 + $0x38] sm:$0xff]
        %v465 = vld [vmem:[#allocation2 + $0x40] sm:$0xff]
        %v466 = vld [vmem:[#allocation2 + $0x48] sm:$0xff]
        %v467 = vld [vmem:[#allocation2 + $0x50] sm:$0xff]
        %v468 = vld [vmem:[#allocation2 + $0x58] sm:$0xff]
        %v469 = vld [vmem:[#allocation2 + $0x60] sm:$0xff]
        %v470 = vld [vmem:[#allocation2 + $0x68] sm:$0xff]
        %v471 = vld [vmem:[#allocation2 + $0x70] sm:$0xff]
        %v472 = vld [vmem:[#allocation2 + $0x78] sm:$0xff]
        %v473 = vld [vmem:[#allocation2 + $0x80] sm:$0xff]
        %v474 = vld [vmem:[#allocation2 + $0x88] sm:$0xff]
        %v475 = vld [vmem:[#allocation2 + $0x90] sm:$0xff]
        %v476 = vld [vmem:[#allocation2 + $0x98] sm:$0xff]
        %v477 = vld [vmem:[#allocation2 + $0xa0] sm:$0xff]
        %v478 = vld [vmem:[#allocation2 + $0xa8] sm:$0xff]
        %v479 = vld [vmem:[#allocation2 + $0xb0] sm:$0xff]
        %v480 = vld [vmem:[#allocation2 + $0xb8] sm:$0xff]
        %v481 = vld [vmem:[#allocation2 + $0xc0] sm:$0xff]
        %v482 = vld [vmem:[#allocation2 + $0xc8] sm:$0xff]
        %v483 = vld [vmem:[#allocation2 + $0xd0] sm:$0xff]
        %v484 = vld [vmem:[#allocation2 + $0xd8] sm:$0xff]
        %v485 = vld [vmem:[#allocation2 + $0xe0] sm:$0xff]
        %v486 = vld [vmem:[#allocation2 + $0xe8] sm:$0xff]
        %v487 = vld [vmem:[#allocation2 + $0xf0] sm:$0xff]
        %v488 = vld [vmem:[#allocation2 + $0xf8] sm:$0xff]
        %v489 = vld [vmem:[#allocation2 + $0x100] sm:$0xff]
        %v490 = vld [vmem:[#allocation2 + $0x108] sm:$0xff]
        %v491 = vld [vmem:[#allocation2 + $0x110] sm:$0xff]
        %v492 = vld [vmem:[#allocation2 + $0x118] sm:$0xff]
        %v493 = vld [vmem:[#allocation2 + $0x120] sm:$0xff]
        %v494 = vld [vmem:[#allocation2 + $0x128] sm:$0xff]
        %v495 = vld [vmem:[#allocation2 + $0x130] sm:$0xff]
        %v496 = vld [vmem:[#allocation2 + $0x138] sm:$0xff]
        %v497 = vld [vmem:[#allocation2 + $0x140] sm:$0xff]
        %v498 = vld [vmem:[#allocation2 + $0x148] sm:$0xff]
        %v499 = vld [vmem:[#allocation2 + $0x150] sm:$0xff]
        %v500 = vld [vmem:[#allocation2 + $0x158] sm:$0xff]
        %v501 = vld [vmem:[#allocation2 + $0x160] sm:$0xff]
        %v502 = vld [vmem:[#allocation2 + $0x168] sm:$0xff]
        %v503 = vld [vmem:[#allocation2 + $0x170] sm:$0xff]
        %v504 = vld [vmem:[#allocation2 + $0x178] sm:$0xff]
        %v505 = vld [vmem:[#allocation2 + $0x180] sm:$0xff]
        %v506 = vld [vmem:[#allocation2 + $0x188] sm:$0xff]
        %v507 = vld [vmem:[#allocation2 + $0x190] sm:$0xff]
        %v508 = vld [vmem:[#allocation2 + $0x198] sm:$0xff]
        %v509 = vld [vmem:[#allocation2 + $0x1a0] sm:$0xff]
        %v510 = vld [vmem:[#allocation2 + $0x1a8] sm:$0xff]
        %v511 = vld [vmem:[#allocation2 + $0x1b0] sm:$0xff]
        %v512 = vld [vmem:[#allocation2 + $0x1b8] sm:$0xff]
        %v513 = vld [vmem:[#allocation2 + $0x1c0] sm:$0xff]
        %v514 = vld [vmem:[#allocation2 + $0x1c8] sm:$0xff]
        %v515 = vld [vmem:[#allocation2 + $0x1d0] sm:$0xff]
        %v516 = vld [vmem:[#allocation2 + $0x1d8] sm:$0xff]
        %v517 = vld [vmem:[#allocation2 + $0x1e0] sm:$0xff]
        %v518 = vld [vmem:[#allocation2 + $0x1e8] sm:$0xff]
        %v519 = vld [vmem:[#allocation2 + $0x1f0] sm:$0xff]
        %v520 = vld [vmem:[#allocation2 + $0x1f8] sm:$0xff]
        %v521 = vld [vmem:[#allocation2 + $0x200] sm:$0xff]
        %v522 = vld [vmem:[#allocation2 + $0x208] sm:$0xff]
        %v523 = vld [vmem:[#allocation2 + $0x210] sm:$0xff]
        %v524 = vld [vmem:[#allocation2 + $0x218] sm:$0xff]
        %v525 = vld [vmem:[#allocation2 + $0x220] sm:$0xff]
        %v526 = vld [vmem:[#allocation2 + $0x228] sm:$0xff]
        %v527 = vld [vmem:[#allocation2 + $0x230] sm:$0xff]
        %v528 = vld [vmem:[#allocation2 + $0x238] sm:$0xff]
        %v529 = vld [vmem:[#allocation2 + $0x240] sm:$0xff]
        %v530 = vld [vmem:[#allocation2 + $0x248] sm:$0xff]
        %v531 = vld [vmem:[#allocation2 + $0x250] sm:$0xff]
        %v532 = vld [vmem:[#allocation2 + $0x258] sm:$0xff]
        %v533 = vld [vmem:[#allocation2 + $0x260] sm:$0xff]
        %v534 = vld [vmem:[#allocation2 + $0x268] sm:$0xff]
        %v535 = vld [vmem:[#allocation2 + $0x270] sm:$0xff]
        %v536 = vld [vmem:[#allocation2 + $0x278] sm:$0xff]
        %v537 = vld [vmem:[#allocation2 + $0x280] sm:$0xff]
        %v538 = vld [vmem:[#allocation2 + $0x288] sm:$0xff]
        %v539 = vld [vmem:[#allocation2 + $0x290] sm:$0xff]
        %v540 = vld [vmem:[#allocation2 + $0x298] sm:$0xff]
        %v541 = vld [vmem:[#allocation2 + $0x2a0] sm:$0xff]
        %v542 = vld [vmem:[#allocation2 + $0x2a8] sm:$0xff]
        %v543 = vld [vmem:[#allocation2 + $0x2b0] sm:$0xff]
        %v544 = vld [vmem:[#allocation2 + $0x2b8] sm:$0xff]
        %v545 = vld [vmem:[#allocation2 + $0x2c0] sm:$0xff]
        %v546 = vld [vmem:[#allocation2 + $0x2c8] sm:$0xff]
        %v547 = vld [vmem:[#allocation2 + $0x2d0] sm:$0xff]
        %v548 = vld [vmem:[#allocation2 + $0x2d8] sm:$0xff]
        %v549 = vld [vmem:[#allocation2 + $0x2e0] sm:$0xff]
        %v550 = vld [vmem:[#allocation2 + $0x2e8] sm:$0xff]
        %v551 = vld [vmem:[#allocation2 + $0x2f0] sm:$0xff]
        %v552 = vld [vmem:[#allocation2 + $0x2f8] sm:$0xff]
        %v553 = vld [vmem:[#allocation2 + $0x300] sm:$0xff]
        %v554 = vld [vmem:[#allocation2 + $0x308] sm:$0xff]
        %v555 = vld [vmem:[#allocation2 + $0x310] sm:$0xff]
        %v556 = vld [vmem:[#allocation2 + $0x318] sm:$0xff]
        %v557 = vld [vmem:[#allocation2 + $0x320] sm:$0xff]
        %v558 = vld [vmem:[#allocation2 + $0x328] sm:$0xff]
        %v559 = vld [vmem:[#allocation2 + $0x330] sm:$0xff]
        %v560 = vld [vmem:[#allocation2 + $0x338] sm:$0xff]
        %v561 = vld [vmem:[#allocation2 + $0x340] sm:$0xff]
        %v562 = vld [vmem:[#allocation2 + $0x348] sm:$0xff]
        %v563 = vld [vmem:[#allocation2 + $0x350] sm:$0xff]
        %v564 = vld [vmem:[#allocation2 + $0x358] sm:$0xff]
        %v565 = vld [vmem:[#allocation2 + $0x360] sm:$0xff]
        %v566 = vld [vmem:[#allocation2 + $0x368] sm:$0xff]
        %v567 = vld [vmem:[#allocation2 + $0x370] sm:$0xff]
        %v568 = vld [vmem:[#allocation2 + $0x378] sm:$0xff]
        %v569 = vld [vmem:[#allocation2 + $0x380] sm:$0xff]
        %v570 = vld [vmem:[#allocation2 + $0x388] sm:$0xff]
        %v571 = vld [vmem:[#allocation2 + $0x390] sm:$0xff]
        %v572 = vld [vmem:[#allocation2 + $0x398] sm:$0xff]
        %v573 = vld [vmem:[#allocation2 + $0x3a0] sm:$0xff]
        %v574 = vld [vmem:[#allocation2 + $0x3a8] sm:$0xff]
        %v575 = vld [vmem:[#allocation2 + $0x3b0] sm:$0xff]
        %v576 = vld [vmem:[#allocation2 + $0x3b8] sm:$0xff]
        %v577 = vld [vmem:[#allocation2 + $0x3c0] sm:$0xff]
        %v578 = vld [vmem:[#allocation2 + $0x3c8] sm:$0xff]
        %v579 = vld [vmem:[#allocation2 + $0x3d0] sm:$0xff]
        %v580 = vld [vmem:[#allocation2 + $0x3d8] sm:$0xff]
        %v581 = vld [vmem:[#allocation2 + $0x3e0] sm:$0xff]
        %v582 = vld [vmem:[#allocation2 + $0x3e8] sm:$0xff]
        %v583 = vld [vmem:[#allocation2 + $0x3f0] sm:$0xff]
        %v584 = vld [vmem:[#allocation2 + $0x3f8] sm:$0xff]
        %v585 = vld [vmem:[#allocation5] sm:$0xf]
        %v586 = vld [vmem:[#allocation5 + $0x4] sm:$0xf]
        %v587 = vld [vmem:[#allocation5 + $0x8] sm:$0xf]
        %v588 = vld [vmem:[#allocation5 + $0xc] sm:$0xf]
        %v589 = vld [vmem:[#allocation5 + $0x10] sm:$0xf]
        %v590 = vld [vmem:[#allocation5 + $0x14] sm:$0xf]
        %v591 = vld [vmem:[#allocation5 + $0x18] sm:$0xf]
        %v592 = vld [vmem:[#allocation5 + $0x1c] sm:$0xf]
        %v593 = vld [vmem:[#allocation5 + $0x20] sm:$0xf]
        %v594 = vld [vmem:[#allocation5 + $0x24] sm:$0xf]
        %v595 = vld [vmem:[#allocation5 + $0x28] sm:$0xf]
        %v596 = vld [vmem:[#allocation5 + $0x2c] sm:$0xf]
        %v597 = vld [vmem:[#allocation5 + $0x30] sm:$0xf]
        %v598 = vld [vmem:[#allocation5 + $0x34] sm:$0xf]
        %v599 = vld [vmem:[#allocation5 + $0x38] sm:$0xf]
        %v600 = vld [vmem:[#allocation5 + $0x3c] sm:$0xf]
        %v601 = vld [vmem:[#allocation5 + $0x40] sm:$0xf]
        %v602 = vld [vmem:[#allocation5 + $0x44] sm:$0xf]
        %v603 = vld [vmem:[#allocation5 + $0x48] sm:$0xf]
        %v604 = vld [vmem:[#allocation5 + $0x4c] sm:$0xf]
        %v605 = vld [vmem:[#allocation5 + $0x50] sm:$0xf]
        %v606 = vld [vmem:[#allocation5 + $0x54] sm:$0xf]
        %v607 = vld [vmem:[#allocation5 + $0x58] sm:$0xf]
        %v608 = vld [vmem:[#allocation5 + $0x5c] sm:$0xf]
        %v609 = vld [vmem:[#allocation5 + $0x60] sm:$0xf]
        %v610 = vld [vmem:[#allocation5 + $0x64] sm:$0xf]
        %v611 = vld [vmem:[#allocation5 + $0x68] sm:$0xf]
        %v612 = vld [vmem:[#allocation5 + $0x6c] sm:$0xf]
        %v613 = vld [vmem:[#allocation5 + $0x70] sm:$0xf]
        %v614 = vld [vmem:[#allocation5 + $0x74] sm:$0xf]
        %v615 = vld [vmem:[#allocation5 + $0x78] sm:$0xf]
        %v616 = vld [vmem:[#allocation5 + $0x7c] sm:$0xf]
        %v617 = vld [vmem:[#allocation5 + $0x80] sm:$0xf]
        %v618 = vld [vmem:[#allocation5 + $0x84] sm:$0xf]
        %v619 = vld [vmem:[#allocation5 + $0x88] sm:$0xf]
        %v620 = vld [vmem:[#allocation5 + $0x8c] sm:$0xf]
        %v621 = vld [vmem:[#allocation5 + $0x90] sm:$0xf]
        %v622 = vld [vmem:[#allocation5 + $0x94] sm:$0xf]
        %v623 = vld [vmem:[#allocation5 + $0x98] sm:$0xf]
        %v624 = vld [vmem:[#allocation5 + $0x9c] sm:$0xf]
        %v625 = vld [vmem:[#allocation5 + $0xa0] sm:$0xf]
        %v626 = vld [vmem:[#allocation5 + $0xa4] sm:$0xf]
        %v627 = vld [vmem:[#allocation5 + $0xa8] sm:$0xf]
        %v628 = vld [vmem:[#allocation5 + $0xac] sm:$0xf]
        %v629 = vld [vmem:[#allocation5 + $0xb0] sm:$0xf]
        %v630 = vld [vmem:[#allocation5 + $0xb4] sm:$0xf]
        %v631 = vld [vmem:[#allocation5 + $0xb8] sm:$0xf]
        %v632 = vld [vmem:[#allocation5 + $0xbc] sm:$0xf]
        %v633 = vld [vmem:[#allocation5 + $0xc0] sm:$0xf]
        %v634 = vld [vmem:[#allocation5 + $0xc4] sm:$0xf]
        %v635 = vld [vmem:[#allocation5 + $0xc8] sm:$0xf]
        %v636 = vld [vmem:[#allocation5 + $0xcc] sm:$0xf]
        %v637 = vld [vmem:[#allocation5 + $0xd0] sm:$0xf]
        %v638 = vld [vmem:[#allocation5 + $0xd4] sm:$0xf]
        %v639 = vld [vmem:[#allocation5 + $0xd8] sm:$0xf]
        %v640 = vld [vmem:[#allocation5 + $0xdc] sm:$0xf]
        %v641 = vld [vmem:[#allocation5 + $0xe0] sm:$0xf]
        %v642 = vld [vmem:[#allocation5 + $0xe4] sm:$0xf]
        %v643 = vld [vmem:[#allocation5 + $0xe8] sm:$0xf]
        %v644 = vld [vmem:[#allocation5 + $0xec] sm:$0xf]
        %v645 = vld [vmem:[#allocation5 + $0xf0] sm:$0xf]
        %v646 = vld [vmem:[#allocation5 + $0xf4] sm:$0xf]
        %v647 = vld [vmem:[#allocation5 + $0xf8] sm:$0xf]
        %v648 = vld [vmem:[#allocation5 + $0xfc] sm:$0xf]
        %v649 = vld [vmem:[%s5] sm:$0xff]
        %v650 = vld [vmem:[%s5 + $0x8] sm:$0xff]
        %v651 = vld [vmem:[%s5 + $0x10] sm:$0xff]
        %v652 = vld [vmem:[%s5 + $0x18] sm:$0xff]
        %v653 = vpack.c.bf16 %v282, %v281
        %v654 = vpack.c.bf16 %v284, %v283
        %v655 = vpack.c.bf16 %v286, %v285
        %v656 = vpack.c.bf16 %v288, %v287
        %v657 = vpack.c.bf16 %v290, %v289
        %v658 = vpack.c.bf16 %v292, %v291
        %v659 = vpack.c.bf16 %v294, %v293
        %v660 = vpack.c.bf16 %v296, %v295
        %v693 = vunpack.c.l.b16 %v297
        %v694 = vunpack.c.h.b16 %v297
        %v695 = vunpack.c.l.b16 %v298
        %v696 = vunpack.c.h.b16 %v298
        %v697 = vunpack.c.l.b16 %v299
        %v698 = vunpack.c.h.b16 %v299
        %v699 = vunpack.c.l.b16 %v300
        %v700 = vunpack.c.h.b16 %v300
        %v701 = vunpack.c.l.b16 %v301
        %v702 = vunpack.c.h.b16 %v301
        %v703 = vunpack.c.l.b16 %v302
        %v704 = vunpack.c.h.b16 %v302
        %v705 = vunpack.c.l.b16 %v303
        %v706 = vunpack.c.h.b16 %v303
        %v707 = vunpack.c.l.b16 %v304
        %v708 = vunpack.c.h.b16 %v304
        %v709 = vunpack.c.l.b16 %v305
        %v710 = vunpack.c.h.b16 %v305
        %v711 = vunpack.c.l.b16 %v306
        %v712 = vunpack.c.h.b16 %v306
        %v713 = vunpack.c.l.b16 %v307
        %v714 = vunpack.c.h.b16 %v307
        %v715 = vunpack.c.l.b16 %v308
        %v716 = vunpack.c.h.b16 %v308
        %v717 = vunpack.c.l.b16 %v309
        %v718 = vunpack.c.h.b16 %v309
        %v719 = vunpack.c.l.b16 %v310
        %v720 = vunpack.c.h.b16 %v310
        %v721 = vunpack.c.l.b16 %v311
        %v722 = vunpack.c.h.b16 %v311
        %v723 = vunpack.c.l.b16 %v312
        %v724 = vunpack.c.h.b16 %v312
        %v725 = vunpack.c.l.b16 %v313
        %v726 = vunpack.c.h.b16 %v313
        %v727 = vunpack.c.l.b16 %v314
        %v728 = vunpack.c.h.b16 %v314
        %v729 = vunpack.c.l.b16 %v315
        %v730 = vunpack.c.h.b16 %v315
        %v731 = vunpack.c.l.b16 %v316
        %v732 = vunpack.c.h.b16 %v316
        %v733 = vunpack.c.l.b16 %v317
        %v734 = vunpack.c.h.b16 %v317
        %v735 = vunpack.c.l.b16 %v318
        %v736 = vunpack.c.h.b16 %v318
        %v737 = vunpack.c.l.b16 %v319
        %v738 = vunpack.c.h.b16 %v319
        %v739 = vunpack.c.l.b16 %v320
        %v740 = vunpack.c.h.b16 %v320
        %v741 = vunpack.c.l.b16 %v321
        %v742 = vunpack.c.h.b16 %v321
        %v743 = vunpack.c.l.b16 %v322
        %v744 = vunpack.c.h.b16 %v322
        %v745 = vunpack.c.l.b16 %v323
        %v746 = vunpack.c.h.b16 %v323
        %v747 = vunpack.c.l.b16 %v324
        %v748 = vunpack.c.h.b16 %v324
        %v749 = vunpack.c.l.b16 %v325
        %v750 = vunpack.c.h.b16 %v325
        %v751 = vunpack.c.l.b16 %v326
        %v752 = vunpack.c.h.b16 %v326
        %v753 = vunpack.c.l.b16 %v327
        %v754 = vunpack.c.h.b16 %v327
        %v755 = vunpack.c.l.b16 %v328
        %v756 = vunpack.c.h.b16 %v328
        %v757 = vpack.c.b16 %v697, %v693
        %v758 = vpack.c.b16 %v698, %v694
        %v759 = vpack.c.b16 %v699, %v695
        %v760 = vpack.c.b16 %v700, %v696
        %v761 = vpack.c.b16 %v705, %v701
        %v762 = vpack.c.b16 %v706, %v702
        %v763 = vpack.c.b16 %v707, %v703
        %v764 = vpack.c.b16 %v708, %v704
        %v765 = vpack.c.b16 %v713, %v709
        %v766 = vpack.c.b16 %v714, %v710
        %v767 = vpack.c.b16 %v715, %v711
        %v768 = vpack.c.b16 %v716, %v712
        %v769 = vpack.c.b16 %v721, %v717
        %v770 = vpack.c.b16 %v722, %v718
        %v771 = vpack.c.b16 %v723, %v719
        %v772 = vpack.c.b16 %v724, %v720
        %v773 = vpack.c.b16 %v729, %v725
        %v774 = vpack.c.b16 %v730, %v726
        %v775 = vpack.c.b16 %v731, %v727
        %v776 = vpack.c.b16 %v732, %v728
        %v777 = vpack.c.b16 %v737, %v733
        %v778 = vpack.c.b16 %v738, %v734
        %v779 = vpack.c.b16 %v739, %v735
        %v780 = vpack.c.b16 %v740, %v736
        %v781 = vpack.c.b16 %v745, %v741
        %v782 = vpack.c.b16 %v746, %v742
        %v783 = vpack.c.b16 %v747, %v743
        %v784 = vpack.c.b16 %v748, %v744
        %v785 = vpack.c.b16 %v753, %v749
        %v786 = vpack.c.b16 %v754, %v750
        %v787 = vpack.c.b16 %v755, %v751
        %v788 = vpack.c.b16 %v756, %v752
        %821 = vmatprep.subr.bf16.mxu0 %v758
        %822 = vmatpush1.bf16.msra.mxu0 %v757
        %823 = vmatprep.subr.bf16.mxu0 %v762
        %824 = vmatpush1.bf16.msra.mxu0 %v761
        %825 = vmatprep.subr.bf16.mxu0 %v766
        %826 = vmatpush1.bf16.msra.mxu0 %v765
        %827 = vmatprep.subr.bf16.mxu0 %v770
        %828 = vmatpush1.bf16.msra.mxu0 %v769
        %829 = vmatprep.subr.bf16.mxu0 %v774
        %830 = vmatpush1.bf16.msra.mxu0 %v773
        %831 = vmatprep.subr.bf16.mxu0 %v778
        %832 = vmatpush1.bf16.msra.mxu0 %v777
        %833 = vmatprep.subr.bf16.mxu0 %v782
        %834 = vmatpush1.bf16.msra.mxu0 %v781
        %835 = vmatprep.subr.bf16.mxu0 %v786
        %836 = vmatpush1.bf16.msra.mxu0 %v785
        %837 = vmatprep.subr.bf16.mxu0 0
        %838 = vmatpush1.bf16.msra.mxu0 0
        %839 = vmatprep.subr.bf16.mxu0 0
        %840 = vmatpush1.bf16.msra.mxu0 0
        %841 = vmatprep.subr.bf16.mxu0 0
        %842 = vmatpush1.bf16.msra.mxu0 0
        %843 = vmatprep.subr.bf16.mxu0 0
        %844 = vmatpush1.bf16.msra.mxu0 0
        %845 = vmatprep.subr.bf16.mxu0 0
        %846 = vmatpush1.bf16.msra.mxu0 0
        %847 = vmatprep.subr.bf16.mxu0 0
        %848 = vmatpush1.bf16.msra.mxu0 0
        %849 = vmatprep.subr.bf16.mxu0 0
        %850 = vmatpush1.bf16.msra.mxu0 0
        %851 = vmatprep.subr.bf16.mxu0 0
        %852 = vmatpush1.bf16.msra.mxu0 0
        %853 = vmatprep.mubr.bf16.mxu0 0
        %854 = vmatmul.mubr.bf16.gmra.mrb[0].mxu0 %v653
        %v855 = vpop.f32.mrb[0].mxu0
        %v856 = vadd.f32 0.0, %v855
        %v857 = vpop.f32.mrb[0].mxu0
        %v858 = vadd.f32 0.0, %v857
        %v859 = vpop.f32.mrb[0].mxu0
        %v860 = vadd.f32 0.0, %v859
        %v861 = vpop.f32.mrb[0].mxu0
        %v862 = vadd.f32 0.0, %v861
        %863 = vmatprep.mubr.bf16.mxu0 0
        %864 = vmatmul.mubr.bf16.gmra.mrb[0].mxu0 %v654
        %v865 = vpop.f32.mrb[0].mxu0
        %v866 = vadd.f32 0.0, %v865
        %v867 = vpop.f32.mrb[0].mxu0
        %v868 = vadd.f32 0.0, %v867
        %v869 = vpop.f32.mrb[0].mxu0
        %v870 = vadd.f32 0.0, %v869
        %v871 = vpop.f32.mrb[0].mxu0
        %v872 = vadd.f32 0.0, %v871
        %873 = vmatprep.mubr.bf16.mxu0 0
        %874 = vmatmul.mubr.bf16.gmra.mrb[0].mxu0 %v655
        %v875 = vpop.f32.mrb[0].mxu0
        %v876 = vadd.f32 0.0, %v875
        %v877 = vpop.f32.mrb[0].mxu0
        %v878 = vadd.f32 0.0, %v877
        %v879 = vpop.f32.mrb[0].mxu0
        %v880 = vadd.f32 0.0, %v879
        %v881 = vpop.f32.mrb[0].mxu0
        %v882 = vadd.f32 0.0, %v881
        %883 = vmatprep.mubr.bf16.mxu0 0
        %884 = vmatmul.mubr.bf16.gmra.mrb[0].mxu0 %v656
        %v885 = vpop.f32.mrb[0].mxu0
        %v886 = vadd.f32 0.0, %v885
        %v887 = vpop.f32.mrb[0].mxu0
        %v888 = vadd.f32 0.0, %v887
        %v889 = vpop.f32.mrb[0].mxu0
        %v890 = vadd.f32 0.0, %v889
        %v891 = vpop.f32.mrb[0].mxu0
        %v892 = vadd.f32 0.0, %v891
        %893 = vmatprep.mubr.bf16.mxu0 0
        %894 = vmatmul.mubr.bf16.gmra.mrb[0].mxu0 %v657
        %v895 = vpop.f32.mrb[0].mxu0
        %v896 = vadd.f32 0.0, %v895
        %v897 = vpop.f32.mrb[0].mxu0
        %v898 = vadd.f32 0.0, %v897
        %v899 = vpop.f32.mrb[0].mxu0
        %v900 = vadd.f32 0.0, %v899
        %v901 = vpop.f32.mrb[0].mxu0
        %v902 = vadd.f32 0.0, %v901
        %903 = vmatprep.mubr.bf16.mxu0 0
        %904 = vmatmul.mubr.bf16.gmra.mrb[0].mxu0 %v658
        %v905 = vpop.f32.mrb[0].mxu0
        %v906 = vadd.f32 0.0, %v905
        %v907 = vpop.f32.mrb[0].mxu0
        %v908 = vadd.f32 0.0, %v907
        %v909 = vpop.f32.mrb[0].mxu0
        %v910 = vadd.f32 0.0, %v909
        %v911 = vpop.f32.mrb[0].mxu0
        %v912 = vadd.f32 0.0, %v911
        %913 = vmatprep.mubr.bf16.mxu0 0
        %914 = vmatmul.mubr.bf16.gmra.mrb[0].mxu0 %v659
        %v915 = vpop.f32.mrb[0].mxu0
        %v916 = vadd.f32 0.0, %v915
        %v917 = vpop.f32.mrb[0].mxu0
        %v918 = vadd.f32 0.0, %v917
        %v919 = vpop.f32.mrb[0].mxu0
        %v920 = vadd.f32 0.0, %v919
        %v921 = vpop.f32.mrb[0].mxu0
        %v922 = vadd.f32 0.0, %v921
        %923 = vmatprep.mubr.bf16.mxu0 0
        %924 = vmatmul.mubr.bf16.gmra.mrb[0].mxu0 %v660
        %v925 = vpop.f32.mrb[0].mxu0
        %v926 = vadd.f32 0.0, %v925
        %v927 = vpop.f32.mrb[0].mxu0
        %v928 = vadd.f32 0.0, %v927
        %v929 = vpop.f32.mrb[0].mxu0
        %v930 = vadd.f32 0.0, %v929
        %v931 = vpop.f32.mrb[0].mxu0
        %v932 = vadd.f32 0.0, %v931
        %933 = vdwg.mxu0
        %934 = vmatprep.subr.bf16.mxu0 %v760
        %935 = vmatpush1.bf16.msra.mxu0 %v759
        %936 = vmatprep.subr.bf16.mxu0 %v764
        %937 = vmatpush1.bf16.msra.mxu0 %v763
        %938 = vmatprep.subr.bf16.mxu0 %v768
        %939 = vmatpush1.bf16.msra.mxu0 %v767
        %940 = vmatprep.subr.bf16.mxu0 %v772
        %941 = vmatpush1.bf16.msra.mxu0 %v771
        %942 = vmatprep.subr.bf16.mxu0 %v776
        %943 = vmatpush1.bf16.msra.mxu0 %v775
        %944 = vmatprep.subr.bf16.mxu0 %v780
        %945 = vmatpush1.bf16.msra.mxu0 %v779
        %946 = vmatprep.subr.bf16.mxu0 %v784
        %947 = vmatpush1.bf16.msra.mxu0 %v783
        %948 = vmatprep.subr.bf16.mxu0 %v788
        %949 = vmatpush1.bf16.msra.mxu0 %v787
        %950 = vmatprep.subr.bf16.mxu0 0
        %951 = vmatpush1.bf16.msra.mxu0 0
        %952 = vmatprep.subr.bf16.mxu0 0
        %953 = vmatpush1.bf16.msra.mxu0 0
        %954 = vmatprep.subr.bf16.mxu0 0
        %955 = vmatpush1.bf16.msra.mxu0 0
        %956 = vmatprep.subr.bf16.mxu0 0
        %957 = vmatpush1.bf16.msra.mxu0 0
        %958 = vmatprep.subr.bf16.mxu0 0
        %959 = vmatpush1.bf16.msra.mxu0 0
        %960 = vmatprep.subr.bf16.mxu0 0
        %961 = vmatpush1.bf16.msra.mxu0 0
        %962 = vmatprep.subr.bf16.mxu0 0
        %963 = vmatpush1.bf16.msra.mxu0 0
        %964 = vmatprep.subr.bf16.mxu0 0
        %965 = vmatpush1.bf16.msra.mxu0 0
        %966 = vmatprep.mubr.bf16.mxu0 0
        %967 = vmatmul.mubr.bf16.gmra.mrb[0].mxu0 %v653
        %v968 = vpop.f32.mrb[0].mxu0
        %v969 = vadd.f32 0.0, %v968
        %v970 = vpop.f32.mrb[0].mxu0
        %v971 = vadd.f32 0.0, %v970
        %v972 = vpop.f32.mrb[0].mxu0
        %v973 = vadd.f32 0.0, %v972
        %v974 = vpop.f32.mrb[0].mxu0
        %v975 = vadd.f32 0.0, %v974
        %976 = vmatprep.mubr.bf16.mxu0 0
        %977 = vmatmul.mubr.bf16.gmra.mrb[0].mxu0 %v654
        %v978 = vpop.f32.mrb[0].mxu0
        %v979 = vadd.f32 0.0, %v978
        %v980 = vpop.f32.mrb[0].mxu0
        %v981 = vadd.f32 0.0, %v980
        %v982 = vpop.f32.mrb[0].mxu0
        %v983 = vadd.f32 0.0, %v982
        %v984 = vpop.f32.mrb[0].mxu0
        %v985 = vadd.f32 0.0, %v984
        %986 = vmatprep.mubr.bf16.mxu0 0
        %987 = vmatmul.mubr.bf16.gmra.mrb[0].mxu0 %v655
        %v988 = vpop.f32.mrb[0].mxu0
        %v989 = vadd.f32 0.0, %v988
        %v990 = vpop.f32.mrb[0].mxu0
        %v991 = vadd.f32 0.0, %v990
        %v992 = vpop.f32.mrb[0].mxu0
        %v993 = vadd.f32 0.0, %v992
        %v994 = vpop.f32.mrb[0].mxu0
        %v995 = vadd.f32 0.0, %v994
        %996 = vmatprep.mubr.bf16.mxu0 0
        %997 = vmatmul.mubr.bf16.gmra.mrb[0].mxu0 %v656
        %v998 = vpop.f32.mrb[0].mxu0
        %v999 = vadd.f32 0.0, %v998
        %v1000 = vpop.f32.mrb[0].mxu0
        %v1001 = vadd.f32 0.0, %v1000
        %v1002 = vpop.f32.mrb[0].mxu0
        %v1003 = vadd.f32 0.0, %v1002
        %v1004 = vpop.f32.mrb[0].mxu0
        %v1005 = vadd.f32 0.0, %v1004
        %1006 = vmatprep.mubr.bf16.mxu0 0
        %1007 = vmatmul.mubr.bf16.gmra.mrb[0].mxu0 %v657
        %v1008 = vpop.f32.mrb[0].mxu0
        %v1009 = vadd.f32 0.0, %v1008
        %v1010 = vpop.f32.mrb[0].mxu0
        %v1011 = vadd.f32 0.0, %v1010
        %v1012 = vpop.f32.mrb[0].mxu0
        %v1013 = vadd.f32 0.0, %v1012
        %v1014 = vpop.f32.mrb[0].mxu0
        %v1015 = vadd.f32 0.0, %v1014
        %1016 = vmatprep.mubr.bf16.mxu0 0
        %1017 = vmatmul.mubr.bf16.gmra.mrb[0].mxu0 %v658
        %v1018 = vpop.f32.mrb[0].mxu0
        %v1019 = vadd.f32 0.0, %v1018
        %v1020 = vpop.f32.mrb[0].mxu0
        %v1021 = vadd.f32 0.0, %v1020
        %v1022 = vpop.f32.mrb[0].mxu0
        %v1023 = vadd.f32 0.0, %v1022
        %v1024 = vpop.f32.mrb[0].mxu0
        %v1025 = vadd.f32 0.0, %v1024
        %1026 = vmatprep.mubr.bf16.mxu0 0
        %1027 = vmatmul.mubr.bf16.gmra.mrb[0].mxu0 %v659
        %v1028 = vpop.f32.mrb[0].mxu0
        %v1029 = vadd.f32 0.0, %v1028
        %v1030 = vpop.f32.mrb[0].mxu0
        %v1031 = vadd.f32 0.0, %v1030
        %v1032 = vpop.f32.mrb[0].mxu0
        %v1033 = vadd.f32 0.0, %v1032
        %v1034 = vpop.f32.mrb[0].mxu0
        %v1035 = vadd.f32 0.0, %v1034
        %1036 = vmatprep.mubr.bf16.mxu0 0
        %1037 = vmatmul.mubr.bf16.gmra.mrb[0].mxu0 %v660
        %v1038 = vpop.f32.mrb[0].mxu0
        %v1039 = vadd.f32 0.0, %v1038
        %v1040 = vpop.f32.mrb[0].mxu0
        %v1041 = vadd.f32 0.0, %v1040
        %v1042 = vpop.f32.mrb[0].mxu0
        %v1043 = vadd.f32 0.0, %v1042
        %v1044 = vpop.f32.mrb[0].mxu0
        %v1045 = vadd.f32 0.0, %v1044
        %1046 = vdwg.mxu0
        %v1047 = vadd.f32 %v856, %v860
        %v1048 = vadd.f32 %v1047, %v866
        %v1049 = vadd.f32 %v1048, %v870
        %v1050 = vadd.f32 %v1049, %v876
        %v1051 = vadd.f32 %v1050, %v880
        %v1052 = vadd.f32 %v1051, %v886
        %v1053 = vadd.f32 %v1052, %v890
        %v1054 = vadd.f32 %v1053, %v896
        %v1055 = vadd.f32 %v1054, %v900
        %v1056 = vadd.f32 %v1055, %v906
        %v1057 = vadd.f32 %v1056, %v910
        %v1058 = vadd.f32 %v1057, %v916
        %v1059 = vadd.f32 %v1058, %v920
        %v1060 = vadd.f32 %v1059, %v926
        %v1061 = vadd.f32 %v1060, %v930
        %v1062 = vrot.slane %v1061, 4
        %v1063 = vadd.f32 %v1061, %v1062
        %v1064 = vrot.slane %v1063, 2
        %v1065 = vadd.f32 %v1063, %v1064
        %v1066 = vrot.slane %v1065, 1
        %v1067 = vadd.f32 %v1065, %v1066
        %v1068 = vadd.f32 %v858, %v862
        %v1069 = vadd.f32 %v1068, %v868
        %v1070 = vadd.f32 %v1069, %v872
        %v1071 = vadd.f32 %v1070, %v878
        %v1072 = vadd.f32 %v1071, %v882
        %v1073 = vadd.f32 %v1072, %v888
        %v1074 = vadd.f32 %v1073, %v892
        %v1075 = vadd.f32 %v1074, %v898
        %v1076 = vadd.f32 %v1075, %v902
        %v1077 = vadd.f32 %v1076, %v908
        %v1078 = vadd.f32 %v1077, %v912
        %v1079 = vadd.f32 %v1078, %v918
        %v1080 = vadd.f32 %v1079, %v922
        %v1081 = vadd.f32 %v1080, %v928
        %v1082 = vadd.f32 %v1081, %v932
        %v1083 = vrot.slane %v1082, 4
        %v1084 = vadd.f32 %v1082, %v1083
        %v1085 = vrot.slane %v1084, 2
        %v1086 = vadd.f32 %v1084, %v1085
        %v1087 = vrot.slane %v1086, 1
        %v1088 = vadd.f32 %v1086, %v1087
        %v1089 = vadd.f32 %v969, %v973
        %v1090 = vadd.f32 %v1089, %v979
        %v1091 = vadd.f32 %v1090, %v983
        %v1092 = vadd.f32 %v1091, %v989
        %v1093 = vadd.f32 %v1092, %v993
        %v1094 = vadd.f32 %v1093, %v999
        %v1095 = vadd.f32 %v1094, %v1003
        %v1096 = vadd.f32 %v1095, %v1009
        %v1097 = vadd.f32 %v1096, %v1013
        %v1098 = vadd.f32 %v1097, %v1019
        %v1099 = vadd.f32 %v1098, %v1023
        %v1100 = vadd.f32 %v1099, %v1029
        %v1101 = vadd.f32 %v1100, %v1033
        %v1102 = vadd.f32 %v1101, %v1039
        %v1103 = vadd.f32 %v1102, %v1043
        %v1104 = vrot.slane %v1103, 4
        %v1105 = vadd.f32 %v1103, %v1104
        %v1106 = vrot.slane %v1105, 2
        %v1107 = vadd.f32 %v1105, %v1106
        %v1108 = vrot.slane %v1107, 1
        %v1109 = vadd.f32 %v1107, %v1108
        %v1110 = vadd.f32 %v971, %v975
        %v1111 = vadd.f32 %v1110, %v981
        %v1112 = vadd.f32 %v1111, %v985
        %v1113 = vadd.f32 %v1112, %v991
        %v1114 = vadd.f32 %v1113, %v995
        %v1115 = vadd.f32 %v1114, %v1001
        %v1116 = vadd.f32 %v1115, %v1005
        %v1117 = vadd.f32 %v1116, %v1011
        %v1118 = vadd.f32 %v1117, %v1015
        %v1119 = vadd.f32 %v1118, %v1021
        %v1120 = vadd.f32 %v1119, %v1025
        %v1121 = vadd.f32 %v1120, %v1031
        %v1122 = vadd.f32 %v1121, %v1035
        %v1123 = vadd.f32 %v1122, %v1041
        %v1124 = vadd.f32 %v1123, %v1045
        %v1125 = vrot.slane %v1124, 4
        %v1126 = vadd.f32 %v1124, %v1125
        %v1127 = vrot.slane %v1126, 2
        %v1128 = vadd.f32 %v1126, %v1127
        %v1129 = vrot.slane %v1128, 1
        %v1130 = vadd.f32 %v1128, %v1129
        %v1131 = vrcp.pop 128.0
        %v1132 = vmul.f32 %v1067, %v1131
        %v1133 = vmul.f32 %v1088, %v1131
        %v1134 = vmul.f32 %v1109, %v1131
        %v1135 = vmul.f32 %v1130, %v1131
        %v1136 = vsub.f32 %v856, %v1132
        %v1137 = vsub.f32 %v858, %v1133
        %v1138 = vsub.f32 %v969, %v1134
        %v1139 = vsub.f32 %v971, %v1135
        %v1140 = vsub.f32 %v860, %v1132
        %v1141 = vsub.f32 %v862, %v1133
        %v1142 = vsub.f32 %v973, %v1134
        %v1143 = vsub.f32 %v975, %v1135
        %v1144 = vsub.f32 %v866, %v1132
        %v1145 = vsub.f32 %v868, %v1133
        %v1146 = vsub.f32 %v979, %v1134
        %v1147 = vsub.f32 %v981, %v1135
        %v1148 = vsub.f32 %v870, %v1132
        %v1149 = vsub.f32 %v872, %v1133
        %v1150 = vsub.f32 %v983, %v1134
        %v1151 = vsub.f32 %v985, %v1135
        %v1152 = vsub.f32 %v876, %v1132
        %v1153 = vsub.f32 %v878, %v1133
        %v1154 = vsub.f32 %v989, %v1134
        %v1155 = vsub.f32 %v991, %v1135
        %v1156 = vsub.f32 %v880, %v1132
        %v1157 = vsub.f32 %v882, %v1133
        %v1158 = vsub.f32 %v993, %v1134
        %v1159 = vsub.f32 %v995, %v1135
        %v1160 = vsub.f32 %v886, %v1132
        %v1161 = vsub.f32 %v888, %v1133
        %v1162 = vsub.f32 %v999, %v1134
        %v1163 = vsub.f32 %v1001, %v1135
        %v1164 = vsub.f32 %v890, %v1132
        %v1165 = vsub.f32 %v892, %v1133
        %v1166 = vsub.f32 %v1003, %v1134
        %v1167 = vsub.f32 %v1005, %v1135
        %v1168 = vsub.f32 %v896, %v1132
        %v1169 = vsub.f32 %v898, %v1133
        %v1170 = vsub.f32 %v1009, %v1134
        %v1171 = vsub.f32 %v1011, %v1135
        %v1172 = vsub.f32 %v900, %v1132
        %v1173 = vsub.f32 %v902, %v1133
        %v1174 = vsub.f32 %v1013, %v1134
        %v1175 = vsub.f32 %v1015, %v1135
        %v1176 = vsub.f32 %v906, %v1132
        %v1177 = vsub.f32 %v908, %v1133
        %v1178 = vsub.f32 %v1019, %v1134
        %v1179 = vsub.f32 %v1021, %v1135
        %v1180 = vsub.f32 %v910, %v1132
        %v1181 = vsub.f32 %v912, %v1133
        %v1182 = vsub.f32 %v1023, %v1134
        %v1183 = vsub.f32 %v1025, %v1135
        %v1184 = vsub.f32 %v916, %v1132
        %v1185 = vsub.f32 %v918, %v1133
        %v1186 = vsub.f32 %v1029, %v1134
        %v1187 = vsub.f32 %v1031, %v1135
        %v1188 = vsub.f32 %v920, %v1132
        %v1189 = vsub.f32 %v922, %v1133
        %v1190 = vsub.f32 %v1033, %v1134
        %v1191 = vsub.f32 %v1035, %v1135
        %v1192 = vsub.f32 %v926, %v1132
        %v1193 = vsub.f32 %v928, %v1133
        %v1194 = vsub.f32 %v1039, %v1134
        %v1195 = vsub.f32 %v1041, %v1135
        %v1196 = vsub.f32 %v930, %v1132
        %v1197 = vsub.f32 %v932, %v1133
        %v1198 = vsub.f32 %v1043, %v1134
        %v1199 = vsub.f32 %v1045, %v1135
        %v1200 = vmul.f32 %v1136, %v1136
        %v1201 = vmul.f32 %v1137, %v1137
        %v1202 = vmul.f32 %v1138, %v1138
        %v1203 = vmul.f32 %v1139, %v1139
        %v1204 = vmul.f32 %v1140, %v1140
        %v1205 = vmul.f32 %v1141, %v1141
        %v1206 = vmul.f32 %v1142, %v1142
        %v1207 = vmul.f32 %v1143, %v1143
        %v1208 = vmul.f32 %v1144, %v1144
        %v1209 = vmul.f32 %v1145, %v1145
        %v1210 = vmul.f32 %v1146, %v1146
        %v1211 = vmul.f32 %v1147, %v1147
        %v1212 = vmul.f32 %v1148, %v1148
        %v1213 = vmul.f32 %v1149, %v1149
        %v1214 = vmul.f32 %v1150, %v1150
        %v1215 = vmul.f32 %v1151, %v1151
        %v1216 = vmul.f32 %v1152, %v1152
        %v1217 = vmul.f32 %v1153, %v1153
        %v1218 = vmul.f32 %v1154, %v1154
        %v1219 = vmul.f32 %v1155, %v1155
        %v1220 = vmul.f32 %v1156, %v1156
        %v1221 = vmul.f32 %v1157, %v1157
        %v1222 = vmul.f32 %v1158, %v1158
        %v1223 = vmul.f32 %v1159, %v1159
        %v1224 = vmul.f32 %v1160, %v1160
        %v1225 = vmul.f32 %v1161, %v1161
        %v1226 = vmul.f32 %v1162, %v1162
        %v1227 = vmul.f32 %v1163, %v1163
        %v1228 = vmul.f32 %v1164, %v1164
        %v1229 = vmul.f32 %v1165, %v1165
        %v1230 = vmul.f32 %v1166, %v1166
        %v1231 = vmul.f32 %v1167, %v1167
        %v1232 = vmul.f32 %v1168, %v1168
        %v1233 = vmul.f32 %v1169, %v1169
        %v1234 = vmul.f32 %v1170, %v1170
        %v1235 = vmul.f32 %v1171, %v1171
        %v1236 = vmul.f32 %v1172, %v1172
        %v1237 = vmul.f32 %v1173, %v1173
        %v1238 = vmul.f32 %v1174, %v1174
        %v1239 = vmul.f32 %v1175, %v1175
        %v1240 = vmul.f32 %v1176, %v1176
        %v1241 = vmul.f32 %v1177, %v1177
        %v1242 = vmul.f32 %v1178, %v1178
        %v1243 = vmul.f32 %v1179, %v1179
        %v1244 = vmul.f32 %v1180, %v1180
        %v1245 = vmul.f32 %v1181, %v1181
        %v1246 = vmul.f32 %v1182, %v1182
        %v1247 = vmul.f32 %v1183, %v1183
        %v1248 = vmul.f32 %v1184, %v1184
        %v1249 = vmul.f32 %v1185, %v1185
        %v1250 = vmul.f32 %v1186, %v1186
        %v1251 = vmul.f32 %v1187, %v1187
        %v1252 = vmul.f32 %v1188, %v1188
        %v1253 = vmul.f32 %v1189, %v1189
        %v1254 = vmul.f32 %v1190, %v1190
        %v1255 = vmul.f32 %v1191, %v1191
        %v1256 = vmul.f32 %v1192, %v1192
        %v1257 = vmul.f32 %v1193, %v1193
        %v1258 = vmul.f32 %v1194, %v1194
        %v1259 = vmul.f32 %v1195, %v1195
        %v1260 = vmul.f32 %v1196, %v1196
        %v1261 = vmul.f32 %v1197, %v1197
        %v1262 = vmul.f32 %v1198, %v1198
        %v1263 = vmul.f32 %v1199, %v1199
        %v1264 = vadd.f32 %v1200, %v1204
        %v1265 = vadd.f32 %v1264, %v1208
        %v1266 = vadd.f32 %v1265, %v1212
        %v1267 = vadd.f32 %v1266, %v1216
        %v1268 = vadd.f32 %v1267, %v1220
        %v1269 = vadd.f32 %v1268, %v1224
        %v1270 = vadd.f32 %v1269, %v1228
        %v1271 = vadd.f32 %v1270, %v1232
        %v1272 = vadd.f32 %v1271, %v1236
        %v1273 = vadd.f32 %v1272, %v1240
        %v1274 = vadd.f32 %v1273, %v1244
        %v1275 = vadd.f32 %v1274, %v1248
        %v1276 = vadd.f32 %v1275, %v1252
        %v1277 = vadd.f32 %v1276, %v1256
        %v1278 = vadd.f32 %v1277, %v1260
        %v1279 = vrot.slane %v1278, 4
        %v1280 = vadd.f32 %v1278, %v1279
        %v1281 = vrot.slane %v1280, 2
        %v1282 = vadd.f32 %v1280, %v1281
        %v1283 = vrot.slane %v1282, 1
        %v1284 = vadd.f32 %v1282, %v1283
        %v1285 = vadd.f32 %v1201, %v1205
        %v1286 = vadd.f32 %v1285, %v1209
        %v1287 = vadd.f32 %v1286, %v1213
        %v1288 = vadd.f32 %v1287, %v1217
        %v1289 = vadd.f32 %v1288, %v1221
        %v1290 = vadd.f32 %v1289, %v1225
        %v1291 = vadd.f32 %v1290, %v1229
        %v1292 = vadd.f32 %v1291, %v1233
        %v1293 = vadd.f32 %v1292, %v1237
        %v1294 = vadd.f32 %v1293, %v1241
        %v1295 = vadd.f32 %v1294, %v1245
        %v1296 = vadd.f32 %v1295, %v1249
        %v1297 = vadd.f32 %v1296, %v1253
        %v1298 = vadd.f32 %v1297, %v1257
        %v1299 = vadd.f32 %v1298, %v1261
        %v1300 = vrot.slane %v1299, 4
        %v1301 = vadd.f32 %v1299, %v1300
        %v1302 = vrot.slane %v1301, 2
        %v1303 = vadd.f32 %v1301, %v1302
        %v1304 = vrot.slane %v1303, 1
        %v1305 = vadd.f32 %v1303, %v1304
        %v1306 = vadd.f32 %v1202, %v1206
        %v1307 = vadd.f32 %v1306, %v1210
        %v1308 = vadd.f32 %v1307, %v1214
        %v1309 = vadd.f32 %v1308, %v1218
        %v1310 = vadd.f32 %v1309, %v1222
        %v1311 = vadd.f32 %v1310, %v1226
        %v1312 = vadd.f32 %v1311, %v1230
        %v1313 = vadd.f32 %v1312, %v1234
        %v1314 = vadd.f32 %v1313, %v1238
        %v1315 = vadd.f32 %v1314, %v1242
        %v1316 = vadd.f32 %v1315, %v1246
        %v1317 = vadd.f32 %v1316, %v1250
        %v1318 = vadd.f32 %v1317, %v1254
        %v1319 = vadd.f32 %v1318, %v1258
        %v1320 = vadd.f32 %v1319, %v1262
        %v1321 = vrot.slane %v1320, 4
        %v1322 = vadd.f32 %v1320, %v1321
        %v1323 = vrot.slane %v1322, 2
        %v1324 = vadd.f32 %v1322, %v1323
        %v1325 = vrot.slane %v1324, 1
        %v1326 = vadd.f32 %v1324, %v1325
        %v1327 = vadd.f32 %v1203, %v1207
        %v1328 = vadd.f32 %v1327, %v1211
        %v1329 = vadd.f32 %v1328, %v1215
        %v1330 = vadd.f32 %v1329, %v1219
        %v1331 = vadd.f32 %v1330, %v1223
        %v1332 = vadd.f32 %v1331, %v1227
        %v1333 = vadd.f32 %v1332, %v1231
        %v1334 = vadd.f32 %v1333, %v1235
        %v1335 = vadd.f32 %v1334, %v1239
        %v1336 = vadd.f32 %v1335, %v1243
        %v1337 = vadd.f32 %v1336, %v1247
        %v1338 = vadd.f32 %v1337, %v1251
        %v1339 = vadd.f32 %v1338, %v1255
        %v1340 = vadd.f32 %v1339, %v1259
        %v1341 = vadd.f32 %v1340, %v1263
        %v1342 = vrot.slane %v1341, 4
        %v1343 = vadd.f32 %v1341, %v1342
        %v1344 = vrot.slane %v1343, 2
        %v1345 = vadd.f32 %v1343, %v1344
        %v1346 = vrot.slane %v1345, 1
        %v1347 = vadd.f32 %v1345, %v1346
        %v1348 = vmul.f32 %v1284, %v1131
        %v1349 = vmul.f32 %v1305, %v1131
        %v1350 = vmul.f32 %v1326, %v1131
        %v1351 = vmul.f32 %v1347, %v1131
        %v1352 = vadd.f32 %v1348, 1e-05
        %v1353 = vadd.f32 %v1349, 1e-05
        %v1354 = vadd.f32 %v1350, 1e-05
        %v1355 = vadd.f32 %v1351, 1e-05
        %v1356 = vrsqrt.pop %v1352
        %v1357 = vrsqrt.pop %v1353
        %v1358 = vrsqrt.pop %v1354
        %v1359 = vrsqrt.pop %v1355
        %v1360 = vmul.f32 %v649, %v1356
        %v1361 = vmul.f32 %v650, %v1357
        %v1362 = vmul.f32 %v651, %v1358
        %v1363 = vmul.f32 %v652, %v1359
        %v1364 = vmul.f32 %v1132, %v1360
        %v1365 = vmul.f32 %v1133, %v1361
        %v1366 = vmul.f32 %v1134, %v1362
        %v1367 = vmul.f32 %v1135, %v1363
        %v1372 = vrot.slane %v1364, 5
        %v1373 = vrot.slane %v1365, 5
        %v1374 = vrot.slane %v1366, 5
        %v1375 = vrot.slane %v1367, 5
        %v1380 = vsub.f32 %v649, %v1372
        %v1381 = vsub.f32 %v650, %v1373
        %v1382 = vsub.f32 %v651, %v1374
        %v1383 = vsub.f32 %v652, %v1375
        %v1384 = vlaneseq
        %v1385 = vshrl.u32 %v1384, 7
        %v1386 = vsub.s32 0, %v1385
        %v1387 = vrot.slane %v1360, %v1386
        %v1388 = vlaneseq
        %v1389 = vshrl.u32 %v1388, 7
        %v1390 = vsub.s32 0, %v1389
        %v1391 = vrot.slane %v1361, %v1390
        %v1392 = vlaneseq
        %v1393 = vshrl.u32 %v1392, 7
        %v1394 = vsub.s32 0, %v1393
        %v1395 = vrot.slane %v1362, %v1394
        %v1396 = vlaneseq
        %v1397 = vshrl.u32 %v1396, 7
        %v1398 = vsub.s32 0, %v1397
        %v1399 = vrot.slane %v1363, %v1398
        %v1400 = vmul.f32 %v856, %v1387
        %v1401 = vmul.f32 %v858, %v1391
        %v1402 = vmul.f32 %v969, %v1395
        %v1403 = vmul.f32 %v971, %v1399
        %v1404 = vmul.f32 %v860, %v1387
        %v1405 = vmul.f32 %v862, %v1391
        %v1406 = vmul.f32 %v973, %v1395
        %v1407 = vmul.f32 %v975, %v1399
        %v1408 = vmul.f32 %v866, %v1387
        %v1409 = vmul.f32 %v868, %v1391
        %v1410 = vmul.f32 %v979, %v1395
        %v1411 = vmul.f32 %v981, %v1399
        %v1412 = vmul.f32 %v870, %v1387
        %v1413 = vmul.f32 %v872, %v1391
        %v1414 = vmul.f32 %v983, %v1395
        %v1415 = vmul.f32 %v985, %v1399
        %v1416 = vmul.f32 %v876, %v1387
        %v1417 = vmul.f32 %v878, %v1391
        %v1418 = vmul.f32 %v989, %v1395
        %v1419 = vmul.f32 %v991, %v1399
        %v1420 = vmul.f32 %v880, %v1387
        %v1421 = vmul.f32 %v882, %v1391
        %v1422 = vmul.f32 %v993, %v1395
        %v1423 = vmul.f32 %v995, %v1399
        %v1424 = vmul.f32 %v886, %v1387
        %v1425 = vmul.f32 %v888, %v1391
        %v1426 = vmul.f32 %v999, %v1395
        %v1427 = vmul.f32 %v1001, %v1399
        %v1428 = vmul.f32 %v890, %v1387
        %v1429 = vmul.f32 %v892, %v1391
        %v1430 = vmul.f32 %v1003, %v1395
        %v1431 = vmul.f32 %v1005, %v1399
        %v1432 = vmul.f32 %v896, %v1387
        %v1433 = vmul.f32 %v898, %v1391
        %v1434 = vmul.f32 %v1009, %v1395
        %v1435 = vmul.f32 %v1011, %v1399
        %v1436 = vmul.f32 %v900, %v1387
        %v1437 = vmul.f32 %v902, %v1391
        %v1438 = vmul.f32 %v1013, %v1395
        %v1439 = vmul.f32 %v1015, %v1399
        %v1440 = vmul.f32 %v906, %v1387
        %v1441 = vmul.f32 %v908, %v1391
        %v1442 = vmul.f32 %v1019, %v1395
        %v1443 = vmul.f32 %v1021, %v1399
        %v1444 = vmul.f32 %v910, %v1387
        %v1445 = vmul.f32 %v912, %v1391
        %v1446 = vmul.f32 %v1023, %v1395
        %v1447 = vmul.f32 %v1025, %v1399
        %v1448 = vmul.f32 %v916, %v1387
        %v1449 = vmul.f32 %v918, %v1391
        %v1450 = vmul.f32 %v1029, %v1395
        %v1451 = vmul.f32 %v1031, %v1399
        %v1452 = vmul.f32 %v920, %v1387
        %v1453 = vmul.f32 %v922, %v1391
        %v1454 = vmul.f32 %v1033, %v1395
        %v1455 = vmul.f32 %v1035, %v1399
        %v1456 = vmul.f32 %v926, %v1387
        %v1457 = vmul.f32 %v928, %v1391
        %v1458 = vmul.f32 %v1039, %v1395
        %v1459 = vmul.f32 %v1041, %v1399
        %v1460 = vmul.f32 %v930, %v1387
        %v1461 = vmul.f32 %v932, %v1391
        %v1462 = vmul.f32 %v1043, %v1395
        %v1463 = vmul.f32 %v1045, %v1399
        %v1464 = vlaneseq
        %v1465 = vshrl.u32 %v1464, 7
        %v1466 = vsub.s32 3, %v1465
        %v1467 = vrot.slane %v1380, %v1466
        %v1468 = vlaneseq
        %v1469 = vshrl.u32 %v1468, 7
        %v1470 = vsub.s32 3, %v1469
        %v1471 = vrot.slane %v1381, %v1470
        %v1472 = vlaneseq
        %v1473 = vshrl.u32 %v1472, 7
        %v1474 = vsub.s32 3, %v1473
        %v1475 = vrot.slane %v1382, %v1474
        %v1476 = vlaneseq
        %v1477 = vshrl.u32 %v1476, 7
        %v1478 = vsub.s32 3, %v1477
        %v1479 = vrot.slane %v1383, %v1478
        %v1480 = vadd.f32 %v1400, %v1467
        %v1481 = vadd.f32 %v1401, %v1471
        %v1482 = vadd.f32 %v1402, %v1475
        %v1483 = vadd.f32 %v1403, %v1479
        %v1484 = vadd.f32 %v1404, %v1467
        %v1485 = vadd.f32 %v1405, %v1471
        %v1486 = vadd.f32 %v1406, %v1475
        %v1487 = vadd.f32 %v1407, %v1479
        %v1488 = vadd.f32 %v1408, %v1467
        %v1489 = vadd.f32 %v1409, %v1471
        %v1490 = vadd.f32 %v1410, %v1475
        %v1491 = vadd.f32 %v1411, %v1479
        %v1492 = vadd.f32 %v1412, %v1467
        %v1493 = vadd.f32 %v1413, %v1471
        %v1494 = vadd.f32 %v1414, %v1475
        %v1495 = vadd.f32 %v1415, %v1479
        %v1496 = vadd.f32 %v1416, %v1467
        %v1497 = vadd.f32 %v1417, %v1471
        %v1498 = vadd.f32 %v1418, %v1475
        %v1499 = vadd.f32 %v1419, %v1479
        %v1500 = vadd.f32 %v1420, %v1467
        %v1501 = vadd.f32 %v1421, %v1471
        %v1502 = vadd.f32 %v1422, %v1475
        %v1503 = vadd.f32 %v1423, %v1479
        %v1504 = vadd.f32 %v1424, %v1467
        %v1505 = vadd.f32 %v1425, %v1471
        %v1506 = vadd.f32 %v1426, %v1475
        %v1507 = vadd.f32 %v1427, %v1479
        %v1508 = vadd.f32 %v1428, %v1467
        %v1509 = vadd.f32 %v1429, %v1471
        %v1510 = vadd.f32 %v1430, %v1475
        %v1511 = vadd.f32 %v1431, %v1479
        %v1512 = vadd.f32 %v1432, %v1467
        %v1513 = vadd.f32 %v1433, %v1471
        %v1514 = vadd.f32 %v1434, %v1475
        %v1515 = vadd.f32 %v1435, %v1479
        %v1516 = vadd.f32 %v1436, %v1467
        %v1517 = vadd.f32 %v1437, %v1471
        %v1518 = vadd.f32 %v1438, %v1475
        %v1519 = vadd.f32 %v1439, %v1479
        %v1520 = vadd.f32 %v1440, %v1467
        %v1521 = vadd.f32 %v1441, %v1471
        %v1522 = vadd.f32 %v1442, %v1475
        %v1523 = vadd.f32 %v1443, %v1479
        %v1524 = vadd.f32 %v1444, %v1467
        %v1525 = vadd.f32 %v1445, %v1471
        %v1526 = vadd.f32 %v1446, %v1475
        %v1527 = vadd.f32 %v1447, %v1479
        %v1528 = vadd.f32 %v1448, %v1467
        %v1529 = vadd.f32 %v1449, %v1471
        %v1530 = vadd.f32 %v1450, %v1475
        %v1531 = vadd.f32 %v1451, %v1479
        %v1532 = vadd.f32 %v1452, %v1467
        %v1533 = vadd.f32 %v1453, %v1471
        %v1534 = vadd.f32 %v1454, %v1475
        %v1535 = vadd.f32 %v1455, %v1479
        %v1536 = vadd.f32 %v1456, %v1467
        %v1537 = vadd.f32 %v1457, %v1471
        %v1538 = vadd.f32 %v1458, %v1475
        %v1539 = vadd.f32 %v1459, %v1479
        %v1540 = vadd.f32 %v1460, %v1467
        %v1541 = vadd.f32 %v1461, %v1471
        %v1542 = vadd.f32 %v1462, %v1475
        %v1543 = vadd.f32 %v1463, %v1479
        %v1544 = vmax.f32 %v1480, 0.0
        %v1545 = vmax.f32 %v1481, 0.0
        %v1546 = vmax.f32 %v1482, 0.0
        %v1547 = vmax.f32 %v1483, 0.0
        %v1548 = vmax.f32 %v1484, 0.0
        %v1549 = vmax.f32 %v1485, 0.0
        %v1550 = vmax.f32 %v1486, 0.0
        %v1551 = vmax.f32 %v1487, 0.0
        %v1552 = vmax.f32 %v1488, 0.0
        %v1553 = vmax.f32 %v1489, 0.0
        %v1554 = vmax.f32 %v1490, 0.0
        %v1555 = vmax.f32 %v1491, 0.0
        %v1556 = vmax.f32 %v1492, 0.0
        %v1557 = vmax.f32 %v1493, 0.0
        %v1558 = vmax.f32 %v1494, 0.0
        %v1559 = vmax.f32 %v1495, 0.0
        %v1560 = vmax.f32 %v1496, 0.0
        %v1561 = vmax.f32 %v1497, 0.0
        %v1562 = vmax.f32 %v1498, 0.0
        %v1563 = vmax.f32 %v1499, 0.0
        %v1564 = vmax.f32 %v1500, 0.0
        %v1565 = vmax.f32 %v1501, 0.0
        %v1566 = vmax.f32 %v1502, 0.0
        %v1567 = vmax.f32 %v1503, 0.0
        %v1568 = vmax.f32 %v1504, 0.0
        %v1569 = vmax.f32 %v1505, 0.0
        %v1570 = vmax.f32 %v1506, 0.0
        %v1571 = vmax.f32 %v1507, 0.0
        %v1572 = vmax.f32 %v1508, 0.0
        %v1573 = vmax.f32 %v1509, 0.0
        %v1574 = vmax.f32 %v1510, 0.0
        %v1575 = vmax.f32 %v1511, 0.0
        %v1576 = vmax.f32 %v1512, 0.0
        %v1577 = vmax.f32 %v1513, 0.0
        %v1578 = vmax.f32 %v1514, 0.0
        %v1579 = vmax.f32 %v1515, 0.0
        %v1580 = vmax.f32 %v1516, 0.0
        %v1581 = vmax.f32 %v1517, 0.0
        %v1582 = vmax.f32 %v1518, 0.0
        %v1583 = vmax.f32 %v1519, 0.0
        %v1584 = vmax.f32 %v1520, 0.0
        %v1585 = vmax.f32 %v1521, 0.0
        %v1586 = vmax.f32 %v1522, 0.0
        %v1587 = vmax.f32 %v1523, 0.0
        %v1588 = vmax.f32 %v1524, 0.0
        %v1589 = vmax.f32 %v1525, 0.0
        %v1590 = vmax.f32 %v1526, 0.0
        %v1591 = vmax.f32 %v1527, 0.0
        %v1592 = vmax.f32 %v1528, 0.0
        %v1593 = vmax.f32 %v1529, 0.0
        %v1594 = vmax.f32 %v1530, 0.0
        %v1595 = vmax.f32 %v1531, 0.0
        %v1596 = vmax.f32 %v1532, 0.0
        %v1597 = vmax.f32 %v1533, 0.0
        %v1598 = vmax.f32 %v1534, 0.0
        %v1599 = vmax.f32 %v1535, 0.0
        %v1600 = vmax.f32 %v1536, 0.0
        %v1601 = vmax.f32 %v1537, 0.0
        %v1602 = vmax.f32 %v1538, 0.0
        %v1603 = vmax.f32 %v1539, 0.0
        %v1604 = vmax.f32 %v1540, 0.0
        %v1605 = vmax.f32 %v1541, 0.0
        %v1606 = vmax.f32 %v1542, 0.0
        %v1607 = vmax.f32 %v1543, 0.0
        %v1608 = vpack.c.bf16 %v1548, %v1544
        %v1609 = vpack.c.bf16 %v1549, %v1545
        %v1610 = vpack.c.bf16 %v1550, %v1546
        %v1611 = vpack.c.bf16 %v1551, %v1547
        %v1612 = vpack.c.bf16 %v1556, %v1552
        %v1613 = vpack.c.bf16 %v1557, %v1553
        %v1614 = vpack.c.bf16 %v1558, %v1554
        %v1615 = vpack.c.bf16 %v1559, %v1555
        %v1616 = vpack.c.bf16 %v1564, %v1560
        %v1617 = vpack.c.bf16 %v1565, %v1561
        %v1618 = vpack.c.bf16 %v1566, %v1562
        %v1619 = vpack.c.bf16 %v1567, %v1563
        %v1620 = vpack.c.bf16 %v1572, %v1568
        %v1621 = vpack.c.bf16 %v1573, %v1569
        %v1622 = vpack.c.bf16 %v1574, %v1570
        %v1623 = vpack.c.bf16 %v1575, %v1571
        %v1624 = vpack.c.bf16 %v1580, %v1576
        %v1625 = vpack.c.bf16 %v1581, %v1577
        %v1626 = vpack.c.bf16 %v1582, %v1578
        %v1627 = vpack.c.bf16 %v1583, %v1579
        %v1628 = vpack.c.bf16 %v1588, %v1584
        %v1629 = vpack.c.bf16 %v1589, %v1585
        %v1630 = vpack.c.bf16 %v1590, %v1586
        %v1631 = vpack.c.bf16 %v1591, %v1587
        %v1632 = vpack.c.bf16 %v1596, %v1592
        %v1633 = vpack.c.bf16 %v1597, %v1593
        %v1634 = vpack.c.bf16 %v1598, %v1594
        %v1635 = vpack.c.bf16 %v1599, %v1595
        %v1636 = vpack.c.bf16 %v1604, %v1600
        %v1637 = vpack.c.bf16 %v1605, %v1601
        %v1638 = vpack.c.bf16 %v1606, %v1602
        %v1639 = vpack.c.bf16 %v1607, %v1603
        %v1768 = vunpack.c.l.b16 %v329
        %v1769 = vunpack.c.h.b16 %v329
        %v1770 = vunpack.c.l.b16 %v330
        %v1771 = vunpack.c.h.b16 %v330
        %v1772 = vunpack.c.l.b16 %v331
        %v1773 = vunpack.c.h.b16 %v331
        %v1774 = vunpack.c.l.b16 %v332
        %v1775 = vunpack.c.h.b16 %v332
        %v1776 = vunpack.c.l.b16 %v333
        %v1777 = vunpack.c.h.b16 %v333
        %v1778 = vunpack.c.l.b16 %v334
        %v1779 = vunpack.c.h.b16 %v334
        %v1780 = vunpack.c.l.b16 %v335
        %v1781 = vunpack.c.h.b16 %v335
        %v1782 = vunpack.c.l.b16 %v336
        %v1783 = vunpack.c.h.b16 %v336
        %v1784 = vunpack.c.l.b16 %v337
        %v1785 = vunpack.c.h.b16 %v337
        %v1786 = vunpack.c.l.b16 %v338
        %v1787 = vunpack.c.h.b16 %v338
        %v1788 = vunpack.c.l.b16 %v339
        %v1789 = vunpack.c.h.b16 %v339
        %v1790 = vunpack.c.l.b16 %v340
        %v1791 = vunpack.c.h.b16 %v340
        %v1792 = vunpack.c.l.b16 %v341
        %v1793 = vunpack.c.h.b16 %v341
        %v1794 = vunpack.c.l.b16 %v342
        %v1795 = vunpack.c.h.b16 %v342
        %v1796 = vunpack.c.l.b16 %v343
        %v1797 = vunpack.c.h.b16 %v343
        %v1798 = vunpack.c.l.b16 %v344
        %v1799 = vunpack.c.h.b16 %v344
        %v1800 = vunpack.c.l.b16 %v345
        %v1801 = vunpack.c.h.b16 %v345
        %v1802 = vunpack.c.l.b16 %v346
        %v1803 = vunpack.c.h.b16 %v346
        %v1804 = vunpack.c.l.b16 %v347
        %v1805 = vunpack.c.h.b16 %v347
        %v1806 = vunpack.c.l.b16 %v348
        %v1807 = vunpack.c.h.b16 %v348
        %v1808 = vunpack.c.l.b16 %v349
        %v1809 = vunpack.c.h.b16 %v349
        %v1810 = vunpack.c.l.b16 %v350
        %v1811 = vunpack.c.h.b16 %v350
        %v1812 = vunpack.c.l.b16 %v351
        %v1813 = vunpack.c.h.b16 %v351
        %v1814 = vunpack.c.l.b16 %v352
        %v1815 = vunpack.c.h.b16 %v352
        %v1816 = vunpack.c.l.b16 %v353
        %v1817 = vunpack.c.h.b16 %v353
        %v1818 = vunpack.c.l.b16 %v354
        %v1819 = vunpack.c.h.b16 %v354
        %v1820 = vunpack.c.l.b16 %v355
        %v1821 = vunpack.c.h.b16 %v355
        %v1822 = vunpack.c.l.b16 %v356
        %v1823 = vunpack.c.h.b16 %v356
        %v1824 = vunpack.c.l.b16 %v357
        %v1825 = vunpack.c.h.b16 %v357
        %v1826 = vunpack.c.l.b16 %v358
        %v1827 = vunpack.c.h.b16 %v358
        %v1828 = vunpack.c.l.b16 %v359
        %v1829 = vunpack.c.h.b16 %v359
        %v1830 = vunpack.c.l.b16 %v360
        %v1831 = vunpack.c.h.b16 %v360
        %v1832 = vunpack.c.l.b16 %v361
        %v1833 = vunpack.c.h.b16 %v361
        %v1834 = vunpack.c.l.b16 %v362
        %v1835 = vunpack.c.h.b16 %v362
        %v1836 = vunpack.c.l.b16 %v363
        %v1837 = vunpack.c.h.b16 %v363
        %v1838 = vunpack.c.l.b16 %v364
        %v1839 = vunpack.c.h.b16 %v364
        %v1840 = vunpack.c.l.b16 %v365
        %v1841 = vunpack.c.h.b16 %v365
        %v1842 = vunpack.c.l.b16 %v366
        %v1843 = vunpack.c.h.b16 %v366
        %v1844 = vunpack.c.l.b16 %v367
        %v1845 = vunpack.c.h.b16 %v367
        %v1846 = vunpack.c.l.b16 %v368
        %v1847 = vunpack.c.h.b16 %v368
        %v1848 = vunpack.c.l.b16 %v369
        %v1849 = vunpack.c.h.b16 %v369
        %v1850 = vunpack.c.l.b16 %v370
        %v1851 = vunpack.c.h.b16 %v370
        %v1852 = vunpack.c.l.b16 %v371
        %v1853 = vunpack.c.h.b16 %v371
        %v1854 = vunpack.c.l.b16 %v372
        %v1855 = vunpack.c.h.b16 %v372
        %v1856 = vunpack.c.l.b16 %v373
        %v1857 = vunpack.c.h.b16 %v373
        %v1858 = vunpack.c.l.b16 %v374
        %v1859 = vunpack.c.h.b16 %v374
        %v1860 = vunpack.c.l.b16 %v375
        %v1861 = vunpack.c.h.b16 %v375
        %v1862 = vunpack.c.l.b16 %v376
        %v1863 = vunpack.c.h.b16 %v376
        %v1864 = vunpack.c.l.b16 %v377
        %v1865 = vunpack.c.h.b16 %v377
        %v1866 = vunpack.c.l.b16 %v378
        %v1867 = vunpack.c.h.b16 %v378
        %v1868 = vunpack.c.l.b16 %v379
        %v1869 = vunpack.c.h.b16 %v379
        %v1870 = vunpack.c.l.b16 %v380
        %v1871 = vunpack.c.h.b16 %v380
        %v1872 = vunpack.c.l.b16 %v381
        %v1873 = vunpack.c.h.b16 %v381
        %v1874 = vunpack.c.l.b16 %v382
        %v1875 = vunpack.c.h.b16 %v382
        %v1876 = vunpack.c.l.b16 %v383
        %v1877 = vunpack.c.h.b16 %v383
        %v1878 = vunpack.c.l.b16 %v384
        %v1879 = vunpack.c.h.b16 %v384
        %v1880 = vunpack.c.l.b16 %v385
        %v1881 = vunpack.c.h.b16 %v385
        %v1882 = vunpack.c.l.b16 %v386
        %v1883 = vunpack.c.h.b16 %v386
        %v1884 = vunpack.c.l.b16 %v387
        %v1885 = vunpack.c.h.b16 %v387
        %v1886 = vunpack.c.l.b16 %v388
        %v1887 = vunpack.c.h.b16 %v388
        %v1888 = vunpack.c.l.b16 %v389
        %v1889 = vunpack.c.h.b16 %v389
        %v1890 = vunpack.c.l.b16 %v390
        %v1891 = vunpack.c.h.b16 %v390
        %v1892 = vunpack.c.l.b16 %v391
        %v1893 = vunpack.c.h.b16 %v391
        %v1894 = vunpack.c.l.b16 %v392
        %v1895 = vunpack.c.h.b16 %v392
        %v1896 = vunpack.c.l.b16 %v393
        %v1897 = vunpack.c.h.b16 %v393
        %v1898 = vunpack.c.l.b16 %v394
        %v1899 = vunpack.c.h.b16 %v394
        %v1900 = vunpack.c.l.b16 %v395
        %v1901 = vunpack.c.h.b16 %v395
        %v1902 = vunpack.c.l.b16 %v396
        %v1903 = vunpack.c.h.b16 %v396
        %v1904 = vunpack.c.l.b16 %v397
        %v1905 = vunpack.c.h.b16 %v397
        %v1906 = vunpack.c.l.b16 %v398
        %v1907 = vunpack.c.h.b16 %v398
        %v1908 = vunpack.c.l.b16 %v399
        %v1909 = vunpack.c.h.b16 %v399
        %v1910 = vunpack.c.l.b16 %v400
        %v1911 = vunpack.c.h.b16 %v400
        %v1912 = vunpack.c.l.b16 %v401
        %v1913 = vunpack.c.h.b16 %v401
        %v1914 = vunpack.c.l.b16 %v402
        %v1915 = vunpack.c.h.b16 %v402
        %v1916 = vunpack.c.l.b16 %v403
        %v1917 = vunpack.c.h.b16 %v403
        %v1918 = vunpack.c.l.b16 %v404
        %v1919 = vunpack.c.h.b16 %v404
        %v1920 = vunpack.c.l.b16 %v405
        %v1921 = vunpack.c.h.b16 %v405
        %v1922 = vunpack.c.l.b16 %v406
        %v1923 = vunpack.c.h.b16 %v406
        %v1924 = vunpack.c.l.b16 %v407
        %v1925 = vunpack.c.h.b16 %v407
        %v1926 = vunpack.c.l.b16 %v408
        %v1927 = vunpack.c.h.b16 %v408
        %v1928 = vunpack.c.l.b16 %v409
        %v1929 = vunpack.c.h.b16 %v409
        %v1930 = vunpack.c.l.b16 %v410
        %v1931 = vunpack.c.h.b16 %v410
        %v1932 = vunpack.c.l.b16 %v411
        %v1933 = vunpack.c.h.b16 %v411
        %v1934 = vunpack.c.l.b16 %v412
        %v1935 = vunpack.c.h.b16 %v412
        %v1936 = vunpack.c.l.b16 %v413
        %v1937 = vunpack.c.h.b16 %v413
        %v1938 = vunpack.c.l.b16 %v414
        %v1939 = vunpack.c.h.b16 %v414
        %v1940 = vunpack.c.l.b16 %v415
        %v1941 = vunpack.c.h.b16 %v415
        %v1942 = vunpack.c.l.b16 %v416
        %v1943 = vunpack.c.h.b16 %v416
        %v1944 = vunpack.c.l.b16 %v417
        %v1945 = vunpack.c.h.b16 %v417
        %v1946 = vunpack.c.l.b16 %v418
        %v1947 = vunpack.c.h.b16 %v418
        %v1948 = vunpack.c.l.b16 %v419
        %v1949 = vunpack.c.h.b16 %v419
        %v1950 = vunpack.c.l.b16 %v420
        %v1951 = vunpack.c.h.b16 %v420
        %v1952 = vunpack.c.l.b16 %v421
        %v1953 = vunpack.c.h.b16 %v421
        %v1954 = vunpack.c.l.b16 %v422
        %v1955 = vunpack.c.h.b16 %v422
        %v1956 = vunpack.c.l.b16 %v423
        %v1957 = vunpack.c.h.b16 %v423
        %v1958 = vunpack.c.l.b16 %v424
        %v1959 = vunpack.c.h.b16 %v424
        %v1960 = vunpack.c.l.b16 %v425
        %v1961 = vunpack.c.h.b16 %v425
        %v1962 = vunpack.c.l.b16 %v426
        %v1963 = vunpack.c.h.b16 %v426
        %v1964 = vunpack.c.l.b16 %v427
        %v1965 = vunpack.c.h.b16 %v427
        %v1966 = vunpack.c.l.b16 %v428
        %v1967 = vunpack.c.h.b16 %v428
        %v1968 = vunpack.c.l.b16 %v429
        %v1969 = vunpack.c.h.b16 %v429
        %v1970 = vunpack.c.l.b16 %v430
        %v1971 = vunpack.c.h.b16 %v430
        %v1972 = vunpack.c.l.b16 %v431
        %v1973 = vunpack.c.h.b16 %v431
        %v1974 = vunpack.c.l.b16 %v432
        %v1975 = vunpack.c.h.b16 %v432
        %v1976 = vunpack.c.l.b16 %v433
        %v1977 = vunpack.c.h.b16 %v433
        %v1978 = vunpack.c.l.b16 %v434
        %v1979 = vunpack.c.h.b16 %v434
        %v1980 = vunpack.c.l.b16 %v435
        %v1981 = vunpack.c.h.b16 %v435
        %v1982 = vunpack.c.l.b16 %v436
        %v1983 = vunpack.c.h.b16 %v436
        %v1984 = vunpack.c.l.b16 %v437
        %v1985 = vunpack.c.h.b16 %v437
        %v1986 = vunpack.c.l.b16 %v438
        %v1987 = vunpack.c.h.b16 %v438
        %v1988 = vunpack.c.l.b16 %v439
        %v1989 = vunpack.c.h.b16 %v439
        %v1990 = vunpack.c.l.b16 %v440
        %v1991 = vunpack.c.h.b16 %v440
        %v1992 = vunpack.c.l.b16 %v441
        %v1993 = vunpack.c.h.b16 %v441
        %v1994 = vunpack.c.l.b16 %v442
        %v1995 = vunpack.c.h.b16 %v442
        %v1996 = vunpack.c.l.b16 %v443
        %v1997 = vunpack.c.h.b16 %v443
        %v1998 = vunpack.c.l.b16 %v444
        %v1999 = vunpack.c.h.b16 %v444
        %v2000 = vunpack.c.l.b16 %v445
        %v2001 = vunpack.c.h.b16 %v445
        %v2002 = vunpack.c.l.b16 %v446
        %v2003 = vunpack.c.h.b16 %v446
        %v2004 = vunpack.c.l.b16 %v447
        %v2005 = vunpack.c.h.b16 %v447
        %v2006 = vunpack.c.l.b16 %v448
        %v2007 = vunpack.c.h.b16 %v448
        %v2008 = vunpack.c.l.b16 %v449
        %v2009 = vunpack.c.h.b16 %v449
        %v2010 = vunpack.c.l.b16 %v450
        %v2011 = vunpack.c.h.b16 %v450
        %v2012 = vunpack.c.l.b16 %v451
        %v2013 = vunpack.c.h.b16 %v451
        %v2014 = vunpack.c.l.b16 %v452
        %v2015 = vunpack.c.h.b16 %v452
        %v2016 = vunpack.c.l.b16 %v453
        %v2017 = vunpack.c.h.b16 %v453
        %v2018 = vunpack.c.l.b16 %v454
        %v2019 = vunpack.c.h.b16 %v454
        %v2020 = vunpack.c.l.b16 %v455
        %v2021 = vunpack.c.h.b16 %v455
        %v2022 = vunpack.c.l.b16 %v456
        %v2023 = vunpack.c.h.b16 %v456
        %v2024 = vpack.c.b16 %v1772, %v1768
        %v2025 = vpack.c.b16 %v1773, %v1769
        %v2026 = vpack.c.b16 %v1774, %v1770
        %v2027 = vpack.c.b16 %v1775, %v1771
        %v2028 = vpack.c.b16 %v1780, %v1776
        %v2029 = vpack.c.b16 %v1781, %v1777
        %v2030 = vpack.c.b16 %v1782, %v1778
        %v2031 = vpack.c.b16 %v1783, %v1779
        %v2032 = vpack.c.b16 %v1788, %v1784
        %v2033 = vpack.c.b16 %v1789, %v1785
        %v2034 = vpack.c.b16 %v1790, %v1786
        %v2035 = vpack.c.b16 %v1791, %v1787
        %v2036 = vpack.c.b16 %v1796, %v1792
        %v2037 = vpack.c.b16 %v1797, %v1793
        %v2038 = vpack.c.b16 %v1798, %v1794
        %v2039 = vpack.c.b16 %v1799, %v1795
        %v2040 = vpack.c.b16 %v1804, %v1800
        %v2041 = vpack.c.b16 %v1805, %v1801
        %v2042 = vpack.c.b16 %v1806, %v1802
        %v2043 = vpack.c.b16 %v1807, %v1803
        %v2044 = vpack.c.b16 %v1812, %v1808
        %v2045 = vpack.c.b16 %v1813, %v1809
        %v2046 = vpack.c.b16 %v1814, %v1810
        %v2047 = vpack.c.b16 %v1815, %v1811
        %v2048 = vpack.c.b16 %v1820, %v1816
        %v2049 = vpack.c.b16 %v1821, %v1817
        %v2050 = vpack.c.b16 %v1822, %v1818
        %v2051 = vpack.c.b16 %v1823, %v1819
        %v2052 = vpack.c.b16 %v1828, %v1824
        %v2053 = vpack.c.b16 %v1829, %v1825
        %v2054 = vpack.c.b16 %v1830, %v1826
        %v2055 = vpack.c.b16 %v1831, %v1827
        %v2056 = vpack.c.b16 %v1836, %v1832
        %v2057 = vpack.c.b16 %v1837, %v1833
        %v2058 = vpack.c.b16 %v1838, %v1834
        %v2059 = vpack.c.b16 %v1839, %v1835
        %v2060 = vpack.c.b16 %v1844, %v1840
        %v2061 = vpack.c.b16 %v1845, %v1841
        %v2062 = vpack.c.b16 %v1846, %v1842
        %v2063 = vpack.c.b16 %v1847, %v1843
        %v2064 = vpack.c.b16 %v1852, %v1848
        %v2065 = vpack.c.b16 %v1853, %v1849
        %v2066 = vpack.c.b16 %v1854, %v1850
        %v2067 = vpack.c.b16 %v1855, %v1851
        %v2068 = vpack.c.b16 %v1860, %v1856
        %v2069 = vpack.c.b16 %v1861, %v1857
        %v2070 = vpack.c.b16 %v1862, %v1858
        %v2071 = vpack.c.b16 %v1863, %v1859
        %v2072 = vpack.c.b16 %v1868, %v1864
        %v2073 = vpack.c.b16 %v1869, %v1865
        %v2074 = vpack.c.b16 %v1870, %v1866
        %v2075 = vpack.c.b16 %v1871, %v1867
        %v2076 = vpack.c.b16 %v1876, %v1872
        %v2077 = vpack.c.b16 %v1877, %v1873
        %v2078 = vpack.c.b16 %v1878, %v1874
        %v2079 = vpack.c.b16 %v1879, %v1875
        %v2080 = vpack.c.b16 %v1884, %v1880
        %v2081 = vpack.c.b16 %v1885, %v1881
        %v2082 = vpack.c.b16 %v1886, %v1882
        %v2083 = vpack.c.b16 %v1887, %v1883
        %v2084 = vpack.c.b16 %v1892, %v1888
        %v2085 = vpack.c.b16 %v1893, %v1889
        %v2086 = vpack.c.b16 %v1894, %v1890
        %v2087 = vpack.c.b16 %v1895, %v1891
        %v2088 = vpack.c.b16 %v1900, %v1896
        %v2089 = vpack.c.b16 %v1901, %v1897
        %v2090 = vpack.c.b16 %v1902, %v1898
        %v2091 = vpack.c.b16 %v1903, %v1899
        %v2092 = vpack.c.b16 %v1908, %v1904
        %v2093 = vpack.c.b16 %v1909, %v1905
        %v2094 = vpack.c.b16 %v1910, %v1906
        %v2095 = vpack.c.b16 %v1911, %v1907
        %v2096 = vpack.c.b16 %v1916, %v1912
        %v2097 = vpack.c.b16 %v1917, %v1913
        %v2098 = vpack.c.b16 %v1918, %v1914
        %v2099 = vpack.c.b16 %v1919, %v1915
        %v2100 = vpack.c.b16 %v1924, %v1920
        %v2101 = vpack.c.b16 %v1925, %v1921
        %v2102 = vpack.c.b16 %v1926, %v1922
        %v2103 = vpack.c.b16 %v1927, %v1923
        %v2104 = vpack.c.b16 %v1932, %v1928
        %v2105 = vpack.c.b16 %v1933, %v1929
        %v2106 = vpack.c.b16 %v1934, %v1930
        %v2107 = vpack.c.b16 %v1935, %v1931
        %v2108 = vpack.c.b16 %v1940, %v1936
        %v2109 = vpack.c.b16 %v1941, %v1937
        %v2110 = vpack.c.b16 %v1942, %v1938
        %v2111 = vpack.c.b16 %v1943, %v1939
        %v2112 = vpack.c.b16 %v1948, %v1944
        %v2113 = vpack.c.b16 %v1949, %v1945
        %v2114 = vpack.c.b16 %v1950, %v1946
        %v2115 = vpack.c.b16 %v1951, %v1947
        %v2116 = vpack.c.b16 %v1956, %v1952
        %v2117 = vpack.c.b16 %v1957, %v1953
        %v2118 = vpack.c.b16 %v1958, %v1954
        %v2119 = vpack.c.b16 %v1959, %v1955
        %v2120 = vpack.c.b16 %v1964, %v1960
        %v2121 = vpack.c.b16 %v1965, %v1961
        %v2122 = vpack.c.b16 %v1966, %v1962
        %v2123 = vpack.c.b16 %v1967, %v1963
        %v2124 = vpack.c.b16 %v1972, %v1968
        %v2125 = vpack.c.b16 %v1973, %v1969
        %v2126 = vpack.c.b16 %v1974, %v1970
        %v2127 = vpack.c.b16 %v1975, %v1971
        %v2128 = vpack.c.b16 %v1980, %v1976
        %v2129 = vpack.c.b16 %v1981, %v1977
        %v2130 = vpack.c.b16 %v1982, %v1978
        %v2131 = vpack.c.b16 %v1983, %v1979
        %v2132 = vpack.c.b16 %v1988, %v1984
        %v2133 = vpack.c.b16 %v1989, %v1985
        %v2134 = vpack.c.b16 %v1990, %v1986
        %v2135 = vpack.c.b16 %v1991, %v1987
        %v2136 = vpack.c.b16 %v1996, %v1992
        %v2137 = vpack.c.b16 %v1997, %v1993
        %v2138 = vpack.c.b16 %v1998, %v1994
        %v2139 = vpack.c.b16 %v1999, %v1995
        %v2140 = vpack.c.b16 %v2004, %v2000
        %v2141 = vpack.c.b16 %v2005, %v2001
        %v2142 = vpack.c.b16 %v2006, %v2002
        %v2143 = vpack.c.b16 %v2007, %v2003
        %v2144 = vpack.c.b16 %v2012, %v2008
        %v2145 = vpack.c.b16 %v2013, %v2009
        %v2146 = vpack.c.b16 %v2014, %v2010
        %v2147 = vpack.c.b16 %v2015, %v2011
        %v2148 = vpack.c.b16 %v2020, %v2016
        %v2149 = vpack.c.b16 %v2021, %v2017
        %v2150 = vpack.c.b16 %v2022, %v2018
        %v2151 = vpack.c.b16 %v2023, %v2019
        %2280 = vmatprep.subr.bf16.mxu0 %v2025
        %2281 = vmatpush1.bf16.msra.mxu0 %v2024
        %2282 = vmatprep.subr.bf16.mxu0 %v2029
        %2283 = vmatpush1.bf16.msra.mxu0 %v2028
        %2284 = vmatprep.subr.bf16.mxu0 %v2033
        %2285 = vmatpush1.bf16.msra.mxu0 %v2032
        %2286 = vmatprep.subr.bf16.mxu0 %v2037
        %2287 = vmatpush1.bf16.msra.mxu0 %v2036
        %2288 = vmatprep.subr.bf16.mxu0 %v2041
        %2289 = vmatpush1.bf16.msra.mxu0 %v2040
        %2290 = vmatprep.subr.bf16.mxu0 %v2045
        %2291 = vmatpush1.bf16.msra.mxu0 %v2044
        %2292 = vmatprep.subr.bf16.mxu0 %v2049
        %2293 = vmatpush1.bf16.msra.mxu0 %v2048
        %2294 = vmatprep.subr.bf16.mxu0 %v2053
        %2295 = vmatpush1.bf16.msra.mxu0 %v2052
        %2296 = vmatprep.subr.bf16.mxu0 %v2057
        %2297 = vmatpush1.bf16.msra.mxu0 %v2056
        %2298 = vmatprep.subr.bf16.mxu0 %v2061
        %2299 = vmatpush1.bf16.msra.mxu0 %v2060
        %2300 = vmatprep.subr.bf16.mxu0 %v2065
        %2301 = vmatpush1.bf16.msra.mxu0 %v2064
        %2302 = vmatprep.subr.bf16.mxu0 %v2069
        %2303 = vmatpush1.bf16.msra.mxu0 %v2068
        %2304 = vmatprep.subr.bf16.mxu0 %v2073
        %2305 = vmatpush1.bf16.msra.mxu0 %v2072
        %2306 = vmatprep.subr.bf16.mxu0 %v2077
        %2307 = vmatpush1.bf16.msra.mxu0 %v2076
        %2308 = vmatprep.subr.bf16.mxu0 %v2081
        %2309 = vmatpush1.bf16.msra.mxu0 %v2080
        %2310 = vmatprep.subr.bf16.mxu0 %v2085
        %2311 = vmatpush1.bf16.msra.mxu0 %v2084
        %2312 = vmatprep.mubr.bf16.mxu0 %v1609
        %2313 = vmatmul.mubr.bf16.gmra.mrb[0].mxu0 %v1608
        %v2314 = vpop.f32.mrb[0].mxu0
        %v2315 = vadd.f32 0.0, %v2314
        %v2316 = vpop.f32.mrb[0].mxu0
        %v2317 = vadd.f32 0.0, %v2316
        %v2318 = vpop.f32.mrb[0].mxu0
        %v2319 = vadd.f32 0.0, %v2318
        %v2320 = vpop.f32.mrb[0].mxu0
        %v2321 = vadd.f32 0.0, %v2320
        %2322 = vmatprep.mubr.bf16.mxu0 %v1613
        %2323 = vmatmul.mubr.bf16.gmra.mrb[0].mxu0 %v1612
        %v2324 = vpop.f32.mrb[0].mxu0
        %v2325 = vadd.f32 0.0, %v2324
        %v2326 = vpop.f32.mrb[0].mxu0
        %v2327 = vadd.f32 0.0, %v2326
        %v2328 = vpop.f32.mrb[0].mxu0
        %v2329 = vadd.f32 0.0, %v2328
        %v2330 = vpop.f32.mrb[0].mxu0
        %v2331 = vadd.f32 0.0, %v2330
        %2332 = vmatprep.mubr.bf16.mxu0 %v1617
        %2333 = vmatmul.mubr.bf16.gmra.mrb[0].mxu0 %v1616
        %v2334 = vpop.f32.mrb[0].mxu0
        %v2335 = vadd.f32 0.0, %v2334
        %v2336 = vpop.f32.mrb[0].mxu0
        %v2337 = vadd.f32 0.0, %v2336
        %v2338 = vpop.f32.mrb[0].mxu0
        %v2339 = vadd.f32 0.0, %v2338
        %v2340 = vpop.f32.mrb[0].mxu0
        %v2341 = vadd.f32 0.0, %v2340
        %2342 = vmatprep.mubr.bf16.mxu0 %v1621
        %2343 = vmatmul.mubr.bf16.gmra.mrb[0].mxu0 %v1620
        %v2344 = vpop.f32.mrb[0].mxu0
        %v2345 = vadd.f32 0.0, %v2344
        %v2346 = vpop.f32.mrb[0].mxu0
        %v2347 = vadd.f32 0.0, %v2346
        %v2348 = vpop.f32.mrb[0].mxu0
        %v2349 = vadd.f32 0.0, %v2348
        %v2350 = vpop.f32.mrb[0].mxu0
        %v2351 = vadd.f32 0.0, %v2350
        %2352 = vmatprep.mubr.bf16.mxu0 %v1625
        %2353 = vmatmul.mubr.bf16.gmra.mrb[0].mxu0 %v1624
        %v2354 = vpop.f32.mrb[0].mxu0
        %v2355 = vadd.f32 0.0, %v2354
        %v2356 = vpop.f32.mrb[0].mxu0
        %v2357 = vadd.f32 0.0, %v2356
        %v2358 = vpop.f32.mrb[0].mxu0
        %v2359 = vadd.f32 0.0, %v2358
        %v2360 = vpop.f32.mrb[0].mxu0
        %v2361 = vadd.f32 0.0, %v2360
        %2362 = vmatprep.mubr.bf16.mxu0 %v1629
        %2363 = vmatmul.mubr.bf16.gmra.mrb[0].mxu0 %v1628
        %v2364 = vpop.f32.mrb[0].mxu0
        %v2365 = vadd.f32 0.0, %v2364
        %v2366 = vpop.f32.mrb[0].mxu0
        %v2367 = vadd.f32 0.0, %v2366
        %v2368 = vpop.f32.mrb[0].mxu0
        %v2369 = vadd.f32 0.0, %v2368
        %v2370 = vpop.f32.mrb[0].mxu0
        %v2371 = vadd.f32 0.0, %v2370
        %2372 = vmatprep.mubr.bf16.mxu0 %v1633
        %2373 = vmatmul.mubr.bf16.gmra.mrb[0].mxu0 %v1632
        %v2374 = vpop.f32.mrb[0].mxu0
        %v2375 = vadd.f32 0.0, %v2374
        %v2376 = vpop.f32.mrb[0].mxu0
        %v2377 = vadd.f32 0.0, %v2376
        %v2378 = vpop.f32.mrb[0].mxu0
        %v2379 = vadd.f32 0.0, %v2378
        %v2380 = vpop.f32.mrb[0].mxu0
        %v2381 = vadd.f32 0.0, %v2380
        %2382 = vmatprep.mubr.bf16.mxu0 %v1637
        %2383 = vmatmul.mubr.bf16.gmra.mrb[0].mxu0 %v1636
        %v2384 = vpop.f32.mrb[0].mxu0
        %v2385 = vadd.f32 0.0, %v2384
        %v2386 = vpop.f32.mrb[0].mxu0
        %v2387 = vadd.f32 0.0, %v2386
        %v2388 = vpop.f32.mrb[0].mxu0
        %v2389 = vadd.f32 0.0, %v2388
        %v2390 = vpop.f32.mrb[0].mxu0
        %v2391 = vadd.f32 0.0, %v2390
        %2392 = vdwg.mxu0
        %2393 = vmatprep.subr.bf16.mxu0 %v2089
        %2394 = vmatpush1.bf16.msra.mxu0 %v2088
        %2395 = vmatprep.subr.bf16.mxu0 %v2093
        %2396 = vmatpush1.bf16.msra.mxu0 %v2092
        %2397 = vmatprep.subr.bf16.mxu0 %v2097
        %2398 = vmatpush1.bf16.msra.mxu0 %v2096
        %2399 = vmatprep.subr.bf16.mxu0 %v2101
        %2400 = vmatpush1.bf16.msra.mxu0 %v2100
        %2401 = vmatprep.subr.bf16.mxu0 %v2105
        %2402 = vmatpush1.bf16.msra.mxu0 %v2104
        %2403 = vmatprep.subr.bf16.mxu0 %v2109
        %2404 = vmatpush1.bf16.msra.mxu0 %v2108
        %2405 = vmatprep.subr.bf16.mxu0 %v2113
        %2406 = vmatpush1.bf16.msra.mxu0 %v2112
        %2407 = vmatprep.subr.bf16.mxu0 %v2117
        %2408 = vmatpush1.bf16.msra.mxu0 %v2116
        %2409 = vmatprep.subr.bf16.mxu0 %v2121
        %2410 = vmatpush1.bf16.msra.mxu0 %v2120
        %2411 = vmatprep.subr.bf16.mxu0 %v2125
        %2412 = vmatpush1.bf16.msra.mxu0 %v2124
        %2413 = vmatprep.subr.bf16.mxu0 %v2129
        %2414 = vmatpush1.bf16.msra.mxu0 %v2128
        %2415 = vmatprep.subr.bf16.mxu0 %v2133
        %2416 = vmatpush1.bf16.msra.mxu0 %v2132
        %2417 = vmatprep.subr.bf16.mxu0 %v2137
        %2418 = vmatpush1.bf16.msra.mxu0 %v2136
        %2419 = vmatprep.subr.bf16.mxu0 %v2141
        %2420 = vmatpush1.bf16.msra.mxu0 %v2140
        %2421 = vmatprep.subr.bf16.mxu0 %v2145
        %2422 = vmatpush1.bf16.msra.mxu0 %v2144
        %2423 = vmatprep.subr.bf16.mxu0 %v2149
        %2424 = vmatpush1.bf16.msra.mxu0 %v2148
        %2425 = vmatprep.mubr.bf16.mxu0 %v1611
        %2426 = vmatmul.mubr.bf16.gmra.mrb[0].mxu0 %v1610
        %v2427 = vpop.f32.mrb[0].mxu0
        %v2428 = vadd.f32 %v2315, %v2427
        %v2429 = vpop.f32.mrb[0].mxu0
        %v2430 = vadd.f32 %v2317, %v2429
        %v2431 = vpop.f32.mrb[0].mxu0
        %v2432 = vadd.f32 %v2319, %v2431
        %v2433 = vpop.f32.mrb[0].mxu0
        %v2434 = vadd.f32 %v2321, %v2433
        %2435 = vmatprep.mubr.bf16.mxu0 %v1615
        %2436 = vmatmul.mubr.bf16.gmra.mrb[0].mxu0 %v1614
        %v2437 = vpop.f32.mrb[0].mxu0
        %v2438 = vadd.f32 %v2325, %v2437
        %v2439 = vpop.f32.mrb[0].mxu0
        %v2440 = vadd.f32 %v2327, %v2439
        %v2441 = vpop.f32.mrb[0].mxu0
        %v2442 = vadd.f32 %v2329, %v2441
        %v2443 = vpop.f32.mrb[0].mxu0
        %v2444 = vadd.f32 %v2331, %v2443
        %2445 = vmatprep.mubr.bf16.mxu0 %v1619
        %2446 = vmatmul.mubr.bf16.gmra.mrb[0].mxu0 %v1618
        %v2447 = vpop.f32.mrb[0].mxu0
        %v2448 = vadd.f32 %v2335, %v2447
        %v2449 = vpop.f32.mrb[0].mxu0
        %v2450 = vadd.f32 %v2337, %v2449
        %v2451 = vpop.f32.mrb[0].mxu0
        %v2452 = vadd.f32 %v2339, %v2451
        %v2453 = vpop.f32.mrb[0].mxu0
        %v2454 = vadd.f32 %v2341, %v2453
        %2455 = vmatprep.mubr.bf16.mxu0 %v1623
        %2456 = vmatmul.mubr.bf16.gmra.mrb[0].mxu0 %v1622
        %v2457 = vpop.f32.mrb[0].mxu0
        %v2458 = vadd.f32 %v2345, %v2457
        %v2459 = vpop.f32.mrb[0].mxu0
        %v2460 = vadd.f32 %v2347, %v2459
        %v2461 = vpop.f32.mrb[0].mxu0
        %v2462 = vadd.f32 %v2349, %v2461
        %v2463 = vpop.f32.mrb[0].mxu0
        %v2464 = vadd.f32 %v2351, %v2463
        %2465 = vmatprep.mubr.bf16.mxu0 %v1627
        %2466 = vmatmul.mubr.bf16.gmra.mrb[0].mxu0 %v1626
        %v2467 = vpop.f32.mrb[0].mxu0
        %v2468 = vadd.f32 %v2355, %v2467
        %v2469 = vpop.f32.mrb[0].mxu0
        %v2470 = vadd.f32 %v2357, %v2469
        %v2471 = vpop.f32.mrb[0].mxu0
        %v2472 = vadd.f32 %v2359, %v2471
        %v2473 = vpop.f32.mrb[0].mxu0
        %v2474 = vadd.f32 %v2361, %v2473
        %2475 = vmatprep.mubr.bf16.mxu0 %v1631
        %2476 = vmatmul.mubr.bf16.gmra.mrb[0].mxu0 %v1630
        %v2477 = vpop.f32.mrb[0].mxu0
        %v2478 = vadd.f32 %v2365, %v2477
        %v2479 = vpop.f32.mrb[0].mxu0
        %v2480 = vadd.f32 %v2367, %v2479
        %v2481 = vpop.f32.mrb[0].mxu0
        %v2482 = vadd.f32 %v2369, %v2481
        %v2483 = vpop.f32.mrb[0].mxu0
        %v2484 = vadd.f32 %v2371, %v2483
        %2485 = vmatprep.mubr.bf16.mxu0 %v1635
        %2486 = vmatmul.mubr.bf16.gmra.mrb[0].mxu0 %v1634
        %v2487 = vpop.f32.mrb[0].mxu0
        %v2488 = vadd.f32 %v2375, %v2487
        %v2489 = vpop.f32.mrb[0].mxu0
        %v2490 = vadd.f32 %v2377, %v2489
        %v2491 = vpop.f32.mrb[0].mxu0
        %v2492 = vadd.f32 %v2379, %v2491
        %v2493 = vpop.f32.mrb[0].mxu0
        %v2494 = vadd.f32 %v2381, %v2493
        %2495 = vmatprep.mubr.bf16.mxu0 %v1639
        %2496 = vmatmul.mubr.bf16.gmra.mrb[0].mxu0 %v1638
        %v2497 = vpop.f32.mrb[0].mxu0
        %v2498 = vadd.f32 %v2385, %v2497
        %v2499 = vpop.f32.mrb[0].mxu0
        %v2500 = vadd.f32 %v2387, %v2499
        %v2501 = vpop.f32.mrb[0].mxu0
        %v2502 = vadd.f32 %v2389, %v2501
        %v2503 = vpop.f32.mrb[0].mxu0
        %v2504 = vadd.f32 %v2391, %v2503
        %2505 = vdwg.mxu0
        %2506 = vmatprep.subr.bf16.mxu0 %v2027
        %2507 = vmatpush1.bf16.msra.mxu0 %v2026
        %2508 = vmatprep.subr.bf16.mxu0 %v2031
        %2509 = vmatpush1.bf16.msra.mxu0 %v2030
        %2510 = vmatprep.subr.bf16.mxu0 %v2035
        %2511 = vmatpush1.bf16.msra.mxu0 %v2034
        %2512 = vmatprep.subr.bf16.mxu0 %v2039
        %2513 = vmatpush1.bf16.msra.mxu0 %v2038
        %2514 = vmatprep.subr.bf16.mxu0 %v2043
        %2515 = vmatpush1.bf16.msra.mxu0 %v2042
        %2516 = vmatprep.subr.bf16.mxu0 %v2047
        %2517 = vmatpush1.bf16.msra.mxu0 %v2046
        %2518 = vmatprep.subr.bf16.mxu0 %v2051
        %2519 = vmatpush1.bf16.msra.mxu0 %v2050
        %2520 = vmatprep.subr.bf16.mxu0 %v2055
        %2521 = vmatpush1.bf16.msra.mxu0 %v2054
        %2522 = vmatprep.subr.bf16.mxu0 %v2059
        %2523 = vmatpush1.bf16.msra.mxu0 %v2058
        %2524 = vmatprep.subr.bf16.mxu0 %v2063
        %2525 = vmatpush1.bf16.msra.mxu0 %v2062
        %2526 = vmatprep.subr.bf16.mxu0 %v2067
        %2527 = vmatpush1.bf16.msra.mxu0 %v2066
        %2528 = vmatprep.subr.bf16.mxu0 %v2071
        %2529 = vmatpush1.bf16.msra.mxu0 %v2070
        %2530 = vmatprep.subr.bf16.mxu0 %v2075
        %2531 = vmatpush1.bf16.msra.mxu0 %v2074
        %2532 = vmatprep.subr.bf16.mxu0 %v2079
        %2533 = vmatpush1.bf16.msra.mxu0 %v2078
        %2534 = vmatprep.subr.bf16.mxu0 %v2083
        %2535 = vmatpush1.bf16.msra.mxu0 %v2082
        %2536 = vmatprep.subr.bf16.mxu0 %v2087
        %2537 = vmatpush1.bf16.msra.mxu0 %v2086
        %2538 = vmatprep.mubr.bf16.mxu0 %v1609
        %2539 = vmatmul.mubr.bf16.gmra.mrb[0].mxu0 %v1608
        %v2540 = vpop.f32.mrb[0].mxu0
        %v2541 = vadd.f32 0.0, %v2540
        %v2542 = vpop.f32.mrb[0].mxu0
        %v2543 = vadd.f32 0.0, %v2542
        %v2544 = vpop.f32.mrb[0].mxu0
        %v2545 = vadd.f32 0.0, %v2544
        %v2546 = vpop.f32.mrb[0].mxu0
        %v2547 = vadd.f32 0.0, %v2546
        %2548 = vmatprep.mubr.bf16.mxu0 %v1613
        %2549 = vmatmul.mubr.bf16.gmra.mrb[0].mxu0 %v1612
        %v2550 = vpop.f32.mrb[0].mxu0
        %v2551 = vadd.f32 0.0, %v2550
        %v2552 = vpop.f32.mrb[0].mxu0
        %v2553 = vadd.f32 0.0, %v2552
        %v2554 = vpop.f32.mrb[0].mxu0
        %v2555 = vadd.f32 0.0, %v2554
        %v2556 = vpop.f32.mrb[0].mxu0
        %v2557 = vadd.f32 0.0, %v2556
        %2558 = vmatprep.mubr.bf16.mxu0 %v1617
        %2559 = vmatmul.mubr.bf16.gmra.mrb[0].mxu0 %v1616
        %v2560 = vpop.f32.mrb[0].mxu0
        %v2561 = vadd.f32 0.0, %v2560
        %v2562 = vpop.f32.mrb[0].mxu0
        %v2563 = vadd.f32 0.0, %v2562
        %v2564 = vpop.f32.mrb[0].mxu0
        %v2565 = vadd.f32 0.0, %v2564
        %v2566 = vpop.f32.mrb[0].mxu0
        %v2567 = vadd.f32 0.0, %v2566
        %2568 = vmatprep.mubr.bf16.mxu0 %v1621
        %2569 = vmatmul.mubr.bf16.gmra.mrb[0].mxu0 %v1620
        %v2570 = vpop.f32.mrb[0].mxu0
        %v2571 = vadd.f32 0.0, %v2570
        %v2572 = vpop.f32.mrb[0].mxu0
        %v2573 = vadd.f32 0.0, %v2572
        %v2574 = vpop.f32.mrb[0].mxu0
        %v2575 = vadd.f32 0.0, %v2574
        %v2576 = vpop.f32.mrb[0].mxu0
        %v2577 = vadd.f32 0.0, %v2576
        %2578 = vmatprep.mubr.bf16.mxu0 %v1625
        %2579 = vmatmul.mubr.bf16.gmra.mrb[0].mxu0 %v1624
        %v2580 = vpop.f32.mrb[0].mxu0
        %v2581 = vadd.f32 0.0, %v2580
        %v2582 = vpop.f32.mrb[0].mxu0
        %v2583 = vadd.f32 0.0, %v2582
        %v2584 = vpop.f32.mrb[0].mxu0
        %v2585 = vadd.f32 0.0, %v2584
        %v2586 = vpop.f32.mrb[0].mxu0
        %v2587 = vadd.f32 0.0, %v2586
        %2588 = vmatprep.mubr.bf16.mxu0 %v1629
        %2589 = vmatmul.mubr.bf16.gmra.mrb[0].mxu0 %v1628
        %v2590 = vpop.f32.mrb[0].mxu0
        %v2591 = vadd.f32 0.0, %v2590
        %v2592 = vpop.f32.mrb[0].mxu0
        %v2593 = vadd.f32 0.0, %v2592
        %v2594 = vpop.f32.mrb[0].mxu0
        %v2595 = vadd.f32 0.0, %v2594
        %v2596 = vpop.f32.mrb[0].mxu0
        %v2597 = vadd.f32 0.0, %v2596
        %2598 = vmatprep.mubr.bf16.mxu0 %v1633
        %2599 = vmatmul.mubr.bf16.gmra.mrb[0].mxu0 %v1632
        %v2600 = vpop.f32.mrb[0].mxu0
        %v2601 = vadd.f32 0.0, %v2600
        %v2602 = vpop.f32.mrb[0].mxu0
        %v2603 = vadd.f32 0.0, %v2602
        %v2604 = vpop.f32.mrb[0].mxu0
        %v2605 = vadd.f32 0.0, %v2604
        %v2606 = vpop.f32.mrb[0].mxu0
        %v2607 = vadd.f32 0.0, %v2606
        %2608 = vmatprep.mubr.bf16.mxu0 %v1637
        %2609 = vmatmul.mubr.bf16.gmra.mrb[0].mxu0 %v1636
        %v2610 = vpop.f32.mrb[0].mxu0
        %v2611 = vadd.f32 0.0, %v2610
        %v2612 = vpop.f32.mrb[0].mxu0
        %v2613 = vadd.f32 0.0, %v2612
        %v2614 = vpop.f32.mrb[0].mxu0
        %v2615 = vadd.f32 0.0, %v2614
        %v2616 = vpop.f32.mrb[0].mxu0
        %v2617 = vadd.f32 0.0, %v2616
        %2618 = vdwg.mxu0
        %2619 = vmatprep.subr.bf16.mxu0 %v2091
        %2620 = vmatpush1.bf16.msra.mxu0 %v2090
        %2621 = vmatprep.subr.bf16.mxu0 %v2095
        %2622 = vmatpush1.bf16.msra.mxu0 %v2094
        %2623 = vmatprep.subr.bf16.mxu0 %v2099
        %2624 = vmatpush1.bf16.msra.mxu0 %v2098
        %2625 = vmatprep.subr.bf16.mxu0 %v2103
        %2626 = vmatpush1.bf16.msra.mxu0 %v2102
        %2627 = vmatprep.subr.bf16.mxu0 %v2107
        %2628 = vmatpush1.bf16.msra.mxu0 %v2106
        %2629 = vmatprep.subr.bf16.mxu0 %v2111
        %2630 = vmatpush1.bf16.msra.mxu0 %v2110
        %2631 = vmatprep.subr.bf16.mxu0 %v2115
        %2632 = vmatpush1.bf16.msra.mxu0 %v2114
        %2633 = vmatprep.subr.bf16.mxu0 %v2119
        %2634 = vmatpush1.bf16.msra.mxu0 %v2118
        %2635 = vmatprep.subr.bf16.mxu0 %v2123
        %2636 = vmatpush1.bf16.msra.mxu0 %v2122
        %2637 = vmatprep.subr.bf16.mxu0 %v2127
        %2638 = vmatpush1.bf16.msra.mxu0 %v2126
        %2639 = vmatprep.subr.bf16.mxu0 %v2131
        %2640 = vmatpush1.bf16.msra.mxu0 %v2130
        %2641 = vmatprep.subr.bf16.mxu0 %v2135
        %2642 = vmatpush1.bf16.msra.mxu0 %v2134
        %2643 = vmatprep.subr.bf16.mxu0 %v2139
        %2644 = vmatpush1.bf16.msra.mxu0 %v2138
        %2645 = vmatprep.subr.bf16.mxu0 %v2143
        %2646 = vmatpush1.bf16.msra.mxu0 %v2142
        %2647 = vmatprep.subr.bf16.mxu0 %v2147
        %2648 = vmatpush1.bf16.msra.mxu0 %v2146
        %2649 = vmatprep.subr.bf16.mxu0 %v2151
        %2650 = vmatpush1.bf16.msra.mxu0 %v2150
        %2651 = vmatprep.mubr.bf16.mxu0 %v1611
        %2652 = vmatmul.mubr.bf16.gmra.mrb[0].mxu0 %v1610
        %v2653 = vpop.f32.mrb[0].mxu0
        %v2654 = vadd.f32 %v2541, %v2653
        %v2655 = vpop.f32.mrb[0].mxu0
        %v2656 = vadd.f32 %v2543, %v2655
        %v2657 = vpop.f32.mrb[0].mxu0
        %v2658 = vadd.f32 %v2545, %v2657
        %v2659 = vpop.f32.mrb[0].mxu0
        %v2660 = vadd.f32 %v2547, %v2659
        %2661 = vmatprep.mubr.bf16.mxu0 %v1615
        %2662 = vmatmul.mubr.bf16.gmra.mrb[0].mxu0 %v1614
        %v2663 = vpop.f32.mrb[0].mxu0
        %v2664 = vadd.f32 %v2551, %v2663
        %v2665 = vpop.f32.mrb[0].mxu0
        %v2666 = vadd.f32 %v2553, %v2665
        %v2667 = vpop.f32.mrb[0].mxu0
        %v2668 = vadd.f32 %v2555, %v2667
        %v2669 = vpop.f32.mrb[0].mxu0
        %v2670 = vadd.f32 %v2557, %v2669
        %2671 = vmatprep.mubr.bf16.mxu0 %v1619
        %2672 = vmatmul.mubr.bf16.gmra.mrb[0].mxu0 %v1618
        %v2673 = vpop.f32.mrb[0].mxu0
        %v2674 = vadd.f32 %v2561, %v2673
        %v2675 = vpop.f32.mrb[0].mxu0
        %v2676 = vadd.f32 %v2563, %v2675
        %v2677 = vpop.f32.mrb[0].mxu0
        %v2678 = vadd.f32 %v2565, %v2677
        %v2679 = vpop.f32.mrb[0].mxu0
        %v2680 = vadd.f32 %v2567, %v2679
        %2681 = vmatprep.mubr.bf16.mxu0 %v1623
        %2682 = vmatmul.mubr.bf16.gmra.mrb[0].mxu0 %v1622
        %v2683 = vpop.f32.mrb[0].mxu0
        %v2684 = vadd.f32 %v2571, %v2683
        %v2685 = vpop.f32.mrb[0].mxu0
        %v2686 = vadd.f32 %v2573, %v2685
        %v2687 = vpop.f32.mrb[0].mxu0
        %v2688 = vadd.f32 %v2575, %v2687
        %v2689 = vpop.f32.mrb[0].mxu0
        %v2690 = vadd.f32 %v2577, %v2689
        %2691 = vmatprep.mubr.bf16.mxu0 %v1627
        %2692 = vmatmul.mubr.bf16.gmra.mrb[0].mxu0 %v1626
        %v2693 = vpop.f32.mrb[0].mxu0
        %v2694 = vadd.f32 %v2581, %v2693
        %v2695 = vpop.f32.mrb[0].mxu0
        %v2696 = vadd.f32 %v2583, %v2695
        %v2697 = vpop.f32.mrb[0].mxu0
        %v2698 = vadd.f32 %v2585, %v2697
        %v2699 = vpop.f32.mrb[0].mxu0
        %v2700 = vadd.f32 %v2587, %v2699
        %2701 = vmatprep.mubr.bf16.mxu0 %v1631
        %2702 = vmatmul.mubr.bf16.gmra.mrb[0].mxu0 %v1630
        %v2703 = vpop.f32.mrb[0].mxu0
        %v2704 = vadd.f32 %v2591, %v2703
        %v2705 = vpop.f32.mrb[0].mxu0
        %v2706 = vadd.f32 %v2593, %v2705
        %v2707 = vpop.f32.mrb[0].mxu0
        %v2708 = vadd.f32 %v2595, %v2707
        %v2709 = vpop.f32.mrb[0].mxu0
        %v2710 = vadd.f32 %v2597, %v2709
        %2711 = vmatprep.mubr.bf16.mxu0 %v1635
        %2712 = vmatmul.mubr.bf16.gmra.mrb[0].mxu0 %v1634
        %v2713 = vpop.f32.mrb[0].mxu0
        %v2714 = vadd.f32 %v2601, %v2713
        %v2715 = vpop.f32.mrb[0].mxu0
        %v2716 = vadd.f32 %v2603, %v2715
        %v2717 = vpop.f32.mrb[0].mxu0
        %v2718 = vadd.f32 %v2605, %v2717
        %v2719 = vpop.f32.mrb[0].mxu0
        %v2720 = vadd.f32 %v2607, %v2719
        %2721 = vmatprep.mubr.bf16.mxu0 %v1639
        %2722 = vmatmul.mubr.bf16.gmra.mrb[0].mxu0 %v1638
        %v2723 = vpop.f32.mrb[0].mxu0
        %v2724 = vadd.f32 %v2611, %v2723
        %v2725 = vpop.f32.mrb[0].mxu0
        %v2726 = vadd.f32 %v2613, %v2725
        %v2727 = vpop.f32.mrb[0].mxu0
        %v2728 = vadd.f32 %v2615, %v2727
        %v2729 = vpop.f32.mrb[0].mxu0
        %v2730 = vadd.f32 %v2617, %v2729
        %2731 = vdwg.mxu0
        %v2732 = vadd.f32 %v2428, %v2432
        %v2733 = vadd.f32 %v2732, %v2438
        %v2734 = vadd.f32 %v2733, %v2442
        %v2735 = vadd.f32 %v2734, %v2448
        %v2736 = vadd.f32 %v2735, %v2452
        %v2737 = vadd.f32 %v2736, %v2458
        %v2738 = vadd.f32 %v2737, %v2462
        %v2739 = vadd.f32 %v2738, %v2468
        %v2740 = vadd.f32 %v2739, %v2472
        %v2741 = vadd.f32 %v2740, %v2478
        %v2742 = vadd.f32 %v2741, %v2482
        %v2743 = vadd.f32 %v2742, %v2488
        %v2744 = vadd.f32 %v2743, %v2492
        %v2745 = vadd.f32 %v2744, %v2498
        %v2746 = vadd.f32 %v2745, %v2502
        %v2747 = vrot.slane %v2746, 4
        %v2748 = vadd.f32 %v2746, %v2747
        %v2749 = vrot.slane %v2748, 2
        %v2750 = vadd.f32 %v2748, %v2749
        %v2751 = vrot.slane %v2750, 1
        %v2752 = vadd.f32 %v2750, %v2751
        %v2753 = vadd.f32 %v2430, %v2434
        %v2754 = vadd.f32 %v2753, %v2440
        %v2755 = vadd.f32 %v2754, %v2444
        %v2756 = vadd.f32 %v2755, %v2450
        %v2757 = vadd.f32 %v2756, %v2454
        %v2758 = vadd.f32 %v2757, %v2460
        %v2759 = vadd.f32 %v2758, %v2464
        %v2760 = vadd.f32 %v2759, %v2470
        %v2761 = vadd.f32 %v2760, %v2474
        %v2762 = vadd.f32 %v2761, %v2480
        %v2763 = vadd.f32 %v2762, %v2484
        %v2764 = vadd.f32 %v2763, %v2490
        %v2765 = vadd.f32 %v2764, %v2494
        %v2766 = vadd.f32 %v2765, %v2500
        %v2767 = vadd.f32 %v2766, %v2504
        %v2768 = vrot.slane %v2767, 4
        %v2769 = vadd.f32 %v2767, %v2768
        %v2770 = vrot.slane %v2769, 2
        %v2771 = vadd.f32 %v2769, %v2770
        %v2772 = vrot.slane %v2771, 1
        %v2773 = vadd.f32 %v2771, %v2772
        %v2774 = vadd.f32 %v2654, %v2658
        %v2775 = vadd.f32 %v2774, %v2664
        %v2776 = vadd.f32 %v2775, %v2668
        %v2777 = vadd.f32 %v2776, %v2674
        %v2778 = vadd.f32 %v2777, %v2678
        %v2779 = vadd.f32 %v2778, %v2684
        %v2780 = vadd.f32 %v2779, %v2688
        %v2781 = vadd.f32 %v2780, %v2694
        %v2782 = vadd.f32 %v2781, %v2698
        %v2783 = vadd.f32 %v2782, %v2704
        %v2784 = vadd.f32 %v2783, %v2708
        %v2785 = vadd.f32 %v2784, %v2714
        %v2786 = vadd.f32 %v2785, %v2718
        %v2787 = vadd.f32 %v2786, %v2724
        %v2788 = vadd.f32 %v2787, %v2728
        %v2789 = vrot.slane %v2788, 4
        %v2790 = vadd.f32 %v2788, %v2789
        %v2791 = vrot.slane %v2790, 2
        %v2792 = vadd.f32 %v2790, %v2791
        %v2793 = vrot.slane %v2792, 1
        %v2794 = vadd.f32 %v2792, %v2793
        %v2795 = vadd.f32 %v2656, %v2660
        %v2796 = vadd.f32 %v2795, %v2666
        %v2797 = vadd.f32 %v2796, %v2670
        %v2798 = vadd.f32 %v2797, %v2676
        %v2799 = vadd.f32 %v2798, %v2680
        %v2800 = vadd.f32 %v2799, %v2686
        %v2801 = vadd.f32 %v2800, %v2690
        %v2802 = vadd.f32 %v2801, %v2696
        %v2803 = vadd.f32 %v2802, %v2700
        %v2804 = vadd.f32 %v2803, %v2706
        %v2805 = vadd.f32 %v2804, %v2710
        %v2806 = vadd.f32 %v2805, %v2716
        %v2807 = vadd.f32 %v2806, %v2720
        %v2808 = vadd.f32 %v2807, %v2726
        %v2809 = vadd.f32 %v2808, %v2730
        %v2810 = vrot.slane %v2809, 4
        %v2811 = vadd.f32 %v2809, %v2810
        %v2812 = vrot.slane %v2811, 2
        %v2813 = vadd.f32 %v2811, %v2812
        %v2814 = vrot.slane %v2813, 1
        %v2815 = vadd.f32 %v2813, %v2814
        %v2816 = vmul.f32 %v2752, %v1131
        %v2817 = vmul.f32 %v2773, %v1131
        %v2818 = vmul.f32 %v2794, %v1131
        %v2819 = vmul.f32 %v2815, %v1131
        %v2820 = vsub.f32 %v2428, %v2816
        %v2821 = vsub.f32 %v2430, %v2817
        %v2822 = vsub.f32 %v2654, %v2818
        %v2823 = vsub.f32 %v2656, %v2819
        %v2824 = vsub.f32 %v2432, %v2816
        %v2825 = vsub.f32 %v2434, %v2817
        %v2826 = vsub.f32 %v2658, %v2818
        %v2827 = vsub.f32 %v2660, %v2819
        %v2828 = vsub.f32 %v2438, %v2816
        %v2829 = vsub.f32 %v2440, %v2817
        %v2830 = vsub.f32 %v2664, %v2818
        %v2831 = vsub.f32 %v2666, %v2819
        %v2832 = vsub.f32 %v2442, %v2816
        %v2833 = vsub.f32 %v2444, %v2817
        %v2834 = vsub.f32 %v2668, %v2818
        %v2835 = vsub.f32 %v2670, %v2819
        %v2836 = vsub.f32 %v2448, %v2816
        %v2837 = vsub.f32 %v2450, %v2817
        %v2838 = vsub.f32 %v2674, %v2818
        %v2839 = vsub.f32 %v2676, %v2819
        %v2840 = vsub.f32 %v2452, %v2816
        %v2841 = vsub.f32 %v2454, %v2817
        %v2842 = vsub.f32 %v2678, %v2818
        %v2843 = vsub.f32 %v2680, %v2819
        %v2844 = vsub.f32 %v2458, %v2816
        %v2845 = vsub.f32 %v2460, %v2817
        %v2846 = vsub.f32 %v2684, %v2818
        %v2847 = vsub.f32 %v2686, %v2819
        %v2848 = vsub.f32 %v2462, %v2816
        %v2849 = vsub.f32 %v2464, %v2817
        %v2850 = vsub.f32 %v2688, %v2818
        %v2851 = vsub.f32 %v2690, %v2819
        %v2852 = vsub.f32 %v2468, %v2816
        %v2853 = vsub.f32 %v2470, %v2817
        %v2854 = vsub.f32 %v2694, %v2818
        %v2855 = vsub.f32 %v2696, %v2819
        %v2856 = vsub.f32 %v2472, %v2816
        %v2857 = vsub.f32 %v2474, %v2817
        %v2858 = vsub.f32 %v2698, %v2818
        %v2859 = vsub.f32 %v2700, %v2819
        %v2860 = vsub.f32 %v2478, %v2816
        %v2861 = vsub.f32 %v2480, %v2817
        %v2862 = vsub.f32 %v2704, %v2818
        %v2863 = vsub.f32 %v2706, %v2819
        %v2864 = vsub.f32 %v2482, %v2816
        %v2865 = vsub.f32 %v2484, %v2817
        %v2866 = vsub.f32 %v2708, %v2818
        %v2867 = vsub.f32 %v2710, %v2819
        %v2868 = vsub.f32 %v2488, %v2816
        %v2869 = vsub.f32 %v2490, %v2817
        %v2870 = vsub.f32 %v2714, %v2818
        %v2871 = vsub.f32 %v2716, %v2819
        %v2872 = vsub.f32 %v2492, %v2816
        %v2873 = vsub.f32 %v2494, %v2817
        %v2874 = vsub.f32 %v2718, %v2818
        %v2875 = vsub.f32 %v2720, %v2819
        %v2876 = vsub.f32 %v2498, %v2816
        %v2877 = vsub.f32 %v2500, %v2817
        %v2878 = vsub.f32 %v2724, %v2818
        %v2879 = vsub.f32 %v2726, %v2819
        %v2880 = vsub.f32 %v2502, %v2816
        %v2881 = vsub.f32 %v2504, %v2817
        %v2882 = vsub.f32 %v2728, %v2818
        %v2883 = vsub.f32 %v2730, %v2819
        %v2884 = vmul.f32 %v2820, %v2820
        %v2885 = vmul.f32 %v2821, %v2821
        %v2886 = vmul.f32 %v2822, %v2822
        %v2887 = vmul.f32 %v2823, %v2823
        %v2888 = vmul.f32 %v2824, %v2824
        %v2889 = vmul.f32 %v2825, %v2825
        %v2890 = vmul.f32 %v2826, %v2826
        %v2891 = vmul.f32 %v2827, %v2827
        %v2892 = vmul.f32 %v2828, %v2828
        %v2893 = vmul.f32 %v2829, %v2829
        %v2894 = vmul.f32 %v2830, %v2830
        %v2895 = vmul.f32 %v2831, %v2831
        %v2896 = vmul.f32 %v2832, %v2832
        %v2897 = vmul.f32 %v2833, %v2833
        %v2898 = vmul.f32 %v2834, %v2834
        %v2899 = vmul.f32 %v2835, %v2835
        %v2900 = vmul.f32 %v2836, %v2836
        %v2901 = vmul.f32 %v2837, %v2837
        %v2902 = vmul.f32 %v2838, %v2838
        %v2903 = vmul.f32 %v2839, %v2839
        %v2904 = vmul.f32 %v2840, %v2840
        %v2905 = vmul.f32 %v2841, %v2841
        %v2906 = vmul.f32 %v2842, %v2842
        %v2907 = vmul.f32 %v2843, %v2843
        %v2908 = vmul.f32 %v2844, %v2844
        %v2909 = vmul.f32 %v2845, %v2845
        %v2910 = vmul.f32 %v2846, %v2846
        %v2911 = vmul.f32 %v2847, %v2847
        %v2912 = vmul.f32 %v2848, %v2848
        %v2913 = vmul.f32 %v2849, %v2849
        %v2914 = vmul.f32 %v2850, %v2850
        %v2915 = vmul.f32 %v2851, %v2851
        %v2916 = vmul.f32 %v2852, %v2852
        %v2917 = vmul.f32 %v2853, %v2853
        %v2918 = vmul.f32 %v2854, %v2854
        %v2919 = vmul.f32 %v2855, %v2855
        %v2920 = vmul.f32 %v2856, %v2856
        %v2921 = vmul.f32 %v2857, %v2857
        %v2922 = vmul.f32 %v2858, %v2858
        %v2923 = vmul.f32 %v2859, %v2859
        %v2924 = vmul.f32 %v2860, %v2860
        %v2925 = vmul.f32 %v2861, %v2861
        %v2926 = vmul.f32 %v2862, %v2862
        %v2927 = vmul.f32 %v2863, %v2863
        %v2928 = vmul.f32 %v2864, %v2864
        %v2929 = vmul.f32 %v2865, %v2865
        %v2930 = vmul.f32 %v2866, %v2866
        %v2931 = vmul.f32 %v2867, %v2867
        %v2932 = vmul.f32 %v2868, %v2868
        %v2933 = vmul.f32 %v2869, %v2869
        %v2934 = vmul.f32 %v2870, %v2870
        %v2935 = vmul.f32 %v2871, %v2871
        %v2936 = vmul.f32 %v2872, %v2872
        %v2937 = vmul.f32 %v2873, %v2873
        %v2938 = vmul.f32 %v2874, %v2874
        %v2939 = vmul.f32 %v2875, %v2875
        %v2940 = vmul.f32 %v2876, %v2876
        %v2941 = vmul.f32 %v2877, %v2877
        %v2942 = vmul.f32 %v2878, %v2878
        %v2943 = vmul.f32 %v2879, %v2879
        %v2944 = vmul.f32 %v2880, %v2880
        %v2945 = vmul.f32 %v2881, %v2881
        %v2946 = vmul.f32 %v2882, %v2882
        %v2947 = vmul.f32 %v2883, %v2883
        %v2948 = vadd.f32 %v2884, %v2888
        %v2949 = vadd.f32 %v2948, %v2892
        %v2950 = vadd.f32 %v2949, %v2896
        %v2951 = vadd.f32 %v2950, %v2900
        %v2952 = vadd.f32 %v2951, %v2904
        %v2953 = vadd.f32 %v2952, %v2908
        %v2954 = vadd.f32 %v2953, %v2912
        %v2955 = vadd.f32 %v2954, %v2916
        %v2956 = vadd.f32 %v2955, %v2920
        %v2957 = vadd.f32 %v2956, %v2924
        %v2958 = vadd.f32 %v2957, %v2928
        %v2959 = vadd.f32 %v2958, %v2932
        %v2960 = vadd.f32 %v2959, %v2936
        %v2961 = vadd.f32 %v2960, %v2940
        %v2962 = vadd.f32 %v2961, %v2944
        %v2963 = vrot.slane %v2962, 4
        %v2964 = vadd.f32 %v2962, %v2963
        %v2965 = vrot.slane %v2964, 2
        %v2966 = vadd.f32 %v2964, %v2965
        %v2967 = vrot.slane %v2966, 1
        %v2968 = vadd.f32 %v2966, %v2967
        %v2969 = vadd.f32 %v2885, %v2889
        %v2970 = vadd.f32 %v2969, %v2893
        %v2971 = vadd.f32 %v2970, %v2897
        %v2972 = vadd.f32 %v2971, %v2901
        %v2973 = vadd.f32 %v2972, %v2905
        %v2974 = vadd.f32 %v2973, %v2909
        %v2975 = vadd.f32 %v2974, %v2913
        %v2976 = vadd.f32 %v2975, %v2917
        %v2977 = vadd.f32 %v2976, %v2921
        %v2978 = vadd.f32 %v2977, %v2925
        %v2979 = vadd.f32 %v2978, %v2929
        %v2980 = vadd.f32 %v2979, %v2933
        %v2981 = vadd.f32 %v2980, %v2937
        %v2982 = vadd.f32 %v2981, %v2941
        %v2983 = vadd.f32 %v2982, %v2945
        %v2984 = vrot.slane %v2983, 4
        %v2985 = vadd.f32 %v2983, %v2984
        %v2986 = vrot.slane %v2985, 2
        %v2987 = vadd.f32 %v2985, %v2986
        %v2988 = vrot.slane %v2987, 1
        %v2989 = vadd.f32 %v2987, %v2988
        %v2990 = vadd.f32 %v2886, %v2890
        %v2991 = vadd.f32 %v2990, %v2894
        %v2992 = vadd.f32 %v2991, %v2898
        %v2993 = vadd.f32 %v2992, %v2902
        %v2994 = vadd.f32 %v2993, %v2906
        %v2995 = vadd.f32 %v2994, %v2910
        %v2996 = vadd.f32 %v2995, %v2914
        %v2997 = vadd.f32 %v2996, %v2918
        %v2998 = vadd.f32 %v2997, %v2922
        %v2999 = vadd.f32 %v2998, %v2926
        %v3000 = vadd.f32 %v2999, %v2930
        %v3001 = vadd.f32 %v3000, %v2934
        %v3002 = vadd.f32 %v3001, %v2938
        %v3003 = vadd.f32 %v3002, %v2942
        %v3004 = vadd.f32 %v3003, %v2946
        %v3005 = vrot.slane %v3004, 4
        %v3006 = vadd.f32 %v3004, %v3005
        %v3007 = vrot.slane %v3006, 2
        %v3008 = vadd.f32 %v3006, %v3007
        %v3009 = vrot.slane %v3008, 1
        %v3010 = vadd.f32 %v3008, %v3009
        %v3011 = vadd.f32 %v2887, %v2891
        %v3012 = vadd.f32 %v3011, %v2895
        %v3013 = vadd.f32 %v3012, %v2899
        %v3014 = vadd.f32 %v3013, %v2903
        %v3015 = vadd.f32 %v3014, %v2907
        %v3016 = vadd.f32 %v3015, %v2911
        %v3017 = vadd.f32 %v3016, %v2915
        %v3018 = vadd.f32 %v3017, %v2919
        %v3019 = vadd.f32 %v3018, %v2923
        %v3020 = vadd.f32 %v3019, %v2927
        %v3021 = vadd.f32 %v3020, %v2931
        %v3022 = vadd.f32 %v3021, %v2935
        %v3023 = vadd.f32 %v3022, %v2939
        %v3024 = vadd.f32 %v3023, %v2943
        %v3025 = vadd.f32 %v3024, %v2947
        %v3026 = vrot.slane %v3025, 4
        %v3027 = vadd.f32 %v3025, %v3026
        %v3028 = vrot.slane %v3027, 2
        %v3029 = vadd.f32 %v3027, %v3028
        %v3030 = vrot.slane %v3029, 1
        %v3031 = vadd.f32 %v3029, %v3030
        %v3032 = vmul.f32 %v2968, %v1131
        %v3033 = vmul.f32 %v2989, %v1131
        %v3034 = vmul.f32 %v3010, %v1131
        %v3035 = vmul.f32 %v3031, %v1131
        %v3036 = vadd.f32 %v3032, 1e-05
        %v3037 = vadd.f32 %v3033, 1e-05
        %v3038 = vadd.f32 %v3034, 1e-05
        %v3039 = vadd.f32 %v3035, 1e-05
        %v3040 = vrsqrt.pop %v3036
        %v3041 = vrsqrt.pop %v3037
        %v3042 = vrsqrt.pop %v3038
        %v3043 = vrsqrt.pop %v3039
        %v3044 = vmul.f32 %v649, %v3040
        %v3045 = vmul.f32 %v650, %v3041
        %v3046 = vmul.f32 %v651, %v3042
        %v3047 = vmul.f32 %v652, %v3043
        %v3048 = vmul.f32 %v2816, %v3044
        %v3049 = vmul.f32 %v2817, %v3045
        %v3050 = vmul.f32 %v2818, %v3046
        %v3051 = vmul.f32 %v2819, %v3047
        %v3056 = vrot.slane %v3048, 5
        %v3057 = vrot.slane %v3049, 5
        %v3058 = vrot.slane %v3050, 5
        %v3059 = vrot.slane %v3051, 5
        %v3064 = vsub.f32 %v649, %v3056
        %v3065 = vsub.f32 %v650, %v3057
        %v3066 = vsub.f32 %v651, %v3058
        %v3067 = vsub.f32 %v652, %v3059
        %v3068 = vlaneseq
        %v3069 = vshrl.u32 %v3068, 7
        %v3070 = vsub.s32 1, %v3069
        %v3071 = vrot.slane %v3044, %v3070
        %v3072 = vlaneseq
        %v3073 = vshrl.u32 %v3072, 7
        %v3074 = vsub.s32 1, %v3073
        %v3075 = vrot.slane %v3045, %v3074
        %v3076 = vlaneseq
        %v3077 = vshrl.u32 %v3076, 7
        %v3078 = vsub.s32 1, %v3077
        %v3079 = vrot.slane %v3046, %v3078
        %v3080 = vlaneseq
        %v3081 = vshrl.u32 %v3080, 7
        %v3082 = vsub.s32 1, %v3081
        %v3083 = vrot.slane %v3047, %v3082
        %v3084 = vmul.f32 %v2428, %v3071
        %v3085 = vmul.f32 %v2430, %v3075
        %v3086 = vmul.f32 %v2654, %v3079
        %v3087 = vmul.f32 %v2656, %v3083
        %v3088 = vmul.f32 %v2432, %v3071
        %v3089 = vmul.f32 %v2434, %v3075
        %v3090 = vmul.f32 %v2658, %v3079
        %v3091 = vmul.f32 %v2660, %v3083
        %v3092 = vmul.f32 %v2438, %v3071
        %v3093 = vmul.f32 %v2440, %v3075
        %v3094 = vmul.f32 %v2664, %v3079
        %v3095 = vmul.f32 %v2666, %v3083
        %v3096 = vmul.f32 %v2442, %v3071
        %v3097 = vmul.f32 %v2444, %v3075
        %v3098 = vmul.f32 %v2668, %v3079
        %v3099 = vmul.f32 %v2670, %v3083
        %v3100 = vmul.f32 %v2448, %v3071
        %v3101 = vmul.f32 %v2450, %v3075
        %v3102 = vmul.f32 %v2674, %v3079
        %v3103 = vmul.f32 %v2676, %v3083
        %v3104 = vmul.f32 %v2452, %v3071
        %v3105 = vmul.f32 %v2454, %v3075
        %v3106 = vmul.f32 %v2678, %v3079
        %v3107 = vmul.f32 %v2680, %v3083
        %v3108 = vmul.f32 %v2458, %v3071
        %v3109 = vmul.f32 %v2460, %v3075
        %v3110 = vmul.f32 %v2684, %v3079
        %v3111 = vmul.f32 %v2686, %v3083
        %v3112 = vmul.f32 %v2462, %v3071
        %v3113 = vmul.f32 %v2464, %v3075
        %v3114 = vmul.f32 %v2688, %v3079
        %v3115 = vmul.f32 %v2690, %v3083
        %v3116 = vmul.f32 %v2468, %v3071
        %v3117 = vmul.f32 %v2470, %v3075
        %v3118 = vmul.f32 %v2694, %v3079
        %v3119 = vmul.f32 %v2696, %v3083
        %v3120 = vmul.f32 %v2472, %v3071
        %v3121 = vmul.f32 %v2474, %v3075
        %v3122 = vmul.f32 %v2698, %v3079
        %v3123 = vmul.f32 %v2700, %v3083
        %v3124 = vmul.f32 %v2478, %v3071
        %v3125 = vmul.f32 %v2480, %v3075
        %v3126 = vmul.f32 %v2704, %v3079
        %v3127 = vmul.f32 %v2706, %v3083
        %v3128 = vmul.f32 %v2482, %v3071
        %v3129 = vmul.f32 %v2484, %v3075
        %v3130 = vmul.f32 %v2708, %v3079
        %v3131 = vmul.f32 %v2710, %v3083
        %v3132 = vmul.f32 %v2488, %v3071
        %v3133 = vmul.f32 %v2490, %v3075
        %v3134 = vmul.f32 %v2714, %v3079
        %v3135 = vmul.f32 %v2716, %v3083
        %v3136 = vmul.f32 %v2492, %v3071
        %v3137 = vmul.f32 %v2494, %v3075
        %v3138 = vmul.f32 %v2718, %v3079
        %v3139 = vmul.f32 %v2720, %v3083
        %v3140 = vmul.f32 %v2498, %v3071
        %v3141 = vmul.f32 %v2500, %v3075
        %v3142 = vmul.f32 %v2724, %v3079
        %v3143 = vmul.f32 %v2726, %v3083
        %v3144 = vmul.f32 %v2502, %v3071
        %v3145 = vmul.f32 %v2504, %v3075
        %v3146 = vmul.f32 %v2728, %v3079
        %v3147 = vmul.f32 %v2730, %v3083
        %v3148 = vlaneseq
        %v3149 = vshrl.u32 %v3148, 7
        %v3150 = vsub.s32 4, %v3149
        %v3151 = vrot.slane %v3064, %v3150
        %v3152 = vlaneseq
        %v3153 = vshrl.u32 %v3152, 7
        %v3154 = vsub.s32 4, %v3153
        %v3155 = vrot.slane %v3065, %v3154
        %v3156 = vlaneseq
        %v3157 = vshrl.u32 %v3156, 7
        %v3158 = vsub.s32 4, %v3157
        %v3159 = vrot.slane %v3066, %v3158
        %v3160 = vlaneseq
        %v3161 = vshrl.u32 %v3160, 7
        %v3162 = vsub.s32 4, %v3161
        %v3163 = vrot.slane %v3067, %v3162
        %v3164 = vadd.f32 %v3084, %v3151
        %v3165 = vadd.f32 %v3085, %v3155
        %v3166 = vadd.f32 %v3086, %v3159
        %v3167 = vadd.f32 %v3087, %v3163
        %v3168 = vadd.f32 %v3088, %v3151
        %v3169 = vadd.f32 %v3089, %v3155
        %v3170 = vadd.f32 %v3090, %v3159
        %v3171 = vadd.f32 %v3091, %v3163
        %v3172 = vadd.f32 %v3092, %v3151
        %v3173 = vadd.f32 %v3093, %v3155
        %v3174 = vadd.f32 %v3094, %v3159
        %v3175 = vadd.f32 %v3095, %v3163
        %v3176 = vadd.f32 %v3096, %v3151
        %v3177 = vadd.f32 %v3097, %v3155
        %v3178 = vadd.f32 %v3098, %v3159
        %v3179 = vadd.f32 %v3099, %v3163
        %v3180 = vadd.f32 %v3100, %v3151
        %v3181 = vadd.f32 %v3101, %v3155
        %v3182 = vadd.f32 %v3102, %v3159
        %v3183 = vadd.f32 %v3103, %v3163
        %v3184 = vadd.f32 %v3104, %v3151
        %v3185 = vadd.f32 %v3105, %v3155
        %v3186 = vadd.f32 %v3106, %v3159
        %v3187 = vadd.f32 %v3107, %v3163
        %v3188 = vadd.f32 %v3108, %v3151
        %v3189 = vadd.f32 %v3109, %v3155
        %v3190 = vadd.f32 %v3110, %v3159
        %v3191 = vadd.f32 %v3111, %v3163
        %v3192 = vadd.f32 %v3112, %v3151
        %v3193 = vadd.f32 %v3113, %v3155
        %v3194 = vadd.f32 %v3114, %v3159
        %v3195 = vadd.f32 %v3115, %v3163
        %v3196 = vadd.f32 %v3116, %v3151
        %v3197 = vadd.f32 %v3117, %v3155
        %v3198 = vadd.f32 %v3118, %v3159
        %v3199 = vadd.f32 %v3119, %v3163
        %v3200 = vadd.f32 %v3120, %v3151
        %v3201 = vadd.f32 %v3121, %v3155
        %v3202 = vadd.f32 %v3122, %v3159
        %v3203 = vadd.f32 %v3123, %v3163
        %v3204 = vadd.f32 %v3124, %v3151
        %v3205 = vadd.f32 %v3125, %v3155
        %v3206 = vadd.f32 %v3126, %v3159
        %v3207 = vadd.f32 %v3127, %v3163
        %v3208 = vadd.f32 %v3128, %v3151
        %v3209 = vadd.f32 %v3129, %v3155
        %v3210 = vadd.f32 %v3130, %v3159
        %v3211 = vadd.f32 %v3131, %v3163
        %v3212 = vadd.f32 %v3132, %v3151
        %v3213 = vadd.f32 %v3133, %v3155
        %v3214 = vadd.f32 %v3134, %v3159
        %v3215 = vadd.f32 %v3135, %v3163
        %v3216 = vadd.f32 %v3136, %v3151
        %v3217 = vadd.f32 %v3137, %v3155
        %v3218 = vadd.f32 %v3138, %v3159
        %v3219 = vadd.f32 %v3139, %v3163
        %v3220 = vadd.f32 %v3140, %v3151
        %v3221 = vadd.f32 %v3141, %v3155
        %v3222 = vadd.f32 %v3142, %v3159
        %v3223 = vadd.f32 %v3143, %v3163
        %v3224 = vadd.f32 %v3144, %v3151
        %v3225 = vadd.f32 %v3145, %v3155
        %v3226 = vadd.f32 %v3146, %v3159
        %v3227 = vadd.f32 %v3147, %v3163
        %v3228 = vmax.f32 %v3164, 0.0
        %v3229 = vmax.f32 %v3165, 0.0
        %v3230 = vmax.f32 %v3166, 0.0
        %v3231 = vmax.f32 %v3167, 0.0
        %v3232 = vmax.f32 %v3168, 0.0
        %v3233 = vmax.f32 %v3169, 0.0
        %v3234 = vmax.f32 %v3170, 0.0
        %v3235 = vmax.f32 %v3171, 0.0
        %v3236 = vmax.f32 %v3172, 0.0
        %v3237 = vmax.f32 %v3173, 0.0
        %v3238 = vmax.f32 %v3174, 0.0
        %v3239 = vmax.f32 %v3175, 0.0
        %v3240 = vmax.f32 %v3176, 0.0
        %v3241 = vmax.f32 %v3177, 0.0
        %v3242 = vmax.f32 %v3178, 0.0
        %v3243 = vmax.f32 %v3179, 0.0
        %v3244 = vmax.f32 %v3180, 0.0
        %v3245 = vmax.f32 %v3181, 0.0
        %v3246 = vmax.f32 %v3182, 0.0
        %v3247 = vmax.f32 %v3183, 0.0
        %v3248 = vmax.f32 %v3184, 0.0
        %v3249 = vmax.f32 %v3185, 0.0
        %v3250 = vmax.f32 %v3186, 0.0
        %v3251 = vmax.f32 %v3187, 0.0
        %v3252 = vmax.f32 %v3188, 0.0
        %v3253 = vmax.f32 %v3189, 0.0
        %v3254 = vmax.f32 %v3190, 0.0
        %v3255 = vmax.f32 %v3191, 0.0
        %v3256 = vmax.f32 %v3192, 0.0
        %v3257 = vmax.f32 %v3193, 0.0
        %v3258 = vmax.f32 %v3194, 0.0
        %v3259 = vmax.f32 %v3195, 0.0
        %v3260 = vmax.f32 %v3196, 0.0
        %v3261 = vmax.f32 %v3197, 0.0
        %v3262 = vmax.f32 %v3198, 0.0
        %v3263 = vmax.f32 %v3199, 0.0
        %v3264 = vmax.f32 %v3200, 0.0
        %v3265 = vmax.f32 %v3201, 0.0
        %v3266 = vmax.f32 %v3202, 0.0
        %v3267 = vmax.f32 %v3203, 0.0
        %v3268 = vmax.f32 %v3204, 0.0
        %v3269 = vmax.f32 %v3205, 0.0
        %v3270 = vmax.f32 %v3206, 0.0
        %v3271 = vmax.f32 %v3207, 0.0
        %v3272 = vmax.f32 %v3208, 0.0
        %v3273 = vmax.f32 %v3209, 0.0
        %v3274 = vmax.f32 %v3210, 0.0
        %v3275 = vmax.f32 %v3211, 0.0
        %v3276 = vmax.f32 %v3212, 0.0
        %v3277 = vmax.f32 %v3213, 0.0
        %v3278 = vmax.f32 %v3214, 0.0
        %v3279 = vmax.f32 %v3215, 0.0
        %v3280 = vmax.f32 %v3216, 0.0
        %v3281 = vmax.f32 %v3217, 0.0
        %v3282 = vmax.f32 %v3218, 0.0
        %v3283 = vmax.f32 %v3219, 0.0
        %v3284 = vmax.f32 %v3220, 0.0
        %v3285 = vmax.f32 %v3221, 0.0
        %v3286 = vmax.f32 %v3222, 0.0
        %v3287 = vmax.f32 %v3223, 0.0
        %v3288 = vmax.f32 %v3224, 0.0
        %v3289 = vmax.f32 %v3225, 0.0
        %v3290 = vmax.f32 %v3226, 0.0
        %v3291 = vmax.f32 %v3227, 0.0
        %v3292 = vpack.c.bf16 %v3232, %v3228
        %v3293 = vpack.c.bf16 %v3233, %v3229
        %v3294 = vpack.c.bf16 %v3234, %v3230
        %v3295 = vpack.c.bf16 %v3235, %v3231
        %v3296 = vpack.c.bf16 %v3240, %v3236
        %v3297 = vpack.c.bf16 %v3241, %v3237
        %v3298 = vpack.c.bf16 %v3242, %v3238
        %v3299 = vpack.c.bf16 %v3243, %v3239
        %v3300 = vpack.c.bf16 %v3248, %v3244
        %v3301 = vpack.c.bf16 %v3249, %v3245
        %v3302 = vpack.c.bf16 %v3250, %v3246
        %v3303 = vpack.c.bf16 %v3251, %v3247
        %v3304 = vpack.c.bf16 %v3256, %v3252
        %v3305 = vpack.c.bf16 %v3257, %v3253
        %v3306 = vpack.c.bf16 %v3258, %v3254
        %v3307 = vpack.c.bf16 %v3259, %v3255
        %v3308 = vpack.c.bf16 %v3264, %v3260
        %v3309 = vpack.c.bf16 %v3265, %v3261
        %v3310 = vpack.c.bf16 %v3266, %v3262
        %v3311 = vpack.c.bf16 %v3267, %v3263
        %v3312 = vpack.c.bf16 %v3272, %v3268
        %v3313 = vpack.c.bf16 %v3273, %v3269
        %v3314 = vpack.c.bf16 %v3274, %v3270
        %v3315 = vpack.c.bf16 %v3275, %v3271
        %v3316 = vpack.c.bf16 %v3280, %v3276
        %v3317 = vpack.c.bf16 %v3281, %v3277
        %v3318 = vpack.c.bf16 %v3282, %v3278
        %v3319 = vpack.c.bf16 %v3283, %v3279
        %v3320 = vpack.c.bf16 %v3288, %v3284
        %v3321 = vpack.c.bf16 %v3289, %v3285
        %v3322 = vpack.c.bf16 %v3290, %v3286
        %v3323 = vpack.c.bf16 %v3291, %v3287
        %v3452 = vunpack.c.l.b16 %v457
        %v3453 = vunpack.c.h.b16 %v457
        %v3454 = vunpack.c.l.b16 %v458
        %v3455 = vunpack.c.h.b16 %v458
        %v3456 = vunpack.c.l.b16 %v459
        %v3457 = vunpack.c.h.b16 %v459
        %v3458 = vunpack.c.l.b16 %v460
        %v3459 = vunpack.c.h.b16 %v460
        %v3460 = vunpack.c.l.b16 %v461
        %v3461 = vunpack.c.h.b16 %v461
        %v3462 = vunpack.c.l.b16 %v462
        %v3463 = vunpack.c.h.b16 %v462
        %v3464 = vunpack.c.l.b16 %v463
        %v3465 = vunpack.c.h.b16 %v463
        %v3466 = vunpack.c.l.b16 %v464
        %v3467 = vunpack.c.h.b16 %v464
        %v3468 = vunpack.c.l.b16 %v465
        %v3469 = vunpack.c.h.b16 %v465
        %v3470 = vunpack.c.l.b16 %v466
        %v3471 = vunpack.c.h.b16 %v466
        %v3472 = vunpack.c.l.b16 %v467
        %v3473 = vunpack.c.h.b16 %v467
        %v3474 = vunpack.c.l.b16 %v468
        %v3475 = vunpack.c.h.b16 %v468
        %v3476 = vunpack.c.l.b16 %v469
        %v3477 = vunpack.c.h.b16 %v469
        %v3478 = vunpack.c.l.b16 %v470
        %v3479 = vunpack.c.h.b16 %v470
        %v3480 = vunpack.c.l.b16 %v471
        %v3481 = vunpack.c.h.b16 %v471
        %v3482 = vunpack.c.l.b16 %v472
        %v3483 = vunpack.c.h.b16 %v472
        %v3484 = vunpack.c.l.b16 %v473
        %v3485 = vunpack.c.h.b16 %v473
        %v3486 = vunpack.c.l.b16 %v474
        %v3487 = vunpack.c.h.b16 %v474
        %v3488 = vunpack.c.l.b16 %v475
        %v3489 = vunpack.c.h.b16 %v475
        %v3490 = vunpack.c.l.b16 %v476
        %v3491 = vunpack.c.h.b16 %v476
        %v3492 = vunpack.c.l.b16 %v477
        %v3493 = vunpack.c.h.b16 %v477
        %v3494 = vunpack.c.l.b16 %v478
        %v3495 = vunpack.c.h.b16 %v478
        %v3496 = vunpack.c.l.b16 %v479
        %v3497 = vunpack.c.h.b16 %v479
        %v3498 = vunpack.c.l.b16 %v480
        %v3499 = vunpack.c.h.b16 %v480
        %v3500 = vunpack.c.l.b16 %v481
        %v3501 = vunpack.c.h.b16 %v481
        %v3502 = vunpack.c.l.b16 %v482
        %v3503 = vunpack.c.h.b16 %v482
        %v3504 = vunpack.c.l.b16 %v483
        %v3505 = vunpack.c.h.b16 %v483
        %v3506 = vunpack.c.l.b16 %v484
        %v3507 = vunpack.c.h.b16 %v484
        %v3508 = vunpack.c.l.b16 %v485
        %v3509 = vunpack.c.h.b16 %v485
        %v3510 = vunpack.c.l.b16 %v486
        %v3511 = vunpack.c.h.b16 %v486
        %v3512 = vunpack.c.l.b16 %v487
        %v3513 = vunpack.c.h.b16 %v487
        %v3514 = vunpack.c.l.b16 %v488
        %v3515 = vunpack.c.h.b16 %v488
        %v3516 = vunpack.c.l.b16 %v489
        %v3517 = vunpack.c.h.b16 %v489
        %v3518 = vunpack.c.l.b16 %v490
        %v3519 = vunpack.c.h.b16 %v490
        %v3520 = vunpack.c.l.b16 %v491
        %v3521 = vunpack.c.h.b16 %v491
        %v3522 = vunpack.c.l.b16 %v492
        %v3523 = vunpack.c.h.b16 %v492
        %v3524 = vunpack.c.l.b16 %v493
        %v3525 = vunpack.c.h.b16 %v493
        %v3526 = vunpack.c.l.b16 %v494
        %v3527 = vunpack.c.h.b16 %v494
        %v3528 = vunpack.c.l.b16 %v495
        %v3529 = vunpack.c.h.b16 %v495
        %v3530 = vunpack.c.l.b16 %v496
        %v3531 = vunpack.c.h.b16 %v496
        %v3532 = vunpack.c.l.b16 %v497
        %v3533 = vunpack.c.h.b16 %v497
        %v3534 = vunpack.c.l.b16 %v498
        %v3535 = vunpack.c.h.b16 %v498
        %v3536 = vunpack.c.l.b16 %v499
        %v3537 = vunpack.c.h.b16 %v499
        %v3538 = vunpack.c.l.b16 %v500
        %v3539 = vunpack.c.h.b16 %v500
        %v3540 = vunpack.c.l.b16 %v501
        %v3541 = vunpack.c.h.b16 %v501
        %v3542 = vunpack.c.l.b16 %v502
        %v3543 = vunpack.c.h.b16 %v502
        %v3544 = vunpack.c.l.b16 %v503
        %v3545 = vunpack.c.h.b16 %v503
        %v3546 = vunpack.c.l.b16 %v504
        %v3547 = vunpack.c.h.b16 %v504
        %v3548 = vunpack.c.l.b16 %v505
        %v3549 = vunpack.c.h.b16 %v505
        %v3550 = vunpack.c.l.b16 %v506
        %v3551 = vunpack.c.h.b16 %v506
        %v3552 = vunpack.c.l.b16 %v507
        %v3553 = vunpack.c.h.b16 %v507
        %v3554 = vunpack.c.l.b16 %v508
        %v3555 = vunpack.c.h.b16 %v508
        %v3556 = vunpack.c.l.b16 %v509
        %v3557 = vunpack.c.h.b16 %v509
        %v3558 = vunpack.c.l.b16 %v510
        %v3559 = vunpack.c.h.b16 %v510
        %v3560 = vunpack.c.l.b16 %v511
        %v3561 = vunpack.c.h.b16 %v511
        %v3562 = vunpack.c.l.b16 %v512
        %v3563 = vunpack.c.h.b16 %v512
        %v3564 = vunpack.c.l.b16 %v513
        %v3565 = vunpack.c.h.b16 %v513
        %v3566 = vunpack.c.l.b16 %v514
        %v3567 = vunpack.c.h.b16 %v514
        %v3568 = vunpack.c.l.b16 %v515
        %v3569 = vunpack.c.h.b16 %v515
        %v3570 = vunpack.c.l.b16 %v516
        %v3571 = vunpack.c.h.b16 %v516
        %v3572 = vunpack.c.l.b16 %v517
        %v3573 = vunpack.c.h.b16 %v517
        %v3574 = vunpack.c.l.b16 %v518
        %v3575 = vunpack.c.h.b16 %v518
        %v3576 = vunpack.c.l.b16 %v519
        %v3577 = vunpack.c.h.b16 %v519
        %v3578 = vunpack.c.l.b16 %v520
        %v3579 = vunpack.c.h.b16 %v520
        %v3580 = vunpack.c.l.b16 %v521
        %v3581 = vunpack.c.h.b16 %v521
        %v3582 = vunpack.c.l.b16 %v522
        %v3583 = vunpack.c.h.b16 %v522
        %v3584 = vunpack.c.l.b16 %v523
        %v3585 = vunpack.c.h.b16 %v523
        %v3586 = vunpack.c.l.b16 %v524
        %v3587 = vunpack.c.h.b16 %v524
        %v3588 = vunpack.c.l.b16 %v525
        %v3589 = vunpack.c.h.b16 %v525
        %v3590 = vunpack.c.l.b16 %v526
        %v3591 = vunpack.c.h.b16 %v526
        %v3592 = vunpack.c.l.b16 %v527
        %v3593 = vunpack.c.h.b16 %v527
        %v3594 = vunpack.c.l.b16 %v528
        %v3595 = vunpack.c.h.b16 %v528
        %v3596 = vunpack.c.l.b16 %v529
        %v3597 = vunpack.c.h.b16 %v529
        %v3598 = vunpack.c.l.b16 %v530
        %v3599 = vunpack.c.h.b16 %v530
        %v3600 = vunpack.c.l.b16 %v531
        %v3601 = vunpack.c.h.b16 %v531
        %v3602 = vunpack.c.l.b16 %v532
        %v3603 = vunpack.c.h.b16 %v532
        %v3604 = vunpack.c.l.b16 %v533
        %v3605 = vunpack.c.h.b16 %v533
        %v3606 = vunpack.c.l.b16 %v534
        %v3607 = vunpack.c.h.b16 %v534
        %v3608 = vunpack.c.l.b16 %v535
        %v3609 = vunpack.c.h.b16 %v535
        %v3610 = vunpack.c.l.b16 %v536
        %v3611 = vunpack.c.h.b16 %v536
        %v3612 = vunpack.c.l.b16 %v537
        %v3613 = vunpack.c.h.b16 %v537
        %v3614 = vunpack.c.l.b16 %v538
        %v3615 = vunpack.c.h.b16 %v538
        %v3616 = vunpack.c.l.b16 %v539
        %v3617 = vunpack.c.h.b16 %v539
        %v3618 = vunpack.c.l.b16 %v540
        %v3619 = vunpack.c.h.b16 %v540
        %v3620 = vunpack.c.l.b16 %v541
        %v3621 = vunpack.c.h.b16 %v541
        %v3622 = vunpack.c.l.b16 %v542
        %v3623 = vunpack.c.h.b16 %v542
        %v3624 = vunpack.c.l.b16 %v543
        %v3625 = vunpack.c.h.b16 %v543
        %v3626 = vunpack.c.l.b16 %v544
        %v3627 = vunpack.c.h.b16 %v544
        %v3628 = vunpack.c.l.b16 %v545
        %v3629 = vunpack.c.h.b16 %v545
        %v3630 = vunpack.c.l.b16 %v546
        %v3631 = vunpack.c.h.b16 %v546
        %v3632 = vunpack.c.l.b16 %v547
        %v3633 = vunpack.c.h.b16 %v547
        %v3634 = vunpack.c.l.b16 %v548
        %v3635 = vunpack.c.h.b16 %v548
        %v3636 = vunpack.c.l.b16 %v549
        %v3637 = vunpack.c.h.b16 %v549
        %v3638 = vunpack.c.l.b16 %v550
        %v3639 = vunpack.c.h.b16 %v550
        %v3640 = vunpack.c.l.b16 %v551
        %v3641 = vunpack.c.h.b16 %v551
        %v3642 = vunpack.c.l.b16 %v552
        %v3643 = vunpack.c.h.b16 %v552
        %v3644 = vunpack.c.l.b16 %v553
        %v3645 = vunpack.c.h.b16 %v553
        %v3646 = vunpack.c.l.b16 %v554
        %v3647 = vunpack.c.h.b16 %v554
        %v3648 = vunpack.c.l.b16 %v555
        %v3649 = vunpack.c.h.b16 %v555
        %v3650 = vunpack.c.l.b16 %v556
        %v3651 = vunpack.c.h.b16 %v556
        %v3652 = vunpack.c.l.b16 %v557
        %v3653 = vunpack.c.h.b16 %v557
        %v3654 = vunpack.c.l.b16 %v558
        %v3655 = vunpack.c.h.b16 %v558
        %v3656 = vunpack.c.l.b16 %v559
        %v3657 = vunpack.c.h.b16 %v559
        %v3658 = vunpack.c.l.b16 %v560
        %v3659 = vunpack.c.h.b16 %v560
        %v3660 = vunpack.c.l.b16 %v561
        %v3661 = vunpack.c.h.b16 %v561
        %v3662 = vunpack.c.l.b16 %v562
        %v3663 = vunpack.c.h.b16 %v562
        %v3664 = vunpack.c.l.b16 %v563
        %v3665 = vunpack.c.h.b16 %v563
        %v3666 = vunpack.c.l.b16 %v564
        %v3667 = vunpack.c.h.b16 %v564
        %v3668 = vunpack.c.l.b16 %v565
        %v3669 = vunpack.c.h.b16 %v565
        %v3670 = vunpack.c.l.b16 %v566
        %v3671 = vunpack.c.h.b16 %v566
        %v3672 = vunpack.c.l.b16 %v567
        %v3673 = vunpack.c.h.b16 %v567
        %v3674 = vunpack.c.l.b16 %v568
        %v3675 = vunpack.c.h.b16 %v568
        %v3676 = vunpack.c.l.b16 %v569
        %v3677 = vunpack.c.h.b16 %v569
        %v3678 = vunpack.c.l.b16 %v570
        %v3679 = vunpack.c.h.b16 %v570
        %v3680 = vunpack.c.l.b16 %v571
        %v3681 = vunpack.c.h.b16 %v571
        %v3682 = vunpack.c.l.b16 %v572
        %v3683 = vunpack.c.h.b16 %v572
        %v3684 = vunpack.c.l.b16 %v573
        %v3685 = vunpack.c.h.b16 %v573
        %v3686 = vunpack.c.l.b16 %v574
        %v3687 = vunpack.c.h.b16 %v574
        %v3688 = vunpack.c.l.b16 %v575
        %v3689 = vunpack.c.h.b16 %v575
        %v3690 = vunpack.c.l.b16 %v576
        %v3691 = vunpack.c.h.b16 %v576
        %v3692 = vunpack.c.l.b16 %v577
        %v3693 = vunpack.c.h.b16 %v577
        %v3694 = vunpack.c.l.b16 %v578
        %v3695 = vunpack.c.h.b16 %v578
        %v3696 = vunpack.c.l.b16 %v579
        %v3697 = vunpack.c.h.b16 %v579
        %v3698 = vunpack.c.l.b16 %v580
        %v3699 = vunpack.c.h.b16 %v580
        %v3700 = vunpack.c.l.b16 %v581
        %v3701 = vunpack.c.h.b16 %v581
        %v3702 = vunpack.c.l.b16 %v582
        %v3703 = vunpack.c.h.b16 %v582
        %v3704 = vunpack.c.l.b16 %v583
        %v3705 = vunpack.c.h.b16 %v583
        %v3706 = vunpack.c.l.b16 %v584
        %v3707 = vunpack.c.h.b16 %v584
        %v3708 = vpack.c.b16 %v3456, %v3452
        %v3709 = vpack.c.b16 %v3457, %v3453
        %v3710 = vpack.c.b16 %v3458, %v3454
        %v3711 = vpack.c.b16 %v3459, %v3455
        %v3712 = vpack.c.b16 %v3464, %v3460
        %v3713 = vpack.c.b16 %v3465, %v3461
        %v3714 = vpack.c.b16 %v3466, %v3462
        %v3715 = vpack.c.b16 %v3467, %v3463
        %v3716 = vpack.c.b16 %v3472, %v3468
        %v3717 = vpack.c.b16 %v3473, %v3469
        %v3718 = vpack.c.b16 %v3474, %v3470
        %v3719 = vpack.c.b16 %v3475, %v3471
        %v3720 = vpack.c.b16 %v3480, %v3476
        %v3721 = vpack.c.b16 %v3481, %v3477
        %v3722 = vpack.c.b16 %v3482, %v3478
        %v3723 = vpack.c.b16 %v3483, %v3479
        %v3724 = vpack.c.b16 %v3488, %v3484
        %v3725 = vpack.c.b16 %v3489, %v3485
        %v3726 = vpack.c.b16 %v3490, %v3486
        %v3727 = vpack.c.b16 %v3491, %v3487
        %v3728 = vpack.c.b16 %v3496, %v3492
        %v3729 = vpack.c.b16 %v3497, %v3493
        %v3730 = vpack.c.b16 %v3498, %v3494
        %v3731 = vpack.c.b16 %v3499, %v3495
        %v3732 = vpack.c.b16 %v3504, %v3500
        %v3733 = vpack.c.b16 %v3505, %v3501
        %v3734 = vpack.c.b16 %v3506, %v3502
        %v3735 = vpack.c.b16 %v3507, %v3503
        %v3736 = vpack.c.b16 %v3512, %v3508
        %v3737 = vpack.c.b16 %v3513, %v3509
        %v3738 = vpack.c.b16 %v3514, %v3510
        %v3739 = vpack.c.b16 %v3515, %v3511
        %v3740 = vpack.c.b16 %v3520, %v3516
        %v3741 = vpack.c.b16 %v3521, %v3517
        %v3742 = vpack.c.b16 %v3522, %v3518
        %v3743 = vpack.c.b16 %v3523, %v3519
        %v3744 = vpack.c.b16 %v3528, %v3524
        %v3745 = vpack.c.b16 %v3529, %v3525
        %v3746 = vpack.c.b16 %v3530, %v3526
        %v3747 = vpack.c.b16 %v3531, %v3527
        %v3748 = vpack.c.b16 %v3536, %v3532
        %v3749 = vpack.c.b16 %v3537, %v3533
        %v3750 = vpack.c.b16 %v3538, %v3534
        %v3751 = vpack.c.b16 %v3539, %v3535
        %v3752 = vpack.c.b16 %v3544, %v3540
        %v3753 = vpack.c.b16 %v3545, %v3541
        %v3754 = vpack.c.b16 %v3546, %v3542
        %v3755 = vpack.c.b16 %v3547, %v3543
        %v3756 = vpack.c.b16 %v3552, %v3548
        %v3757 = vpack.c.b16 %v3553, %v3549
        %v3758 = vpack.c.b16 %v3554, %v3550
        %v3759 = vpack.c.b16 %v3555, %v3551
        %v3760 = vpack.c.b16 %v3560, %v3556
        %v3761 = vpack.c.b16 %v3561, %v3557
        %v3762 = vpack.c.b16 %v3562, %v3558
        %v3763 = vpack.c.b16 %v3563, %v3559
        %v3764 = vpack.c.b16 %v3568, %v3564
        %v3765 = vpack.c.b16 %v3569, %v3565
        %v3766 = vpack.c.b16 %v3570, %v3566
        %v3767 = vpack.c.b16 %v3571, %v3567
        %v3768 = vpack.c.b16 %v3576, %v3572
        %v3769 = vpack.c.b16 %v3577, %v3573
        %v3770 = vpack.c.b16 %v3578, %v3574
        %v3771 = vpack.c.b16 %v3579, %v3575
        %v3772 = vpack.c.b16 %v3584, %v3580
        %v3773 = vpack.c.b16 %v3585, %v3581
        %v3774 = vpack.c.b16 %v3586, %v3582
        %v3775 = vpack.c.b16 %v3587, %v3583
        %v3776 = vpack.c.b16 %v3592, %v3588
        %v3777 = vpack.c.b16 %v3593, %v3589
        %v3778 = vpack.c.b16 %v3594, %v3590
        %v3779 = vpack.c.b16 %v3595, %v3591
        %v3780 = vpack.c.b16 %v3600, %v3596
        %v3781 = vpack.c.b16 %v3601, %v3597
        %v3782 = vpack.c.b16 %v3602, %v3598
        %v3783 = vpack.c.b16 %v3603, %v3599
        %v3784 = vpack.c.b16 %v3608, %v3604
        %v3785 = vpack.c.b16 %v3609, %v3605
        %v3786 = vpack.c.b16 %v3610, %v3606
        %v3787 = vpack.c.b16 %v3611, %v3607
        %v3788 = vpack.c.b16 %v3616, %v3612
        %v3789 = vpack.c.b16 %v3617, %v3613
        %v3790 = vpack.c.b16 %v3618, %v3614
        %v3791 = vpack.c.b16 %v3619, %v3615
        %v3792 = vpack.c.b16 %v3624, %v3620
        %v3793 = vpack.c.b16 %v3625, %v3621
        %v3794 = vpack.c.b16 %v3626, %v3622
        %v3795 = vpack.c.b16 %v3627, %v3623
        %v3796 = vpack.c.b16 %v3632, %v3628
        %v3797 = vpack.c.b16 %v3633, %v3629
        %v3798 = vpack.c.b16 %v3634, %v3630
        %v3799 = vpack.c.b16 %v3635, %v3631
        %v3800 = vpack.c.b16 %v3640, %v3636
        %v3801 = vpack.c.b16 %v3641, %v3637
        %v3802 = vpack.c.b16 %v3642, %v3638
        %v3803 = vpack.c.b16 %v3643, %v3639
        %v3804 = vpack.c.b16 %v3648, %v3644
        %v3805 = vpack.c.b16 %v3649, %v3645
        %v3806 = vpack.c.b16 %v3650, %v3646
        %v3807 = vpack.c.b16 %v3651, %v3647
        %v3808 = vpack.c.b16 %v3656, %v3652
        %v3809 = vpack.c.b16 %v3657, %v3653
        %v3810 = vpack.c.b16 %v3658, %v3654
        %v3811 = vpack.c.b16 %v3659, %v3655
        %v3812 = vpack.c.b16 %v3664, %v3660
        %v3813 = vpack.c.b16 %v3665, %v3661
        %v3814 = vpack.c.b16 %v3666, %v3662
        %v3815 = vpack.c.b16 %v3667, %v3663
        %v3816 = vpack.c.b16 %v3672, %v3668
        %v3817 = vpack.c.b16 %v3673, %v3669
        %v3818 = vpack.c.b16 %v3674, %v3670
        %v3819 = vpack.c.b16 %v3675, %v3671
        %v3820 = vpack.c.b16 %v3680, %v3676
        %v3821 = vpack.c.b16 %v3681, %v3677
        %v3822 = vpack.c.b16 %v3682, %v3678
        %v3823 = vpack.c.b16 %v3683, %v3679
        %v3824 = vpack.c.b16 %v3688, %v3684
        %v3825 = vpack.c.b16 %v3689, %v3685
        %v3826 = vpack.c.b16 %v3690, %v3686
        %v3827 = vpack.c.b16 %v3691, %v3687
        %v3828 = vpack.c.b16 %v3696, %v3692
        %v3829 = vpack.c.b16 %v3697, %v3693
        %v3830 = vpack.c.b16 %v3698, %v3694
        %v3831 = vpack.c.b16 %v3699, %v3695
        %v3832 = vpack.c.b16 %v3704, %v3700
        %v3833 = vpack.c.b16 %v3705, %v3701
        %v3834 = vpack.c.b16 %v3706, %v3702
        %v3835 = vpack.c.b16 %v3707, %v3703
        %3964 = vmatprep.subr.bf16.mxu0 %v3709
        %3965 = vmatpush1.bf16.msra.mxu0 %v3708
        %3966 = vmatprep.subr.bf16.mxu0 %v3713
        %3967 = vmatpush1.bf16.msra.mxu0 %v3712
        %3968 = vmatprep.subr.bf16.mxu0 %v3717
        %3969 = vmatpush1.bf16.msra.mxu0 %v3716
        %3970 = vmatprep.subr.bf16.mxu0 %v3721
        %3971 = vmatpush1.bf16.msra.mxu0 %v3720
        %3972 = vmatprep.subr.bf16.mxu0 %v3725
        %3973 = vmatpush1.bf16.msra.mxu0 %v3724
        %3974 = vmatprep.subr.bf16.mxu0 %v3729
        %3975 = vmatpush1.bf16.msra.mxu0 %v3728
        %3976 = vmatprep.subr.bf16.mxu0 %v3733
        %3977 = vmatpush1.bf16.msra.mxu0 %v3732
        %3978 = vmatprep.subr.bf16.mxu0 %v3737
        %3979 = vmatpush1.bf16.msra.mxu0 %v3736
        %3980 = vmatprep.subr.bf16.mxu0 %v3741
        %3981 = vmatpush1.bf16.msra.mxu0 %v3740
        %3982 = vmatprep.subr.bf16.mxu0 %v3745
        %3983 = vmatpush1.bf16.msra.mxu0 %v3744
        %3984 = vmatprep.subr.bf16.mxu0 %v3749
        %3985 = vmatpush1.bf16.msra.mxu0 %v3748
        %3986 = vmatprep.subr.bf16.mxu0 %v3753
        %3987 = vmatpush1.bf16.msra.mxu0 %v3752
        %3988 = vmatprep.subr.bf16.mxu0 %v3757
        %3989 = vmatpush1.bf16.msra.mxu0 %v3756
        %3990 = vmatprep.subr.bf16.mxu0 %v3761
        %3991 = vmatpush1.bf16.msra.mxu0 %v3760
        %3992 = vmatprep.subr.bf16.mxu0 %v3765
        %3993 = vmatpush1.bf16.msra.mxu0 %v3764
        %3994 = vmatprep.subr.bf16.mxu0 %v3769
        %3995 = vmatpush1.bf16.msra.mxu0 %v3768
        %3996 = vmatprep.mubr.bf16.mxu0 %v3293
        %3997 = vmatmul.mubr.bf16.gmra.mrb[0].mxu0 %v3292
        %v3998 = vpop.f32.mrb[0].mxu0
        %v3999 = vadd.f32 0.0, %v3998
        %v4000 = vpop.f32.mrb[0].mxu0
        %v4001 = vadd.f32 0.0, %v4000
        %v4002 = vpop.f32.mrb[0].mxu0
        %v4003 = vadd.f32 0.0, %v4002
        %v4004 = vpop.f32.mrb[0].mxu0
        %v4005 = vadd.f32 0.0, %v4004
        %4006 = vmatprep.mubr.bf16.mxu0 %v3297
        %4007 = vmatmul.mubr.bf16.gmra.mrb[0].mxu0 %v3296
        %v4008 = vpop.f32.mrb[0].mxu0
        %v4009 = vadd.f32 0.0, %v4008
        %v4010 = vpop.f32.mrb[0].mxu0
        %v4011 = vadd.f32 0.0, %v4010
        %v4012 = vpop.f32.mrb[0].mxu0
        %v4013 = vadd.f32 0.0, %v4012
        %v4014 = vpop.f32.mrb[0].mxu0
        %v4015 = vadd.f32 0.0, %v4014
        %4016 = vmatprep.mubr.bf16.mxu0 %v3301
        %4017 = vmatmul.mubr.bf16.gmra.mrb[0].mxu0 %v3300
        %v4018 = vpop.f32.mrb[0].mxu0
        %v4019 = vadd.f32 0.0, %v4018
        %v4020 = vpop.f32.mrb[0].mxu0
        %v4021 = vadd.f32 0.0, %v4020
        %v4022 = vpop.f32.mrb[0].mxu0
        %v4023 = vadd.f32 0.0, %v4022
        %v4024 = vpop.f32.mrb[0].mxu0
        %v4025 = vadd.f32 0.0, %v4024
        %4026 = vmatprep.mubr.bf16.mxu0 %v3305
        %4027 = vmatmul.mubr.bf16.gmra.mrb[0].mxu0 %v3304
        %v4028 = vpop.f32.mrb[0].mxu0
        %v4029 = vadd.f32 0.0, %v4028
        %v4030 = vpop.f32.mrb[0].mxu0
        %v4031 = vadd.f32 0.0, %v4030
        %v4032 = vpop.f32.mrb[0].mxu0
        %v4033 = vadd.f32 0.0, %v4032
        %v4034 = vpop.f32.mrb[0].mxu0
        %v4035 = vadd.f32 0.0, %v4034
        %4036 = vmatprep.mubr.bf16.mxu0 %v3309
        %4037 = vmatmul.mubr.bf16.gmra.mrb[0].mxu0 %v3308
        %v4038 = vpop.f32.mrb[0].mxu0
        %v4039 = vadd.f32 0.0, %v4038
        %v4040 = vpop.f32.mrb[0].mxu0
        %v4041 = vadd.f32 0.0, %v4040
        %v4042 = vpop.f32.mrb[0].mxu0
        %v4043 = vadd.f32 0.0, %v4042
        %v4044 = vpop.f32.mrb[0].mxu0
        %v4045 = vadd.f32 0.0, %v4044
        %4046 = vmatprep.mubr.bf16.mxu0 %v3313
        %4047 = vmatmul.mubr.bf16.gmra.mrb[0].mxu0 %v3312
        %v4048 = vpop.f32.mrb[0].mxu0
        %v4049 = vadd.f32 0.0, %v4048
        %v4050 = vpop.f32.mrb[0].mxu0
        %v4051 = vadd.f32 0.0, %v4050
        %v4052 = vpop.f32.mrb[0].mxu0
        %v4053 = vadd.f32 0.0, %v4052
        %v4054 = vpop.f32.mrb[0].mxu0
        %v4055 = vadd.f32 0.0, %v4054
        %4056 = vmatprep.mubr.bf16.mxu0 %v3317
        %4057 = vmatmul.mubr.bf16.gmra.mrb[0].mxu0 %v3316
        %v4058 = vpop.f32.mrb[0].mxu0
        %v4059 = vadd.f32 0.0, %v4058
        %v4060 = vpop.f32.mrb[0].mxu0
        %v4061 = vadd.f32 0.0, %v4060
        %v4062 = vpop.f32.mrb[0].mxu0
        %v4063 = vadd.f32 0.0, %v4062
        %v4064 = vpop.f32.mrb[0].mxu0
        %v4065 = vadd.f32 0.0, %v4064
        %4066 = vmatprep.mubr.bf16.mxu0 %v3321
        %4067 = vmatmul.mubr.bf16.gmra.mrb[0].mxu0 %v3320
        %v4068 = vpop.f32.mrb[0].mxu0
        %v4069 = vadd.f32 0.0, %v4068
        %v4070 = vpop.f32.mrb[0].mxu0
        %v4071 = vadd.f32 0.0, %v4070
        %v4072 = vpop.f32.mrb[0].mxu0
        %v4073 = vadd.f32 0.0, %v4072
        %v4074 = vpop.f32.mrb[0].mxu0
        %v4075 = vadd.f32 0.0, %v4074
        %4076 = vdwg.mxu0
        %4077 = vmatprep.subr.bf16.mxu0 %v3773
        %4078 = vmatpush1.bf16.msra.mxu0 %v3772
        %4079 = vmatprep.subr.bf16.mxu0 %v3777
        %4080 = vmatpush1.bf16.msra.mxu0 %v3776
        %4081 = vmatprep.subr.bf16.mxu0 %v3781
        %4082 = vmatpush1.bf16.msra.mxu0 %v3780
        %4083 = vmatprep.subr.bf16.mxu0 %v3785
        %4084 = vmatpush1.bf16.msra.mxu0 %v3784
        %4085 = vmatprep.subr.bf16.mxu0 %v3789
        %4086 = vmatpush1.bf16.msra.mxu0 %v3788
        %4087 = vmatprep.subr.bf16.mxu0 %v3793
        %4088 = vmatpush1.bf16.msra.mxu0 %v3792
        %4089 = vmatprep.subr.bf16.mxu0 %v3797
        %4090 = vmatpush1.bf16.msra.mxu0 %v3796
        %4091 = vmatprep.subr.bf16.mxu0 %v3801
        %4092 = vmatpush1.bf16.msra.mxu0 %v3800
        %4093 = vmatprep.subr.bf16.mxu0 %v3805
        %4094 = vmatpush1.bf16.msra.mxu0 %v3804
        %4095 = vmatprep.subr.bf16.mxu0 %v3809
        %4096 = vmatpush1.bf16.msra.mxu0 %v3808
        %4097 = vmatprep.subr.bf16.mxu0 %v3813
        %4098 = vmatpush1.bf16.msra.mxu0 %v3812
        %4099 = vmatprep.subr.bf16.mxu0 %v3817
        %4100 = vmatpush1.bf16.msra.mxu0 %v3816
        %4101 = vmatprep.subr.bf16.mxu0 %v3821
        %4102 = vmatpush1.bf16.msra.mxu0 %v3820
        %4103 = vmatprep.subr.bf16.mxu0 %v3825
        %4104 = vmatpush1.bf16.msra.mxu0 %v3824
        %4105 = vmatprep.subr.bf16.mxu0 %v3829
        %4106 = vmatpush1.bf16.msra.mxu0 %v3828
        %4107 = vmatprep.subr.bf16.mxu0 %v3833
        %4108 = vmatpush1.bf16.msra.mxu0 %v3832
        %4109 = vmatprep.mubr.bf16.mxu0 %v3295
        %4110 = vmatmul.mubr.bf16.gmra.mrb[0].mxu0 %v3294
        %v4111 = vpop.f32.mrb[0].mxu0
        %v4112 = vadd.f32 %v3999, %v4111
        %v4113 = vpop.f32.mrb[0].mxu0
        %v4114 = vadd.f32 %v4001, %v4113
        %v4115 = vpop.f32.mrb[0].mxu0
        %v4116 = vadd.f32 %v4003, %v4115
        %v4117 = vpop.f32.mrb[0].mxu0
        %v4118 = vadd.f32 %v4005, %v4117
        %4119 = vmatprep.mubr.bf16.mxu0 %v3299
        %4120 = vmatmul.mubr.bf16.gmra.mrb[0].mxu0 %v3298
        %v4121 = vpop.f32.mrb[0].mxu0
        %v4122 = vadd.f32 %v4009, %v4121
        %v4123 = vpop.f32.mrb[0].mxu0
        %v4124 = vadd.f32 %v4011, %v4123
        %v4125 = vpop.f32.mrb[0].mxu0
        %v4126 = vadd.f32 %v4013, %v4125
        %v4127 = vpop.f32.mrb[0].mxu0
        %v4128 = vadd.f32 %v4015, %v4127
        %4129 = vmatprep.mubr.bf16.mxu0 %v3303
        %4130 = vmatmul.mubr.bf16.gmra.mrb[0].mxu0 %v3302
        %v4131 = vpop.f32.mrb[0].mxu0
        %v4132 = vadd.f32 %v4019, %v4131
        %v4133 = vpop.f32.mrb[0].mxu0
        %v4134 = vadd.f32 %v4021, %v4133
        %v4135 = vpop.f32.mrb[0].mxu0
        %v4136 = vadd.f32 %v4023, %v4135
        %v4137 = vpop.f32.mrb[0].mxu0
        %v4138 = vadd.f32 %v4025, %v4137
        %4139 = vmatprep.mubr.bf16.mxu0 %v3307
        %4140 = vmatmul.mubr.bf16.gmra.mrb[0].mxu0 %v3306
        %v4141 = vpop.f32.mrb[0].mxu0
        %v4142 = vadd.f32 %v4029, %v4141
        %v4143 = vpop.f32.mrb[0].mxu0
        %v4144 = vadd.f32 %v4031, %v4143
        %v4145 = vpop.f32.mrb[0].mxu0
        %v4146 = vadd.f32 %v4033, %v4145
        %v4147 = vpop.f32.mrb[0].mxu0
        %v4148 = vadd.f32 %v4035, %v4147
        %4149 = vmatprep.mubr.bf16.mxu0 %v3311
        %4150 = vmatmul.mubr.bf16.gmra.mrb[0].mxu0 %v3310
        %v4151 = vpop.f32.mrb[0].mxu0
        %v4152 = vadd.f32 %v4039, %v4151
        %v4153 = vpop.f32.mrb[0].mxu0
        %v4154 = vadd.f32 %v4041, %v4153
        %v4155 = vpop.f32.mrb[0].mxu0
        %v4156 = vadd.f32 %v4043, %v4155
        %v4157 = vpop.f32.mrb[0].mxu0
        %v4158 = vadd.f32 %v4045, %v4157
        %4159 = vmatprep.mubr.bf16.mxu0 %v3315
        %4160 = vmatmul.mubr.bf16.gmra.mrb[0].mxu0 %v3314
        %v4161 = vpop.f32.mrb[0].mxu0
        %v4162 = vadd.f32 %v4049, %v4161
        %v4163 = vpop.f32.mrb[0].mxu0
        %v4164 = vadd.f32 %v4051, %v4163
        %v4165 = vpop.f32.mrb[0].mxu0
        %v4166 = vadd.f32 %v4053, %v4165
        %v4167 = vpop.f32.mrb[0].mxu0
        %v4168 = vadd.f32 %v4055, %v4167
        %4169 = vmatprep.mubr.bf16.mxu0 %v3319
        %4170 = vmatmul.mubr.bf16.gmra.mrb[0].mxu0 %v3318
        %v4171 = vpop.f32.mrb[0].mxu0
        %v4172 = vadd.f32 %v4059, %v4171
        %v4173 = vpop.f32.mrb[0].mxu0
        %v4174 = vadd.f32 %v4061, %v4173
        %v4175 = vpop.f32.mrb[0].mxu0
        %v4176 = vadd.f32 %v4063, %v4175
        %v4177 = vpop.f32.mrb[0].mxu0
        %v4178 = vadd.f32 %v4065, %v4177
        %4179 = vmatprep.mubr.bf16.mxu0 %v3323
        %4180 = vmatmul.mubr.bf16.gmra.mrb[0].mxu0 %v3322
        %v4181 = vpop.f32.mrb[0].mxu0
        %v4182 = vadd.f32 %v4069, %v4181
        %v4183 = vpop.f32.mrb[0].mxu0
        %v4184 = vadd.f32 %v4071, %v4183
        %v4185 = vpop.f32.mrb[0].mxu0
        %v4186 = vadd.f32 %v4073, %v4185
        %v4187 = vpop.f32.mrb[0].mxu0
        %v4188 = vadd.f32 %v4075, %v4187
        %4189 = vdwg.mxu0
        %4190 = vmatprep.subr.bf16.mxu0 %v3711
        %4191 = vmatpush1.bf16.msra.mxu0 %v3710
        %4192 = vmatprep.subr.bf16.mxu0 %v3715
        %4193 = vmatpush1.bf16.msra.mxu0 %v3714
        %4194 = vmatprep.subr.bf16.mxu0 %v3719
        %4195 = vmatpush1.bf16.msra.mxu0 %v3718
        %4196 = vmatprep.subr.bf16.mxu0 %v3723
        %4197 = vmatpush1.bf16.msra.mxu0 %v3722
        %4198 = vmatprep.subr.bf16.mxu0 %v3727
        %4199 = vmatpush1.bf16.msra.mxu0 %v3726
        %4200 = vmatprep.subr.bf16.mxu0 %v3731
        %4201 = vmatpush1.bf16.msra.mxu0 %v3730
        %4202 = vmatprep.subr.bf16.mxu0 %v3735
        %4203 = vmatpush1.bf16.msra.mxu0 %v3734
        %4204 = vmatprep.subr.bf16.mxu0 %v3739
        %4205 = vmatpush1.bf16.msra.mxu0 %v3738
        %4206 = vmatprep.subr.bf16.mxu0 %v3743
        %4207 = vmatpush1.bf16.msra.mxu0 %v3742
        %4208 = vmatprep.subr.bf16.mxu0 %v3747
        %4209 = vmatpush1.bf16.msra.mxu0 %v3746
        %4210 = vmatprep.subr.bf16.mxu0 %v3751
        %4211 = vmatpush1.bf16.msra.mxu0 %v3750
        %4212 = vmatprep.subr.bf16.mxu0 %v3755
        %4213 = vmatpush1.bf16.msra.mxu0 %v3754
        %4214 = vmatprep.subr.bf16.mxu0 %v3759
        %4215 = vmatpush1.bf16.msra.mxu0 %v3758
        %4216 = vmatprep.subr.bf16.mxu0 %v3763
        %4217 = vmatpush1.bf16.msra.mxu0 %v3762
        %4218 = vmatprep.subr.bf16.mxu0 %v3767
        %4219 = vmatpush1.bf16.msra.mxu0 %v3766
        %4220 = vmatprep.subr.bf16.mxu0 %v3771
        %4221 = vmatpush1.bf16.msra.mxu0 %v3770
        %4222 = vmatprep.mubr.bf16.mxu0 %v3293
        %4223 = vmatmul.mubr.bf16.gmra.mrb[0].mxu0 %v3292
        %v4224 = vpop.f32.mrb[0].mxu0
        %v4225 = vadd.f32 0.0, %v4224
        %v4226 = vpop.f32.mrb[0].mxu0
        %v4227 = vadd.f32 0.0, %v4226
        %v4228 = vpop.f32.mrb[0].mxu0
        %v4229 = vadd.f32 0.0, %v4228
        %v4230 = vpop.f32.mrb[0].mxu0
        %v4231 = vadd.f32 0.0, %v4230
        %4232 = vmatprep.mubr.bf16.mxu0 %v3297
        %4233 = vmatmul.mubr.bf16.gmra.mrb[0].mxu0 %v3296
        %v4234 = vpop.f32.mrb[0].mxu0
        %v4235 = vadd.f32 0.0, %v4234
        %v4236 = vpop.f32.mrb[0].mxu0
        %v4237 = vadd.f32 0.0, %v4236
        %v4238 = vpop.f32.mrb[0].mxu0
        %v4239 = vadd.f32 0.0, %v4238
        %v4240 = vpop.f32.mrb[0].mxu0
        %v4241 = vadd.f32 0.0, %v4240
        %4242 = vmatprep.mubr.bf16.mxu0 %v3301
        %4243 = vmatmul.mubr.bf16.gmra.mrb[0].mxu0 %v3300
        %v4244 = vpop.f32.mrb[0].mxu0
        %v4245 = vadd.f32 0.0, %v4244
        %v4246 = vpop.f32.mrb[0].mxu0
        %v4247 = vadd.f32 0.0, %v4246
        %v4248 = vpop.f32.mrb[0].mxu0
        %v4249 = vadd.f32 0.0, %v4248
        %v4250 = vpop.f32.mrb[0].mxu0
        %v4251 = vadd.f32 0.0, %v4250
        %4252 = vmatprep.mubr.bf16.mxu0 %v3305
        %4253 = vmatmul.mubr.bf16.gmra.mrb[0].mxu0 %v3304
        %v4254 = vpop.f32.mrb[0].mxu0
        %v4255 = vadd.f32 0.0, %v4254
        %v4256 = vpop.f32.mrb[0].mxu0
        %v4257 = vadd.f32 0.0, %v4256
        %v4258 = vpop.f32.mrb[0].mxu0
        %v4259 = vadd.f32 0.0, %v4258
        %v4260 = vpop.f32.mrb[0].mxu0
        %v4261 = vadd.f32 0.0, %v4260
        %4262 = vmatprep.mubr.bf16.mxu0 %v3309
        %4263 = vmatmul.mubr.bf16.gmra.mrb[0].mxu0 %v3308
        %v4264 = vpop.f32.mrb[0].mxu0
        %v4265 = vadd.f32 0.0, %v4264
        %v4266 = vpop.f32.mrb[0].mxu0
        %v4267 = vadd.f32 0.0, %v4266
        %v4268 = vpop.f32.mrb[0].mxu0
        %v4269 = vadd.f32 0.0, %v4268
        %v4270 = vpop.f32.mrb[0].mxu0
        %v4271 = vadd.f32 0.0, %v4270
        %4272 = vmatprep.mubr.bf16.mxu0 %v3313
        %4273 = vmatmul.mubr.bf16.gmra.mrb[0].mxu0 %v3312
        %v4274 = vpop.f32.mrb[0].mxu0
        %v4275 = vadd.f32 0.0, %v4274
        %v4276 = vpop.f32.mrb[0].mxu0
        %v4277 = vadd.f32 0.0, %v4276
        %v4278 = vpop.f32.mrb[0].mxu0
        %v4279 = vadd.f32 0.0, %v4278
        %v4280 = vpop.f32.mrb[0].mxu0
        %v4281 = vadd.f32 0.0, %v4280
        %4282 = vmatprep.mubr.bf16.mxu0 %v3317
        %4283 = vmatmul.mubr.bf16.gmra.mrb[0].mxu0 %v3316
        %v4284 = vpop.f32.mrb[0].mxu0
        %v4285 = vadd.f32 0.0, %v4284
        %v4286 = vpop.f32.mrb[0].mxu0
        %v4287 = vadd.f32 0.0, %v4286
        %v4288 = vpop.f32.mrb[0].mxu0
        %v4289 = vadd.f32 0.0, %v4288
        %v4290 = vpop.f32.mrb[0].mxu0
        %v4291 = vadd.f32 0.0, %v4290
        %4292 = vmatprep.mubr.bf16.mxu0 %v3321
        %4293 = vmatmul.mubr.bf16.gmra.mrb[0].mxu0 %v3320
        %v4294 = vpop.f32.mrb[0].mxu0
        %v4295 = vadd.f32 0.0, %v4294
        %v4296 = vpop.f32.mrb[0].mxu0
        %v4297 = vadd.f32 0.0, %v4296
        %v4298 = vpop.f32.mrb[0].mxu0
        %v4299 = vadd.f32 0.0, %v4298
        %v4300 = vpop.f32.mrb[0].mxu0
        %v4301 = vadd.f32 0.0, %v4300
        %4302 = vdwg.mxu0
        %4303 = vmatprep.subr.bf16.mxu0 %v3775
        %4304 = vmatpush1.bf16.msra.mxu0 %v3774
        %4305 = vmatprep.subr.bf16.mxu0 %v3779
        %4306 = vmatpush1.bf16.msra.mxu0 %v3778
        %4307 = vmatprep.subr.bf16.mxu0 %v3783
        %4308 = vmatpush1.bf16.msra.mxu0 %v3782
        %4309 = vmatprep.subr.bf16.mxu0 %v3787
        %4310 = vmatpush1.bf16.msra.mxu0 %v3786
        %4311 = vmatprep.subr.bf16.mxu0 %v3791
        %4312 = vmatpush1.bf16.msra.mxu0 %v3790
        %4313 = vmatprep.subr.bf16.mxu0 %v3795
        %4314 = vmatpush1.bf16.msra.mxu0 %v3794
        %4315 = vmatprep.subr.bf16.mxu0 %v3799
        %4316 = vmatpush1.bf16.msra.mxu0 %v3798
        %4317 = vmatprep.subr.bf16.mxu0 %v3803
        %4318 = vmatpush1.bf16.msra.mxu0 %v3802
        %4319 = vmatprep.subr.bf16.mxu0 %v3807
        %4320 = vmatpush1.bf16.msra.mxu0 %v3806
        %4321 = vmatprep.subr.bf16.mxu0 %v3811
        %4322 = vmatpush1.bf16.msra.mxu0 %v3810
        %4323 = vmatprep.subr.bf16.mxu0 %v3815
        %4324 = vmatpush1.bf16.msra.mxu0 %v3814
        %4325 = vmatprep.subr.bf16.mxu0 %v3819
        %4326 = vmatpush1.bf16.msra.mxu0 %v3818
        %4327 = vmatprep.subr.bf16.mxu0 %v3823
        %4328 = vmatpush1.bf16.msra.mxu0 %v3822
        %4329 = vmatprep.subr.bf16.mxu0 %v3827
        %4330 = vmatpush1.bf16.msra.mxu0 %v3826
        %4331 = vmatprep.subr.bf16.mxu0 %v3831
        %4332 = vmatpush1.bf16.msra.mxu0 %v3830
        %4333 = vmatprep.subr.bf16.mxu0 %v3835
        %4334 = vmatpush1.bf16.msra.mxu0 %v3834
        %4335 = vmatprep.mubr.bf16.mxu0 %v3295
        %4336 = vmatmul.mubr.bf16.gmra.mrb[0].mxu0 %v3294
        %v4337 = vpop.f32.mrb[0].mxu0
        %v4338 = vadd.f32 %v4225, %v4337
        %v4339 = vpop.f32.mrb[0].mxu0
        %v4340 = vadd.f32 %v4227, %v4339
        %v4341 = vpop.f32.mrb[0].mxu0
        %v4342 = vadd.f32 %v4229, %v4341
        %v4343 = vpop.f32.mrb[0].mxu0
        %v4344 = vadd.f32 %v4231, %v4343
        %4345 = vmatprep.mubr.bf16.mxu0 %v3299
        %4346 = vmatmul.mubr.bf16.gmra.mrb[0].mxu0 %v3298
        %v4347 = vpop.f32.mrb[0].mxu0
        %v4348 = vadd.f32 %v4235, %v4347
        %v4349 = vpop.f32.mrb[0].mxu0
        %v4350 = vadd.f32 %v4237, %v4349
        %v4351 = vpop.f32.mrb[0].mxu0
        %v4352 = vadd.f32 %v4239, %v4351
        %v4353 = vpop.f32.mrb[0].mxu0
        %v4354 = vadd.f32 %v4241, %v4353
        %4355 = vmatprep.mubr.bf16.mxu0 %v3303
        %4356 = vmatmul.mubr.bf16.gmra.mrb[0].mxu0 %v3302
        %v4357 = vpop.f32.mrb[0].mxu0
        %v4358 = vadd.f32 %v4245, %v4357
        %v4359 = vpop.f32.mrb[0].mxu0
        %v4360 = vadd.f32 %v4247, %v4359
        %v4361 = vpop.f32.mrb[0].mxu0
        %v4362 = vadd.f32 %v4249, %v4361
        %v4363 = vpop.f32.mrb[0].mxu0
        %v4364 = vadd.f32 %v4251, %v4363
        %4365 = vmatprep.mubr.bf16.mxu0 %v3307
        %4366 = vmatmul.mubr.bf16.gmra.mrb[0].mxu0 %v3306
        %v4367 = vpop.f32.mrb[0].mxu0
        %v4368 = vadd.f32 %v4255, %v4367
        %v4369 = vpop.f32.mrb[0].mxu0
        %v4370 = vadd.f32 %v4257, %v4369
        %v4371 = vpop.f32.mrb[0].mxu0
        %v4372 = vadd.f32 %v4259, %v4371
        %v4373 = vpop.f32.mrb[0].mxu0
        %v4374 = vadd.f32 %v4261, %v4373
        %4375 = vmatprep.mubr.bf16.mxu0 %v3311
        %4376 = vmatmul.mubr.bf16.gmra.mrb[0].mxu0 %v3310
        %v4377 = vpop.f32.mrb[0].mxu0
        %v4378 = vadd.f32 %v4265, %v4377
        %v4379 = vpop.f32.mrb[0].mxu0
        %v4380 = vadd.f32 %v4267, %v4379
        %v4381 = vpop.f32.mrb[0].mxu0
        %v4382 = vadd.f32 %v4269, %v4381
        %v4383 = vpop.f32.mrb[0].mxu0
        %v4384 = vadd.f32 %v4271, %v4383
        %4385 = vmatprep.mubr.bf16.mxu0 %v3315
        %4386 = vmatmul.mubr.bf16.gmra.mrb[0].mxu0 %v3314
        %v4387 = vpop.f32.mrb[0].mxu0
        %v4388 = vadd.f32 %v4275, %v4387
        %v4389 = vpop.f32.mrb[0].mxu0
        %v4390 = vadd.f32 %v4277, %v4389
        %v4391 = vpop.f32.mrb[0].mxu0
        %v4392 = vadd.f32 %v4279, %v4391
        %v4393 = vpop.f32.mrb[0].mxu0
        %v4394 = vadd.f32 %v4281, %v4393
        %4395 = vmatprep.mubr.bf16.mxu0 %v3319
        %4396 = vmatmul.mubr.bf16.gmra.mrb[0].mxu0 %v3318
        %v4397 = vpop.f32.mrb[0].mxu0
        %v4398 = vadd.f32 %v4285, %v4397
        %v4399 = vpop.f32.mrb[0].mxu0
        %v4400 = vadd.f32 %v4287, %v4399
        %v4401 = vpop.f32.mrb[0].mxu0
        %v4402 = vadd.f32 %v4289, %v4401
        %v4403 = vpop.f32.mrb[0].mxu0
        %v4404 = vadd.f32 %v4291, %v4403
        %4405 = vmatprep.mubr.bf16.mxu0 %v3323
        %4406 = vmatmul.mubr.bf16.gmra.mrb[0].mxu0 %v3322
        %v4407 = vpop.f32.mrb[0].mxu0
        %v4408 = vadd.f32 %v4295, %v4407
        %v4409 = vpop.f32.mrb[0].mxu0
        %v4410 = vadd.f32 %v4297, %v4409
        %v4411 = vpop.f32.mrb[0].mxu0
        %v4412 = vadd.f32 %v4299, %v4411
        %v4413 = vpop.f32.mrb[0].mxu0
        %v4414 = vadd.f32 %v4301, %v4413
        %4415 = vdwg.mxu0
        %v4416 = vadd.f32 %v4112, %v4116
        %v4417 = vadd.f32 %v4416, %v4122
        %v4418 = vadd.f32 %v4417, %v4126
        %v4419 = vadd.f32 %v4418, %v4132
        %v4420 = vadd.f32 %v4419, %v4136
        %v4421 = vadd.f32 %v4420, %v4142
        %v4422 = vadd.f32 %v4421, %v4146
        %v4423 = vadd.f32 %v4422, %v4152
        %v4424 = vadd.f32 %v4423, %v4156
        %v4425 = vadd.f32 %v4424, %v4162
        %v4426 = vadd.f32 %v4425, %v4166
        %v4427 = vadd.f32 %v4426, %v4172
        %v4428 = vadd.f32 %v4427, %v4176
        %v4429 = vadd.f32 %v4428, %v4182
        %v4430 = vadd.f32 %v4429, %v4186
        %v4431 = vrot.slane %v4430, 4
        %v4432 = vadd.f32 %v4430, %v4431
        %v4433 = vrot.slane %v4432, 2
        %v4434 = vadd.f32 %v4432, %v4433
        %v4435 = vrot.slane %v4434, 1
        %v4436 = vadd.f32 %v4434, %v4435
        %v4437 = vadd.f32 %v4114, %v4118
        %v4438 = vadd.f32 %v4437, %v4124
        %v4439 = vadd.f32 %v4438, %v4128
        %v4440 = vadd.f32 %v4439, %v4134
        %v4441 = vadd.f32 %v4440, %v4138
        %v4442 = vadd.f32 %v4441, %v4144
        %v4443 = vadd.f32 %v4442, %v4148
        %v4444 = vadd.f32 %v4443, %v4154
        %v4445 = vadd.f32 %v4444, %v4158
        %v4446 = vadd.f32 %v4445, %v4164
        %v4447 = vadd.f32 %v4446, %v4168
        %v4448 = vadd.f32 %v4447, %v4174
        %v4449 = vadd.f32 %v4448, %v4178
        %v4450 = vadd.f32 %v4449, %v4184
        %v4451 = vadd.f32 %v4450, %v4188
        %v4452 = vrot.slane %v4451, 4
        %v4453 = vadd.f32 %v4451, %v4452
        %v4454 = vrot.slane %v4453, 2
        %v4455 = vadd.f32 %v4453, %v4454
        %v4456 = vrot.slane %v4455, 1
        %v4457 = vadd.f32 %v4455, %v4456
        %v4458 = vadd.f32 %v4338, %v4342
        %v4459 = vadd.f32 %v4458, %v4348
        %v4460 = vadd.f32 %v4459, %v4352
        %v4461 = vadd.f32 %v4460, %v4358
        %v4462 = vadd.f32 %v4461, %v4362
        %v4463 = vadd.f32 %v4462, %v4368
        %v4464 = vadd.f32 %v4463, %v4372
        %v4465 = vadd.f32 %v4464, %v4378
        %v4466 = vadd.f32 %v4465, %v4382
        %v4467 = vadd.f32 %v4466, %v4388
        %v4468 = vadd.f32 %v4467, %v4392
        %v4469 = vadd.f32 %v4468, %v4398
        %v4470 = vadd.f32 %v4469, %v4402
        %v4471 = vadd.f32 %v4470, %v4408
        %v4472 = vadd.f32 %v4471, %v4412
        %v4473 = vrot.slane %v4472, 4
        %v4474 = vadd.f32 %v4472, %v4473
        %v4475 = vrot.slane %v4474, 2
        %v4476 = vadd.f32 %v4474, %v4475
        %v4477 = vrot.slane %v4476, 1
        %v4478 = vadd.f32 %v4476, %v4477
        %v4479 = vadd.f32 %v4340, %v4344
        %v4480 = vadd.f32 %v4479, %v4350
        %v4481 = vadd.f32 %v4480, %v4354
        %v4482 = vadd.f32 %v4481, %v4360
        %v4483 = vadd.f32 %v4482, %v4364
        %v4484 = vadd.f32 %v4483, %v4370
        %v4485 = vadd.f32 %v4484, %v4374
        %v4486 = vadd.f32 %v4485, %v4380
        %v4487 = vadd.f32 %v4486, %v4384
        %v4488 = vadd.f32 %v4487, %v4390
        %v4489 = vadd.f32 %v4488, %v4394
        %v4490 = vadd.f32 %v4489, %v4400
        %v4491 = vadd.f32 %v4490, %v4404
        %v4492 = vadd.f32 %v4491, %v4410
        %v4493 = vadd.f32 %v4492, %v4414
        %v4494 = vrot.slane %v4493, 4
        %v4495 = vadd.f32 %v4493, %v4494
        %v4496 = vrot.slane %v4495, 2
        %v4497 = vadd.f32 %v4495, %v4496
        %v4498 = vrot.slane %v4497, 1
        %v4499 = vadd.f32 %v4497, %v4498
        %v4500 = vmul.f32 %v4436, %v1131
        %v4501 = vmul.f32 %v4457, %v1131
        %v4502 = vmul.f32 %v4478, %v1131
        %v4503 = vmul.f32 %v4499, %v1131
        %v4504 = vsub.f32 %v4112, %v4500
        %v4505 = vsub.f32 %v4114, %v4501
        %v4506 = vsub.f32 %v4338, %v4502
        %v4507 = vsub.f32 %v4340, %v4503
        %v4508 = vsub.f32 %v4116, %v4500
        %v4509 = vsub.f32 %v4118, %v4501
        %v4510 = vsub.f32 %v4342, %v4502
        %v4511 = vsub.f32 %v4344, %v4503
        %v4512 = vsub.f32 %v4122, %v4500
        %v4513 = vsub.f32 %v4124, %v4501
        %v4514 = vsub.f32 %v4348, %v4502
        %v4515 = vsub.f32 %v4350, %v4503
        %v4516 = vsub.f32 %v4126, %v4500
        %v4517 = vsub.f32 %v4128, %v4501
        %v4518 = vsub.f32 %v4352, %v4502
        %v4519 = vsub.f32 %v4354, %v4503
        %v4520 = vsub.f32 %v4132, %v4500
        %v4521 = vsub.f32 %v4134, %v4501
        %v4522 = vsub.f32 %v4358, %v4502
        %v4523 = vsub.f32 %v4360, %v4503
        %v4524 = vsub.f32 %v4136, %v4500
        %v4525 = vsub.f32 %v4138, %v4501
        %v4526 = vsub.f32 %v4362, %v4502
        %v4527 = vsub.f32 %v4364, %v4503
        %v4528 = vsub.f32 %v4142, %v4500
        %v4529 = vsub.f32 %v4144, %v4501
        %v4530 = vsub.f32 %v4368, %v4502
        %v4531 = vsub.f32 %v4370, %v4503
        %v4532 = vsub.f32 %v4146, %v4500
        %v4533 = vsub.f32 %v4148, %v4501
        %v4534 = vsub.f32 %v4372, %v4502
        %v4535 = vsub.f32 %v4374, %v4503
        %v4536 = vsub.f32 %v4152, %v4500
        %v4537 = vsub.f32 %v4154, %v4501
        %v4538 = vsub.f32 %v4378, %v4502
        %v4539 = vsub.f32 %v4380, %v4503
        %v4540 = vsub.f32 %v4156, %v4500
        %v4541 = vsub.f32 %v4158, %v4501
        %v4542 = vsub.f32 %v4382, %v4502
        %v4543 = vsub.f32 %v4384, %v4503
        %v4544 = vsub.f32 %v4162, %v4500
        %v4545 = vsub.f32 %v4164, %v4501
        %v4546 = vsub.f32 %v4388, %v4502
        %v4547 = vsub.f32 %v4390, %v4503
        %v4548 = vsub.f32 %v4166, %v4500
        %v4549 = vsub.f32 %v4168, %v4501
        %v4550 = vsub.f32 %v4392, %v4502
        %v4551 = vsub.f32 %v4394, %v4503
        %v4552 = vsub.f32 %v4172, %v4500
        %v4553 = vsub.f32 %v4174, %v4501
        %v4554 = vsub.f32 %v4398, %v4502
        %v4555 = vsub.f32 %v4400, %v4503
        %v4556 = vsub.f32 %v4176, %v4500
        %v4557 = vsub.f32 %v4178, %v4501
        %v4558 = vsub.f32 %v4402, %v4502
        %v4559 = vsub.f32 %v4404, %v4503
        %v4560 = vsub.f32 %v4182, %v4500
        %v4561 = vsub.f32 %v4184, %v4501
        %v4562 = vsub.f32 %v4408, %v4502
        %v4563 = vsub.f32 %v4410, %v4503
        %v4564 = vsub.f32 %v4186, %v4500
        %v4565 = vsub.f32 %v4188, %v4501
        %v4566 = vsub.f32 %v4412, %v4502
        %v4567 = vsub.f32 %v4414, %v4503
        %v4568 = vmul.f32 %v4504, %v4504
        %v4569 = vmul.f32 %v4505, %v4505
        %v4570 = vmul.f32 %v4506, %v4506
        %v4571 = vmul.f32 %v4507, %v4507
        %v4572 = vmul.f32 %v4508, %v4508
        %v4573 = vmul.f32 %v4509, %v4509
        %v4574 = vmul.f32 %v4510, %v4510
        %v4575 = vmul.f32 %v4511, %v4511
        %v4576 = vmul.f32 %v4512, %v4512
        %v4577 = vmul.f32 %v4513, %v4513
        %v4578 = vmul.f32 %v4514, %v4514
        %v4579 = vmul.f32 %v4515, %v4515
        %v4580 = vmul.f32 %v4516, %v4516
        %v4581 = vmul.f32 %v4517, %v4517
        %v4582 = vmul.f32 %v4518, %v4518
        %v4583 = vmul.f32 %v4519, %v4519
        %v4584 = vmul.f32 %v4520, %v4520
        %v4585 = vmul.f32 %v4521, %v4521
        %v4586 = vmul.f32 %v4522, %v4522
        %v4587 = vmul.f32 %v4523, %v4523
        %v4588 = vmul.f32 %v4524, %v4524
        %v4589 = vmul.f32 %v4525, %v4525
        %v4590 = vmul.f32 %v4526, %v4526
        %v4591 = vmul.f32 %v4527, %v4527
        %v4592 = vmul.f32 %v4528, %v4528
        %v4593 = vmul.f32 %v4529, %v4529
        %v4594 = vmul.f32 %v4530, %v4530
        %v4595 = vmul.f32 %v4531, %v4531
        %v4596 = vmul.f32 %v4532, %v4532
        %v4597 = vmul.f32 %v4533, %v4533
        %v4598 = vmul.f32 %v4534, %v4534
        %v4599 = vmul.f32 %v4535, %v4535
        %v4600 = vmul.f32 %v4536, %v4536
        %v4601 = vmul.f32 %v4537, %v4537
        %v4602 = vmul.f32 %v4538, %v4538
        %v4603 = vmul.f32 %v4539, %v4539
        %v4604 = vmul.f32 %v4540, %v4540
        %v4605 = vmul.f32 %v4541, %v4541
        %v4606 = vmul.f32 %v4542, %v4542
        %v4607 = vmul.f32 %v4543, %v4543
        %v4608 = vmul.f32 %v4544, %v4544
        %v4609 = vmul.f32 %v4545, %v4545
        %v4610 = vmul.f32 %v4546, %v4546
        %v4611 = vmul.f32 %v4547, %v4547
        %v4612 = vmul.f32 %v4548, %v4548
        %v4613 = vmul.f32 %v4549, %v4549
        %v4614 = vmul.f32 %v4550, %v4550
        %v4615 = vmul.f32 %v4551, %v4551
        %v4616 = vmul.f32 %v4552, %v4552
        %v4617 = vmul.f32 %v4553, %v4553
        %v4618 = vmul.f32 %v4554, %v4554
        %v4619 = vmul.f32 %v4555, %v4555
        %v4620 = vmul.f32 %v4556, %v4556
        %v4621 = vmul.f32 %v4557, %v4557
        %v4622 = vmul.f32 %v4558, %v4558
        %v4623 = vmul.f32 %v4559, %v4559
        %v4624 = vmul.f32 %v4560, %v4560
        %v4625 = vmul.f32 %v4561, %v4561
        %v4626 = vmul.f32 %v4562, %v4562
        %v4627 = vmul.f32 %v4563, %v4563
        %v4628 = vmul.f32 %v4564, %v4564
        %v4629 = vmul.f32 %v4565, %v4565
        %v4630 = vmul.f32 %v4566, %v4566
        %v4631 = vmul.f32 %v4567, %v4567
        %v4632 = vadd.f32 %v4568, %v4572
        %v4633 = vadd.f32 %v4632, %v4576
        %v4634 = vadd.f32 %v4633, %v4580
        %v4635 = vadd.f32 %v4634, %v4584
        %v4636 = vadd.f32 %v4635, %v4588
        %v4637 = vadd.f32 %v4636, %v4592
        %v4638 = vadd.f32 %v4637, %v4596
        %v4639 = vadd.f32 %v4638, %v4600
        %v4640 = vadd.f32 %v4639, %v4604
        %v4641 = vadd.f32 %v4640, %v4608
        %v4642 = vadd.f32 %v4641, %v4612
        %v4643 = vadd.f32 %v4642, %v4616
        %v4644 = vadd.f32 %v4643, %v4620
        %v4645 = vadd.f32 %v4644, %v4624
        %v4646 = vadd.f32 %v4645, %v4628
        %v4647 = vrot.slane %v4646, 4
        %v4648 = vadd.f32 %v4646, %v4647
        %v4649 = vrot.slane %v4648, 2
        %v4650 = vadd.f32 %v4648, %v4649
        %v4651 = vrot.slane %v4650, 1
        %v4652 = vadd.f32 %v4650, %v4651
        %v4653 = vadd.f32 %v4569, %v4573
        %v4654 = vadd.f32 %v4653, %v4577
        %v4655 = vadd.f32 %v4654, %v4581
        %v4656 = vadd.f32 %v4655, %v4585
        %v4657 = vadd.f32 %v4656, %v4589
        %v4658 = vadd.f32 %v4657, %v4593
        %v4659 = vadd.f32 %v4658, %v4597
        %v4660 = vadd.f32 %v4659, %v4601
        %v4661 = vadd.f32 %v4660, %v4605
        %v4662 = vadd.f32 %v4661, %v4609
        %v4663 = vadd.f32 %v4662, %v4613
        %v4664 = vadd.f32 %v4663, %v4617
        %v4665 = vadd.f32 %v4664, %v4621
        %v4666 = vadd.f32 %v4665, %v4625
        %v4667 = vadd.f32 %v4666, %v4629
        %v4668 = vrot.slane %v4667, 4
        %v4669 = vadd.f32 %v4667, %v4668
        %v4670 = vrot.slane %v4669, 2
        %v4671 = vadd.f32 %v4669, %v4670
        %v4672 = vrot.slane %v4671, 1
        %v4673 = vadd.f32 %v4671, %v4672
        %v4674 = vadd.f32 %v4570, %v4574
        %v4675 = vadd.f32 %v4674, %v4578
        %v4676 = vadd.f32 %v4675, %v4582
        %v4677 = vadd.f32 %v4676, %v4586
        %v4678 = vadd.f32 %v4677, %v4590
        %v4679 = vadd.f32 %v4678, %v4594
        %v4680 = vadd.f32 %v4679, %v4598
        %v4681 = vadd.f32 %v4680, %v4602
        %v4682 = vadd.f32 %v4681, %v4606
        %v4683 = vadd.f32 %v4682, %v4610
        %v4684 = vadd.f32 %v4683, %v4614
        %v4685 = vadd.f32 %v4684, %v4618
        %v4686 = vadd.f32 %v4685, %v4622
        %v4687 = vadd.f32 %v4686, %v4626
        %v4688 = vadd.f32 %v4687, %v4630
        %v4689 = vrot.slane %v4688, 4
        %v4690 = vadd.f32 %v4688, %v4689
        %v4691 = vrot.slane %v4690, 2
        %v4692 = vadd.f32 %v4690, %v4691
        %v4693 = vrot.slane %v4692, 1
        %v4694 = vadd.f32 %v4692, %v4693
        %v4695 = vadd.f32 %v4571, %v4575
        %v4696 = vadd.f32 %v4695, %v4579
        %v4697 = vadd.f32 %v4696, %v4583
        %v4698 = vadd.f32 %v4697, %v4587
        %v4699 = vadd.f32 %v4698, %v4591
        %v4700 = vadd.f32 %v4699, %v4595
        %v4701 = vadd.f32 %v4700, %v4599
        %v4702 = vadd.f32 %v4701, %v4603
        %v4703 = vadd.f32 %v4702, %v4607
        %v4704 = vadd.f32 %v4703, %v4611
        %v4705 = vadd.f32 %v4704, %v4615
        %v4706 = vadd.f32 %v4705, %v4619
        %v4707 = vadd.f32 %v4706, %v4623
        %v4708 = vadd.f32 %v4707, %v4627
        %v4709 = vadd.f32 %v4708, %v4631
        %v4710 = vrot.slane %v4709, 4
        %v4711 = vadd.f32 %v4709, %v4710
        %v4712 = vrot.slane %v4711, 2
        %v4713 = vadd.f32 %v4711, %v4712
        %v4714 = vrot.slane %v4713, 1
        %v4715 = vadd.f32 %v4713, %v4714
        %v4716 = vmul.f32 %v4652, %v1131
        %v4717 = vmul.f32 %v4673, %v1131
        %v4718 = vmul.f32 %v4694, %v1131
        %v4719 = vmul.f32 %v4715, %v1131
        %v4720 = vadd.f32 %v4716, 1e-05
        %v4721 = vadd.f32 %v4717, 1e-05
        %v4722 = vadd.f32 %v4718, 1e-05
        %v4723 = vadd.f32 %v4719, 1e-05
        %v4724 = vrsqrt.pop %v4720
        %v4725 = vrsqrt.pop %v4721
        %v4726 = vrsqrt.pop %v4722
        %v4727 = vrsqrt.pop %v4723
        %v4728 = vmul.f32 %v649, %v4724
        %v4729 = vmul.f32 %v650, %v4725
        %v4730 = vmul.f32 %v651, %v4726
        %v4731 = vmul.f32 %v652, %v4727
        %v4732 = vmul.f32 %v4500, %v4728
        %v4733 = vmul.f32 %v4501, %v4729
        %v4734 = vmul.f32 %v4502, %v4730
        %v4735 = vmul.f32 %v4503, %v4731
        %v4740 = vrot.slane %v4732, 5
        %v4741 = vrot.slane %v4733, 5
        %v4742 = vrot.slane %v4734, 5
        %v4743 = vrot.slane %v4735, 5
        %v4748 = vsub.f32 %v649, %v4740
        %v4749 = vsub.f32 %v650, %v4741
        %v4750 = vsub.f32 %v651, %v4742
        %v4751 = vsub.f32 %v652, %v4743
        %v4752 = vlaneseq
        %v4753 = vshrl.u32 %v4752, 7
        %v4754 = vsub.s32 2, %v4753
        %v4755 = vrot.slane %v4728, %v4754
        %v4756 = vlaneseq
        %v4757 = vshrl.u32 %v4756, 7
        %v4758 = vsub.s32 2, %v4757
        %v4759 = vrot.slane %v4729, %v4758
        %v4760 = vlaneseq
        %v4761 = vshrl.u32 %v4760, 7
        %v4762 = vsub.s32 2, %v4761
        %v4763 = vrot.slane %v4730, %v4762
        %v4764 = vlaneseq
        %v4765 = vshrl.u32 %v4764, 7
        %v4766 = vsub.s32 2, %v4765
        %v4767 = vrot.slane %v4731, %v4766
        %v4768 = vmul.f32 %v4112, %v4755
        %v4769 = vmul.f32 %v4114, %v4759
        %v4770 = vmul.f32 %v4338, %v4763
        %v4771 = vmul.f32 %v4340, %v4767
        %v4772 = vmul.f32 %v4116, %v4755
        %v4773 = vmul.f32 %v4118, %v4759
        %v4774 = vmul.f32 %v4342, %v4763
        %v4775 = vmul.f32 %v4344, %v4767
        %v4776 = vmul.f32 %v4122, %v4755
        %v4777 = vmul.f32 %v4124, %v4759
        %v4778 = vmul.f32 %v4348, %v4763
        %v4779 = vmul.f32 %v4350, %v4767
        %v4780 = vmul.f32 %v4126, %v4755
        %v4781 = vmul.f32 %v4128, %v4759
        %v4782 = vmul.f32 %v4352, %v4763
        %v4783 = vmul.f32 %v4354, %v4767
        %v4784 = vmul.f32 %v4132, %v4755
        %v4785 = vmul.f32 %v4134, %v4759
        %v4786 = vmul.f32 %v4358, %v4763
        %v4787 = vmul.f32 %v4360, %v4767
        %v4788 = vmul.f32 %v4136, %v4755
        %v4789 = vmul.f32 %v4138, %v4759
        %v4790 = vmul.f32 %v4362, %v4763
        %v4791 = vmul.f32 %v4364, %v4767
        %v4792 = vmul.f32 %v4142, %v4755
        %v4793 = vmul.f32 %v4144, %v4759
        %v4794 = vmul.f32 %v4368, %v4763
        %v4795 = vmul.f32 %v4370, %v4767
        %v4796 = vmul.f32 %v4146, %v4755
        %v4797 = vmul.f32 %v4148, %v4759
        %v4798 = vmul.f32 %v4372, %v4763
        %v4799 = vmul.f32 %v4374, %v4767
        %v4800 = vmul.f32 %v4152, %v4755
        %v4801 = vmul.f32 %v4154, %v4759
        %v4802 = vmul.f32 %v4378, %v4763
        %v4803 = vmul.f32 %v4380, %v4767
        %v4804 = vmul.f32 %v4156, %v4755
        %v4805 = vmul.f32 %v4158, %v4759
        %v4806 = vmul.f32 %v4382, %v4763
        %v4807 = vmul.f32 %v4384, %v4767
        %v4808 = vmul.f32 %v4162, %v4755
        %v4809 = vmul.f32 %v4164, %v4759
        %v4810 = vmul.f32 %v4388, %v4763
        %v4811 = vmul.f32 %v4390, %v4767
        %v4812 = vmul.f32 %v4166, %v4755
        %v4813 = vmul.f32 %v4168, %v4759
        %v4814 = vmul.f32 %v4392, %v4763
        %v4815 = vmul.f32 %v4394, %v4767
        %v4816 = vmul.f32 %v4172, %v4755
        %v4817 = vmul.f32 %v4174, %v4759
        %v4818 = vmul.f32 %v4398, %v4763
        %v4819 = vmul.f32 %v4400, %v4767
        %v4820 = vmul.f32 %v4176, %v4755
        %v4821 = vmul.f32 %v4178, %v4759
        %v4822 = vmul.f32 %v4402, %v4763
        %v4823 = vmul.f32 %v4404, %v4767
        %v4824 = vmul.f32 %v4182, %v4755
        %v4825 = vmul.f32 %v4184, %v4759
        %v4826 = vmul.f32 %v4408, %v4763
        %v4827 = vmul.f32 %v4410, %v4767
        %v4828 = vmul.f32 %v4186, %v4755
        %v4829 = vmul.f32 %v4188, %v4759
        %v4830 = vmul.f32 %v4412, %v4763
        %v4831 = vmul.f32 %v4414, %v4767
        %v4832 = vlaneseq
        %v4833 = vshrl.u32 %v4832, 7
        %v4834 = vsub.s32 5, %v4833
        %v4835 = vrot.slane %v4748, %v4834
        %v4836 = vlaneseq
        %v4837 = vshrl.u32 %v4836, 7
        %v4838 = vsub.s32 5, %v4837
        %v4839 = vrot.slane %v4749, %v4838
        %v4840 = vlaneseq
        %v4841 = vshrl.u32 %v4840, 7
        %v4842 = vsub.s32 5, %v4841
        %v4843 = vrot.slane %v4750, %v4842
        %v4844 = vlaneseq
        %v4845 = vshrl.u32 %v4844, 7
        %v4846 = vsub.s32 5, %v4845
        %v4847 = vrot.slane %v4751, %v4846
        %v4848 = vadd.f32 %v4768, %v4835
        %v4849 = vadd.f32 %v4769, %v4839
        %v4850 = vadd.f32 %v4770, %v4843
        %v4851 = vadd.f32 %v4771, %v4847
        %v4852 = vadd.f32 %v4772, %v4835
        %v4853 = vadd.f32 %v4773, %v4839
        %v4854 = vadd.f32 %v4774, %v4843
        %v4855 = vadd.f32 %v4775, %v4847
        %v4856 = vadd.f32 %v4776, %v4835
        %v4857 = vadd.f32 %v4777, %v4839
        %v4858 = vadd.f32 %v4778, %v4843
        %v4859 = vadd.f32 %v4779, %v4847
        %v4860 = vadd.f32 %v4780, %v4835
        %v4861 = vadd.f32 %v4781, %v4839
        %v4862 = vadd.f32 %v4782, %v4843
        %v4863 = vadd.f32 %v4783, %v4847
        %v4864 = vadd.f32 %v4784, %v4835
        %v4865 = vadd.f32 %v4785, %v4839
        %v4866 = vadd.f32 %v4786, %v4843
        %v4867 = vadd.f32 %v4787, %v4847
        %v4868 = vadd.f32 %v4788, %v4835
        %v4869 = vadd.f32 %v4789, %v4839
        %v4870 = vadd.f32 %v4790, %v4843
        %v4871 = vadd.f32 %v4791, %v4847
        %v4872 = vadd.f32 %v4792, %v4835
        %v4873 = vadd.f32 %v4793, %v4839
        %v4874 = vadd.f32 %v4794, %v4843
        %v4875 = vadd.f32 %v4795, %v4847
        %v4876 = vadd.f32 %v4796, %v4835
        %v4877 = vadd.f32 %v4797, %v4839
        %v4878 = vadd.f32 %v4798, %v4843
        %v4879 = vadd.f32 %v4799, %v4847
        %v4880 = vadd.f32 %v4800, %v4835
        %v4881 = vadd.f32 %v4801, %v4839
        %v4882 = vadd.f32 %v4802, %v4843
        %v4883 = vadd.f32 %v4803, %v4847
        %v4884 = vadd.f32 %v4804, %v4835
        %v4885 = vadd.f32 %v4805, %v4839
        %v4886 = vadd.f32 %v4806, %v4843
        %v4887 = vadd.f32 %v4807, %v4847
        %v4888 = vadd.f32 %v4808, %v4835
        %v4889 = vadd.f32 %v4809, %v4839
        %v4890 = vadd.f32 %v4810, %v4843
        %v4891 = vadd.f32 %v4811, %v4847
        %v4892 = vadd.f32 %v4812, %v4835
        %v4893 = vadd.f32 %v4813, %v4839
        %v4894 = vadd.f32 %v4814, %v4843
        %v4895 = vadd.f32 %v4815, %v4847
        %v4896 = vadd.f32 %v4816, %v4835
        %v4897 = vadd.f32 %v4817, %v4839
        %v4898 = vadd.f32 %v4818, %v4843
        %v4899 = vadd.f32 %v4819, %v4847
        %v4900 = vadd.f32 %v4820, %v4835
        %v4901 = vadd.f32 %v4821, %v4839
        %v4902 = vadd.f32 %v4822, %v4843
        %v4903 = vadd.f32 %v4823, %v4847
        %v4904 = vadd.f32 %v4824, %v4835
        %v4905 = vadd.f32 %v4825, %v4839
        %v4906 = vadd.f32 %v4826, %v4843
        %v4907 = vadd.f32 %v4827, %v4847
        %v4908 = vadd.f32 %v4828, %v4835
        %v4909 = vadd.f32 %v4829, %v4839
        %v4910 = vadd.f32 %v4830, %v4843
        %v4911 = vadd.f32 %v4831, %v4847
        %v4912 = vmax.f32 %v4848, 0.0
        %v4913 = vmax.f32 %v4849, 0.0
        %v4914 = vmax.f32 %v4850, 0.0
        %v4915 = vmax.f32 %v4851, 0.0
        %v4916 = vmax.f32 %v4852, 0.0
        %v4917 = vmax.f32 %v4853, 0.0
        %v4918 = vmax.f32 %v4854, 0.0
        %v4919 = vmax.f32 %v4855, 0.0
        %v4920 = vmax.f32 %v4856, 0.0
        %v4921 = vmax.f32 %v4857, 0.0
        %v4922 = vmax.f32 %v4858, 0.0
        %v4923 = vmax.f32 %v4859, 0.0
        %v4924 = vmax.f32 %v4860, 0.0
        %v4925 = vmax.f32 %v4861, 0.0
        %v4926 = vmax.f32 %v4862, 0.0
        %v4927 = vmax.f32 %v4863, 0.0
        %v4928 = vmax.f32 %v4864, 0.0
        %v4929 = vmax.f32 %v4865, 0.0
        %v4930 = vmax.f32 %v4866, 0.0
        %v4931 = vmax.f32 %v4867, 0.0
        %v4932 = vmax.f32 %v4868, 0.0
        %v4933 = vmax.f32 %v4869, 0.0
        %v4934 = vmax.f32 %v4870, 0.0
        %v4935 = vmax.f32 %v4871, 0.0
        %v4936 = vmax.f32 %v4872, 0.0
        %v4937 = vmax.f32 %v4873, 0.0
        %v4938 = vmax.f32 %v4874, 0.0
        %v4939 = vmax.f32 %v4875, 0.0
        %v4940 = vmax.f32 %v4876, 0.0
        %v4941 = vmax.f32 %v4877, 0.0
        %v4942 = vmax.f32 %v4878, 0.0
        %v4943 = vmax.f32 %v4879, 0.0
        %v4944 = vmax.f32 %v4880, 0.0
        %v4945 = vmax.f32 %v4881, 0.0
        %v4946 = vmax.f32 %v4882, 0.0
        %v4947 = vmax.f32 %v4883, 0.0
        %v4948 = vmax.f32 %v4884, 0.0
        %v4949 = vmax.f32 %v4885, 0.0
        %v4950 = vmax.f32 %v4886, 0.0
        %v4951 = vmax.f32 %v4887, 0.0
        %v4952 = vmax.f32 %v4888, 0.0
        %v4953 = vmax.f32 %v4889, 0.0
        %v4954 = vmax.f32 %v4890, 0.0
        %v4955 = vmax.f32 %v4891, 0.0
        %v4956 = vmax.f32 %v4892, 0.0
        %v4957 = vmax.f32 %v4893, 0.0
        %v4958 = vmax.f32 %v4894, 0.0
        %v4959 = vmax.f32 %v4895, 0.0
        %v4960 = vmax.f32 %v4896, 0.0
        %v4961 = vmax.f32 %v4897, 0.0
        %v4962 = vmax.f32 %v4898, 0.0
        %v4963 = vmax.f32 %v4899, 0.0
        %v4964 = vmax.f32 %v4900, 0.0
        %v4965 = vmax.f32 %v4901, 0.0
        %v4966 = vmax.f32 %v4902, 0.0
        %v4967 = vmax.f32 %v4903, 0.0
        %v4968 = vmax.f32 %v4904, 0.0
        %v4969 = vmax.f32 %v4905, 0.0
        %v4970 = vmax.f32 %v4906, 0.0
        %v4971 = vmax.f32 %v4907, 0.0
        %v4972 = vmax.f32 %v4908, 0.0
        %v4973 = vmax.f32 %v4909, 0.0
        %v4974 = vmax.f32 %v4910, 0.0
        %v4975 = vmax.f32 %v4911, 0.0
        %v4976 = vpack.c.bf16 %v4916, %v4912
        %v4977 = vpack.c.bf16 %v4917, %v4913
        %v4978 = vpack.c.bf16 %v4918, %v4914
        %v4979 = vpack.c.bf16 %v4919, %v4915
        %v4980 = vpack.c.bf16 %v4924, %v4920
        %v4981 = vpack.c.bf16 %v4925, %v4921
        %v4982 = vpack.c.bf16 %v4926, %v4922
        %v4983 = vpack.c.bf16 %v4927, %v4923
        %v4984 = vpack.c.bf16 %v4932, %v4928
        %v4985 = vpack.c.bf16 %v4933, %v4929
        %v4986 = vpack.c.bf16 %v4934, %v4930
        %v4987 = vpack.c.bf16 %v4935, %v4931
        %v4988 = vpack.c.bf16 %v4940, %v4936
        %v4989 = vpack.c.bf16 %v4941, %v4937
        %v4990 = vpack.c.bf16 %v4942, %v4938
        %v4991 = vpack.c.bf16 %v4943, %v4939
        %v4992 = vpack.c.bf16 %v4948, %v4944
        %v4993 = vpack.c.bf16 %v4949, %v4945
        %v4994 = vpack.c.bf16 %v4950, %v4946
        %v4995 = vpack.c.bf16 %v4951, %v4947
        %v4996 = vpack.c.bf16 %v4956, %v4952
        %v4997 = vpack.c.bf16 %v4957, %v4953
        %v4998 = vpack.c.bf16 %v4958, %v4954
        %v4999 = vpack.c.bf16 %v4959, %v4955
        %v5000 = vpack.c.bf16 %v4964, %v4960
        %v5001 = vpack.c.bf16 %v4965, %v4961
        %v5002 = vpack.c.bf16 %v4966, %v4962
        %v5003 = vpack.c.bf16 %v4967, %v4963
        %v5004 = vpack.c.bf16 %v4972, %v4968
        %v5005 = vpack.c.bf16 %v4973, %v4969
        %v5006 = vpack.c.bf16 %v4974, %v4970
        %v5007 = vpack.c.bf16 %v4975, %v4971
        %v5008 = vlaneseq
        %v5009 = vshrl.u32 %v5008, 7
        %v5010 = vsub.s32 6, %v5009
        %v5011 = vrot.slane %v649, %v5010
        %v5076 = vunpack.c.l.b16 %v585
        %v5077 = vunpack.c.l.b16 %v586
        %v5078 = vunpack.c.l.b16 %v587
        %v5079 = vunpack.c.l.b16 %v588
        %v5080 = vunpack.c.l.b16 %v589
        %v5081 = vunpack.c.l.b16 %v590
        %v5082 = vunpack.c.l.b16 %v591
        %v5083 = vunpack.c.l.b16 %v592
        %v5084 = vunpack.c.l.b16 %v593
        %v5085 = vunpack.c.l.b16 %v594
        %v5086 = vunpack.c.l.b16 %v595
        %v5087 = vunpack.c.l.b16 %v596
        %v5088 = vunpack.c.l.b16 %v597
        %v5089 = vunpack.c.l.b16 %v598
        %v5090 = vunpack.c.l.b16 %v599
        %v5091 = vunpack.c.l.b16 %v600
        %v5092 = vunpack.c.l.b16 %v601
        %v5093 = vunpack.c.l.b16 %v602
        %v5094 = vunpack.c.l.b16 %v603
        %v5095 = vunpack.c.l.b16 %v604
        %v5096 = vunpack.c.l.b16 %v605
        %v5097 = vunpack.c.l.b16 %v606
        %v5098 = vunpack.c.l.b16 %v607
        %v5099 = vunpack.c.l.b16 %v608
        %v5100 = vunpack.c.l.b16 %v609
        %v5101 = vunpack.c.l.b16 %v610
        %v5102 = vunpack.c.l.b16 %v611
        %v5103 = vunpack.c.l.b16 %v612
        %v5104 = vunpack.c.l.b16 %v613
        %v5105 = vunpack.c.l.b16 %v614
        %v5106 = vunpack.c.l.b16 %v615
        %v5107 = vunpack.c.l.b16 %v616
        %v5108 = vunpack.c.l.b16 %v617
        %v5109 = vunpack.c.l.b16 %v618
        %v5110 = vunpack.c.l.b16 %v619
        %v5111 = vunpack.c.l.b16 %v620
        %v5112 = vunpack.c.l.b16 %v621
        %v5113 = vunpack.c.l.b16 %v622
        %v5114 = vunpack.c.l.b16 %v623
        %v5115 = vunpack.c.l.b16 %v624
        %v5116 = vunpack.c.l.b16 %v625
        %v5117 = vunpack.c.l.b16 %v626
        %v5118 = vunpack.c.l.b16 %v627
        %v5119 = vunpack.c.l.b16 %v628
        %v5120 = vunpack.c.l.b16 %v629
        %v5121 = vunpack.c.l.b16 %v630
        %v5122 = vunpack.c.l.b16 %v631
        %v5123 = vunpack.c.l.b16 %v632
        %v5124 = vunpack.c.l.b16 %v633
        %v5125 = vunpack.c.l.b16 %v634
        %v5126 = vunpack.c.l.b16 %v635
        %v5127 = vunpack.c.l.b16 %v636
        %v5128 = vunpack.c.l.b16 %v637
        %v5129 = vunpack.c.l.b16 %v638
        %v5130 = vunpack.c.l.b16 %v639
        %v5131 = vunpack.c.l.b16 %v640
        %v5132 = vunpack.c.l.b16 %v641
        %v5133 = vunpack.c.l.b16 %v642
        %v5134 = vunpack.c.l.b16 %v643
        %v5135 = vunpack.c.l.b16 %v644
        %v5136 = vunpack.c.l.b16 %v645
        %v5137 = vunpack.c.l.b16 %v646
        %v5138 = vunpack.c.l.b16 %v647
        %v5139 = vunpack.c.l.b16 %v648
        %v5140 = vpack.c.b16 %v5077, %v5076
        %v5141 = vpack.c.b16 %v5079, %v5078
        %v5142 = vpack.c.b16 %v5081, %v5080
        %v5143 = vpack.c.b16 %v5083, %v5082
        %v5144 = vpack.c.b16 %v5085, %v5084
        %v5145 = vpack.c.b16 %v5087, %v5086
        %v5146 = vpack.c.b16 %v5089, %v5088
        %v5147 = vpack.c.b16 %v5091, %v5090
        %v5148 = vpack.c.b16 %v5093, %v5092
        %v5149 = vpack.c.b16 %v5095, %v5094
        %v5150 = vpack.c.b16 %v5097, %v5096
        %v5151 = vpack.c.b16 %v5099, %v5098
        %v5152 = vpack.c.b16 %v5101, %v5100
        %v5153 = vpack.c.b16 %v5103, %v5102
        %v5154 = vpack.c.b16 %v5105, %v5104
        %v5155 = vpack.c.b16 %v5107, %v5106
        %v5156 = vpack.c.b16 %v5109, %v5108
        %v5157 = vpack.c.b16 %v5111, %v5110
        %v5158 = vpack.c.b16 %v5113, %v5112
        %v5159 = vpack.c.b16 %v5115, %v5114
        %v5160 = vpack.c.b16 %v5117, %v5116
        %v5161 = vpack.c.b16 %v5119, %v5118
        %v5162 = vpack.c.b16 %v5121, %v5120
        %v5163 = vpack.c.b16 %v5123, %v5122
        %v5164 = vpack.c.b16 %v5125, %v5124
        %v5165 = vpack.c.b16 %v5127, %v5126
        %v5166 = vpack.c.b16 %v5129, %v5128
        %v5167 = vpack.c.b16 %v5131, %v5130
        %v5168 = vpack.c.b16 %v5133, %v5132
        %v5169 = vpack.c.b16 %v5135, %v5134
        %v5170 = vpack.c.b16 %v5137, %v5136
        %v5171 = vpack.c.b16 %v5139, %v5138
        %5204 = vmatprep.subr.bf16.mxu0 0
        %5205 = vmatpush1.bf16.msra.mxu0 %v5140
        %5206 = vmatprep.subr.bf16.mxu0 0
        %5207 = vmatpush1.bf16.msra.mxu0 %v5141
        %5208 = vmatprep.subr.bf16.mxu0 0
        %5209 = vmatpush1.bf16.msra.mxu0 %v5142
        %5210 = vmatprep.subr.bf16.mxu0 0
        %5211 = vmatpush1.bf16.msra.mxu0 %v5143
        %5212 = vmatprep.subr.bf16.mxu0 0
        %5213 = vmatpush1.bf16.msra.mxu0 %v5144
        %5214 = vmatprep.subr.bf16.mxu0 0
        %5215 = vmatpush1.bf16.msra.mxu0 %v5145
        %5216 = vmatprep.subr.bf16.mxu0 0
        %5217 = vmatpush1.bf16.msra.mxu0 %v5146
        %5218 = vmatprep.subr.bf16.mxu0 0
        %5219 = vmatpush1.bf16.msra.mxu0 %v5147
        %5220 = vmatprep.subr.bf16.mxu0 0
        %5221 = vmatpush1.bf16.msra.mxu0 %v5148
        %5222 = vmatprep.subr.bf16.mxu0 0
        %5223 = vmatpush1.bf16.msra.mxu0 %v5149
        %5224 = vmatprep.subr.bf16.mxu0 0
        %5225 = vmatpush1.bf16.msra.mxu0 %v5150
        %5226 = vmatprep.subr.bf16.mxu0 0
        %5227 = vmatpush1.bf16.msra.mxu0 %v5151
        %5228 = vmatprep.subr.bf16.mxu0 0
        %5229 = vmatpush1.bf16.msra.mxu0 %v5152
        %5230 = vmatprep.subr.bf16.mxu0 0
        %5231 = vmatpush1.bf16.msra.mxu0 %v5153
        %5232 = vmatprep.subr.bf16.mxu0 0
        %5233 = vmatpush1.bf16.msra.mxu0 %v5154
        %5234 = vmatprep.subr.bf16.mxu0 0
        %5235 = vmatpush1.bf16.msra.mxu0 %v5155
        %5236 = vmatprep.mubr.bf16.mxu0 %v4977
        %5237 = vmatmul.mubr.bf16.gmra.mrb[0].mxu0 %v4976
        %v5238 = vpop.f32.mrb[0].mxu0
        %v5239 = vadd.f32 %v5011, %v5238
        %v5240 = vpop.f32.mrb[0].mxu0
        %v5241 = vpop.f32.mrb[0].mxu0
        %v5242 = vadd.f32 %v5011, %v5241
        %v5243 = vpop.f32.mrb[0].mxu0
        %5244 = vmatprep.mubr.bf16.mxu0 %v4981
        %5245 = vmatmul.mubr.bf16.gmra.mrb[0].mxu0 %v4980
        %v5246 = vpop.f32.mrb[0].mxu0
        %v5247 = vadd.f32 %v5011, %v5246
        %v5248 = vpop.f32.mrb[0].mxu0
        %v5249 = vpop.f32.mrb[0].mxu0
        %v5250 = vadd.f32 %v5011, %v5249
        %v5251 = vpop.f32.mrb[0].mxu0
        %5252 = vmatprep.mubr.bf16.mxu0 %v4985
        %5253 = vmatmul.mubr.bf16.gmra.mrb[0].mxu0 %v4984
        %v5254 = vpop.f32.mrb[0].mxu0
        %v5255 = vadd.f32 %v5011, %v5254
        %v5256 = vpop.f32.mrb[0].mxu0
        %v5257 = vpop.f32.mrb[0].mxu0
        %v5258 = vadd.f32 %v5011, %v5257
        %v5259 = vpop.f32.mrb[0].mxu0
        %5260 = vmatprep.mubr.bf16.mxu0 %v4989
        %5261 = vmatmul.mubr.bf16.gmra.mrb[0].mxu0 %v4988
        %v5262 = vpop.f32.mrb[0].mxu0
        %v5263 = vadd.f32 %v5011, %v5262
        %v5264 = vpop.f32.mrb[0].mxu0
        %v5265 = vpop.f32.mrb[0].mxu0
        %v5266 = vadd.f32 %v5011, %v5265
        %v5267 = vpop.f32.mrb[0].mxu0
        %5268 = vmatprep.mubr.bf16.mxu0 %v4993
        %5269 = vmatmul.mubr.bf16.gmra.mrb[0].mxu0 %v4992
        %v5270 = vpop.f32.mrb[0].mxu0
        %v5271 = vadd.f32 %v5011, %v5270
        %v5272 = vpop.f32.mrb[0].mxu0
        %v5273 = vpop.f32.mrb[0].mxu0
        %v5274 = vadd.f32 %v5011, %v5273
        %v5275 = vpop.f32.mrb[0].mxu0
        %5276 = vmatprep.mubr.bf16.mxu0 %v4997
        %5277 = vmatmul.mubr.bf16.gmra.mrb[0].mxu0 %v4996
        %v5278 = vpop.f32.mrb[0].mxu0
        %v5279 = vadd.f32 %v5011, %v5278
        %v5280 = vpop.f32.mrb[0].mxu0
        %v5281 = vpop.f32.mrb[0].mxu0
        %v5282 = vadd.f32 %v5011, %v5281
        %v5283 = vpop.f32.mrb[0].mxu0
        %5284 = vmatprep.mubr.bf16.mxu0 %v5001
        %5285 = vmatmul.mubr.bf16.gmra.mrb[0].mxu0 %v5000
        %v5286 = vpop.f32.mrb[0].mxu0
        %v5287 = vadd.f32 %v5011, %v5286
        %v5288 = vpop.f32.mrb[0].mxu0
        %v5289 = vpop.f32.mrb[0].mxu0
        %v5290 = vadd.f32 %v5011, %v5289
        %v5291 = vpop.f32.mrb[0].mxu0
        %5292 = vmatprep.mubr.bf16.mxu0 %v5005
        %5293 = vmatmul.mubr.bf16.gmra.mrb[0].mxu0 %v5004
        %v5294 = vpop.f32.mrb[0].mxu0
        %v5295 = vadd.f32 %v5011, %v5294
        %v5296 = vpop.f32.mrb[0].mxu0
        %v5297 = vpop.f32.mrb[0].mxu0
        %v5298 = vadd.f32 %v5011, %v5297
        %v5299 = vpop.f32.mrb[0].mxu0
        %5300 = vdwg.mxu0
        %5301 = vmatprep.subr.bf16.mxu0 0
        %5302 = vmatpush1.bf16.msra.mxu0 %v5156
        %5303 = vmatprep.subr.bf16.mxu0 0
        %5304 = vmatpush1.bf16.msra.mxu0 %v5157
        %5305 = vmatprep.subr.bf16.mxu0 0
        %5306 = vmatpush1.bf16.msra.mxu0 %v5158
        %5307 = vmatprep.subr.bf16.mxu0 0
        %5308 = vmatpush1.bf16.msra.mxu0 %v5159
        %5309 = vmatprep.subr.bf16.mxu0 0
        %5310 = vmatpush1.bf16.msra.mxu0 %v5160
        %5311 = vmatprep.subr.bf16.mxu0 0
        %5312 = vmatpush1.bf16.msra.mxu0 %v5161
        %5313 = vmatprep.subr.bf16.mxu0 0
        %5314 = vmatpush1.bf16.msra.mxu0 %v5162
        %5315 = vmatprep.subr.bf16.mxu0 0
        %5316 = vmatpush1.bf16.msra.mxu0 %v5163
        %5317 = vmatprep.subr.bf16.mxu0 0
        %5318 = vmatpush1.bf16.msra.mxu0 %v5164
        %5319 = vmatprep.subr.bf16.mxu0 0
        %5320 = vmatpush1.bf16.msra.mxu0 %v5165
        %5321 = vmatprep.subr.bf16.mxu0 0
        %5322 = vmatpush1.bf16.msra.mxu0 %v5166
        %5323 = vmatprep.subr.bf16.mxu0 0
        %5324 = vmatpush1.bf16.msra.mxu0 %v5167
        %5325 = vmatprep.subr.bf16.mxu0 0
        %5326 = vmatpush1.bf16.msra.mxu0 %v5168
        %5327 = vmatprep.subr.bf16.mxu0 0
        %5328 = vmatpush1.bf16.msra.mxu0 %v5169
        %5329 = vmatprep.subr.bf16.mxu0 0
        %5330 = vmatpush1.bf16.msra.mxu0 %v5170
        %5331 = vmatprep.subr.bf16.mxu0 0
        %5332 = vmatpush1.bf16.msra.mxu0 %v5171
        %5333 = vmatprep.mubr.bf16.mxu0 %v4979
        %5334 = vmatmul.mubr.bf16.gmra.mrb[0].mxu0 %v4978
        %v5335 = vpop.f32.mrb[0].mxu0
        %v5336 = vadd.f32 %v5239, %v5335
        %v5337 = vpop.f32.mrb[0].mxu0
        %v5338 = vpop.f32.mrb[0].mxu0
        %v5339 = vadd.f32 %v5242, %v5338
        %v5340 = vpop.f32.mrb[0].mxu0
        %5341 = vmatprep.mubr.bf16.mxu0 %v4983
        %5342 = vmatmul.mubr.bf16.gmra.mrb[0].mxu0 %v4982
        %v5343 = vpop.f32.mrb[0].mxu0
        %v5344 = vadd.f32 %v5247, %v5343
        %v5345 = vpop.f32.mrb[0].mxu0
        %v5346 = vpop.f32.mrb[0].mxu0
        %v5347 = vadd.f32 %v5250, %v5346
        %v5348 = vpop.f32.mrb[0].mxu0
        %5349 = vmatprep.mubr.bf16.mxu0 %v4987
        %5350 = vmatmul.mubr.bf16.gmra.mrb[0].mxu0 %v4986
        %v5351 = vpop.f32.mrb[0].mxu0
        %v5352 = vadd.f32 %v5255, %v5351
        %v5353 = vpop.f32.mrb[0].mxu0
        %v5354 = vpop.f32.mrb[0].mxu0
        %v5355 = vadd.f32 %v5258, %v5354
        %v5356 = vpop.f32.mrb[0].mxu0
        %5357 = vmatprep.mubr.bf16.mxu0 %v4991
        %5358 = vmatmul.mubr.bf16.gmra.mrb[0].mxu0 %v4990
        %v5359 = vpop.f32.mrb[0].mxu0
        %v5360 = vadd.f32 %v5263, %v5359
        %v5361 = vpop.f32.mrb[0].mxu0
        %v5362 = vpop.f32.mrb[0].mxu0
        %v5363 = vadd.f32 %v5266, %v5362
        %v5364 = vpop.f32.mrb[0].mxu0
        %5365 = vmatprep.mubr.bf16.mxu0 %v4995
        %5366 = vmatmul.mubr.bf16.gmra.mrb[0].mxu0 %v4994
        %v5367 = vpop.f32.mrb[0].mxu0
        %v5368 = vadd.f32 %v5271, %v5367
        %v5369 = vpop.f32.mrb[0].mxu0
        %v5370 = vpop.f32.mrb[0].mxu0
        %v5371 = vadd.f32 %v5274, %v5370
        %v5372 = vpop.f32.mrb[0].mxu0
        %5373 = vmatprep.mubr.bf16.mxu0 %v4999
        %5374 = vmatmul.mubr.bf16.gmra.mrb[0].mxu0 %v4998
        %v5375 = vpop.f32.mrb[0].mxu0
        %v5376 = vadd.f32 %v5279, %v5375
        %v5377 = vpop.f32.mrb[0].mxu0
        %v5378 = vpop.f32.mrb[0].mxu0
        %v5379 = vadd.f32 %v5282, %v5378
        %v5380 = vpop.f32.mrb[0].mxu0
        %5381 = vmatprep.mubr.bf16.mxu0 %v5003
        %5382 = vmatmul.mubr.bf16.gmra.mrb[0].mxu0 %v5002
        %v5383 = vpop.f32.mrb[0].mxu0
        %v5384 = vadd.f32 %v5287, %v5383
        %v5385 = vpop.f32.mrb[0].mxu0
        %v5386 = vpop.f32.mrb[0].mxu0
        %v5387 = vadd.f32 %v5290, %v5386
        %v5388 = vpop.f32.mrb[0].mxu0
        %5389 = vmatprep.mubr.bf16.mxu0 %v5007
        %5390 = vmatmul.mubr.bf16.gmra.mrb[0].mxu0 %v5006
        %v5391 = vpop.f32.mrb[0].mxu0
        %v5392 = vadd.f32 %v5295, %v5391
        %v5393 = vpop.f32.mrb[0].mxu0
        %v5394 = vpop.f32.mrb[0].mxu0
        %v5395 = vadd.f32 %v5298, %v5394
        %v5396 = vpop.f32.mrb[0].mxu0
        %5397 = vdwg.mxu0
        %v5398 = vmax.f32 %v5336, 0.0
        %v5399 = vmax.f32 %v5339, 0.0
        %v5400 = vmax.f32 %v5344, 0.0
        %v5401 = vmax.f32 %v5347, 0.0
        %v5402 = vmax.f32 %v5352, 0.0
        %v5403 = vmax.f32 %v5355, 0.0
        %v5404 = vmax.f32 %v5360, 0.0
        %v5405 = vmax.f32 %v5363, 0.0
        %v5406 = vmax.f32 %v5368, 0.0
        %v5407 = vmax.f32 %v5371, 0.0
        %v5408 = vmax.f32 %v5376, 0.0
        %v5409 = vmax.f32 %v5379, 0.0
        %v5410 = vmax.f32 %v5384, 0.0
        %v5411 = vmax.f32 %v5387, 0.0
        %v5412 = vmax.f32 %v5392, 0.0
        %v5413 = vmax.f32 %v5395, 0.0
        %5414 = vst [vmem:[%s274] sm:$0xff] %v5398
        %5415 = vst [vmem:[%s274 + $0x8] sm:$0xff] %v5399
        %5416 = vst [vmem:[%s274 + $0x10] sm:$0xff] %v5400
        %5417 = vst [vmem:[%s274 + $0x18] sm:$0xff] %v5401
        %5418 = vst [vmem:[%s274 + $0x20] sm:$0xff] %v5402
        %5419 = vst [vmem:[%s274 + $0x28] sm:$0xff] %v5403
        %5420 = vst [vmem:[%s274 + $0x30] sm:$0xff] %v5404
        %5421 = vst [vmem:[%s274 + $0x38] sm:$0xff] %v5405
        %5422 = vst [vmem:[%s274 + $0x40] sm:$0xff] %v5406
        %5423 = vst [vmem:[%s274 + $0x48] sm:$0xff] %v5407
        %5424 = vst [vmem:[%s274 + $0x50] sm:$0xff] %v5408
        %5425 = vst [vmem:[%s274 + $0x58] sm:$0xff] %v5409
        %5426 = vst [vmem:[%s274 + $0x60] sm:$0xff] %v5410
        %5427 = vst [vmem:[%s274 + $0x68] sm:$0xff] %v5411
        %5428 = vst [vmem:[%s274 + $0x70] sm:$0xff] %v5412
        %5429 = vst [vmem:[%s274 + $0x78] sm:$0xff] %v5413
        %s5430 = sand.u32 %s161, 1
        %s5431 = scalar_lea.sflag [#allocation4], %s5430
        %s5432 = sand.u32 %s161, 1
        %s5433 = smul.addr %s5432, 128
        %s5434 = scalar_lea.vmem [#allocation7], %s5433
        // Predicated region
        $region53: #{generator_forward.1} parent=43 // pred_check
          %p5435 = pneg %p171
        $region54: #{generator_forward.1} parent=43 // pred_check_branch
          %5437 = sbr.rel (%p5435) target = $region56
        $region55: #{generator_forward.1} parent=43 // pred_region
          %s5439 = ssub.s32 2048, 2048
          %5440 = vsyncadd %s5431, %s5439
          %s5441 = smul.addr %s22, 16
          %s5442 = smul.addr %s5441, 128
          %s5443 = scalar_lea.hbm %s6, %s5442
          %s5444 = sshll.u32 %s5434, 4
          %s5445 = int_to_ptr.vmem [resolvable:$true] %s5444
          %5450 = dma.vmem_to_hbm [thread:$0]  %s5445, 2048, %s5443, %s5431, 128, 128, 8
        $region56: #{generator_forward.1} parent=43 // pred_fallthru
          _
      $region44: #{generator_forward.1} parent=5 // pred_fallthru
        _
      %p5451 = scmp.le.s32.totalorder 2, %s17
      // Predicated region
      $region57: #{generator_forward.1} parent=5 // pred_check
        %p5452 = pneg %p5451
      $region58: #{generator_forward.1} parent=5 // pred_check_branch
        %5454 = sbr.rel (%p5452) target = $region60
      $region59: #{generator_forward.1} parent=5 // pred_region
        %s5455 = ssub.s32 %s17, 2
        // Predicated region
        $region61: #{generator_forward.1} parent=59 // pred_check
          %p5456 = pneg %p177
        $region62: #{generator_forward.1} parent=59 // pred_check_branch
          %5458 = sbr.rel (%p5456) target = $region64
        $region63: #{generator_forward.1} parent=59 // pred_region
          %s5459 = sand.u32 %s162, 1
          %s5460 = scalar_lea.sflag [#allocation4], %s5459
          %s5461 = sand.u32 %s162, 1
          %s5462 = smul.addr %s5461, 128
          %s5463 = scalar_lea.vmem [#allocation7], %s5462
          %5464 = dma.done %s5460, 2048
        $region64: #{generator_forward.1} parent=59 // pred_fallthru
          _
      $region60: #{generator_forward.1} parent=5 // pred_fallthru
        _
    $region6: #{generator_forward.1} parent=1 // loop_footer
      %s21 = sadd.s32 1, %s17
    $region7: #{generator_forward.1} parent=1 // loop_footer_branch
      %16 = sbr.rel target = $region3
    $region8: #{generator_forward.1} parent=1 // loop_exit
      _
    %5465 = vsyncpa [#allocation3], 1
    %s5466 = scalar_lea.sflag [#allocation3], 1
    %5467 = vsyncpa %s5466, 1
    %5468 = vsyncpa [#allocation6], 1
    %5469 = vsyncpa [#allocation4], 1
    %s5470 = scalar_lea.sflag [#allocation4], 1
    %5471 = vsyncpa %s5470, 1

</llo_original>
